<compile_context>
chip_gen: v7x
topology: tpu7x:2x2x1
jax: 0.10.0
libtpu: 0.0.40
codegen_flags: <defaults>
</compile_context>

<pallas_src>
import jax
import jax.numpy as jnp
import numpy as np
from jax.experimental import pallas as pl
from jax.experimental.pallas import tpu as pltpu


# ----------------------------- fused Pallas kernel ------------------------------

def _mnist_fused_kernel(x_ref, w1_ref, b1_ref, r1e_ref, r1o_ref, s1e_ref, s1o_ref,
                        w2_ref, b2_ref, r2e_ref, r2o_ref, s2e_ref, s2o_ref,
                        wf1_ref, bf1_ref, wf2_ref, bf2_ref, wf3_ref, bf3_ref,
                        o_ref):
    f32 = jnp.float32

    def mm(a, b):
        return jnp.dot(a, b, preferred_element_type=f32)

    # ---- conv1 (5x5, 1->8) + ReLU.  Output (24 rows, 24*8=192 lanes). ----
    acc1 = jnp.broadcast_to(b1_ref[...], (24, 192))
    for i in range(5):
        acc1 = acc1 + mm(x_ref[0, i:i + 24, :], w1_ref[i])
    h1 = jnp.maximum(acc1, 0.0)                                   # (24, 192)

    # ---- maxpool 2x2/2 via exact 0/1 selection matmuls + max. ----
    t1 = jnp.maximum(mm(r1e_ref[...], h1), mm(r1o_ref[...], h1))  # (12, 192)
    p1 = jnp.maximum(mm(t1, s1e_ref[...]), mm(t1, s1o_ref[...]))  # (12, 96) lanes = pw*8+c

    # ---- conv2 (5x5, 8->16) + ReLU.  Output (8 rows, 8*16=128 lanes). ----
    acc2 = jnp.broadcast_to(b2_ref[...], (8, 128))
    for i in range(5):
        acc2 = acc2 + mm(p1[i:i + 8, :], w2_ref[i])
    h2 = jnp.maximum(acc2, 0.0)                                   # (8, 128)

    # ---- maxpool 2x2/2 -> (4, 64), lane order = pw*16 + c. ----
    t2 = jnp.maximum(mm(r2e_ref[...], h2), mm(r2o_ref[...], h2))  # (4, 128)
    p2 = jnp.maximum(mm(t2, s2e_ref[...]), mm(t2, s2o_ref[...]))  # (4, 64)

    # ---- fc1 (256->128): 4 row-block dots against the pre-permuted weight. ----
    z = jnp.broadcast_to(bf1_ref[...], (1, 128))
    for h in range(4):
        z = z + mm(p2[h:h + 1, :], wf1_ref[h])
    z = jnp.maximum(z, 0.0)

    # ---- fc2 (128->64) + ReLU, fc3 (64->10). ----
    z = jnp.maximum(mm(z, wf2_ref[...]) + bf2_ref[...], 0.0)
    z = mm(z, wf3_ref[...]) + bf3_ref[...]
    o_ref[0] = z.astype(o_ref.dtype)


# ----------------------------- host-side weight packing ------------------------------

def _pack_mnist_weights(params):
    """One-time repack of PyTorch-layout params into the kernel's matmul operands."""
    f32 = jnp.float32

    # conv1 banded matrices: W1[i][win, ow*8+co] = w_conv1[co, 0, i, win-ow]  (0<=win-ow<5)
    w1 = params["w_conv1"][:, 0]                                  # (8,5,5) [co,i,j]
    j1 = np.arange(28)[:, None] - np.arange(24)[None, :]          # win - ow
    v1 = (j1 >= 0) & (j1 < 5)
    w1_ijc = jnp.transpose(w1, (1, 2, 0))                         # (5,5,8) [i,j,co]
    W1 = jnp.where(v1[None, :, :, None], w1_ijc[:, np.clip(j1, 0, 4), :], 0.0)
    W1 = W1.reshape(5, 28, 24 * 8).astype(f32)                    # (5,28,192)
    b1 = jnp.tile(params["b_conv1"], 24).reshape(1, 192).astype(f32)

    # conv2 banded matrices: W2[i][p*8+ci, q*16+co] = w_conv2[co, ci, i, p-q]  (0<=p-q<5)
    w2 = params["w_conv2"]                                        # (16,8,5,5) [co,ci,i,j]
    j2 = np.arange(12)[:, None] - np.arange(8)[None, :]           # p - q
    v2 = (j2 >= 0) & (j2 < 5)
    w2_icjo = jnp.transpose(w2, (2, 1, 3, 0))                     # (5,8,5,16) [i,ci,j,co]
    W2 = w2_icjo[:, :, np.clip(j2, 0, 4), :]                      # (5,8,12,8,16) [i,ci,p,q,co]
    W2 = jnp.where(v2[None, None, :, :, None], W2, 0.0)
    W2 = jnp.transpose(W2, (0, 2, 1, 3, 4)).reshape(5, 96, 128).astype(f32)
    b2 = jnp.tile(params["b_conv2"], 8).reshape(1, 128).astype(f32)

    # 0/1 pooling selection matrices (exact).
    def row_sel(h_out, parity):
        m = np.zeros((h_out, 2 * h_out), np.float32)
        m[np.arange(h_out), 2 * np.arange(h_out) + parity] = 1.0
        return jnp.asarray(m)

    def col_sel(w_out, c, parity):
        m = np.zeros((2 * w_out * c, w_out * c), np.float32)
        for k in range(w_out):
            for cc in range(c):
                m[(2 * k + parity) * c + cc, k * c + cc] = 1.0
        return jnp.asarray(m)

    R1e, R1o = row_sel(12, 0), row_sel(12, 1)                     # (12, 24)
    S1e, S1o = col_sel(12, 8, 0), col_sel(12, 8, 1)               # (192, 96)
    R2e, R2o = row_sel(4, 0), row_sel(4, 1)                       # (4, 8)
    S2e, S2o = col_sel(4, 16, 0), col_sel(4, 16, 1)               # (128, 64)

    # fc1 weight permuted from torch.flatten (c,h,w) order to the kernel's (h, w*16+c) order.
    Wf1 = (params["w_fc1"].reshape(16, 4, 4, 128)
           .transpose(1, 2, 0, 3).reshape(4, 64, 128).astype(f32))

    return [W1, b1, R1e, R1o, S1e, S1o,
            W2, b2, R2e, R2o, S2e, S2o,
            Wf1, params["b_fc1"].astype(f32),
            params["w_fc2"].astype(f32), params["b_fc2"].astype(f32),
            params["w_fc3"].astype(f32), params["b_fc3"].astype(f32)]


# ----------------------------- forward wrapper ------------------------------

def mnistnet_forward(params, x_nchw):
    N = x_nchw.shape[0]
    assert x_nchw.shape[1:] == (1, 28, 28), "MNISTNet expects (N, 1, 28, 28) inputs"
    x = x_nchw.reshape(N, 28, 28).astype(jnp.float32)
    ops = _pack_mnist_weights(params)

    def _full_spec(a):
        nd = a.ndim
        return pl.BlockSpec(a.shape, lambda b, _nd=nd: (0,) * _nd)

    out = pl.pallas_call(
        _mnist_fused_kernel,
        out_shape=jax.ShapeDtypeStruct((N, 1, 10), jnp.float32),
        grid=(N,),
        in_specs=[pl.BlockSpec((1, 28, 28), lambda b: (b, 0, 0))]
                 + [_full_spec(a) for a in ops],
        out_specs=pl.BlockSpec((1, 1, 10), lambda b: (b, 0, 0)),
        compiler_params=pltpu.CompilerParams(dimension_semantics=("parallel",)),
    )(x, *ops)
    return out.reshape(N, 10)


# ------------------------------ parameters ---------------------------------

def init_params(key):
    def uinit(k, shape, fan_in):
        bound = 1.0 / np.sqrt(fan_in)
        return jax.random.uniform(k, shape, jnp.float32, -bound, bound)

    ks = jax.random.split(key, 10)
    return {
        "w_conv1": uinit(ks[0], (8, 1, 5, 5), 1 * 5 * 5),
        "b_conv1": uinit(ks[1], (8,), 1 * 5 * 5),
        "w_conv2": uinit(ks[2], (16, 8, 5, 5), 8 * 5 * 5),
        "b_conv2": uinit(ks[3], (16,), 8 * 5 * 5),
        # FC weights stored transposed (in_features, out_features); biases as (1, out).
        "w_fc1": uinit(ks[4], (256, 128), 256),
        "b_fc1": uinit(ks[5], (1, 128), 256),
        "w_fc2": uinit(ks[6], (128, 64), 128),
        "b_fc2": uinit(ks[7], (1, 64), 128),
        "w_fc3": uinit(ks[8], (64, 10), 64),
        "b_fc3": uinit(ks[9], (1, 10), 64),
    }


# ------------------------------ reference ---------------------------------

def _im2col(x_nchw, kh, kw):
    N, C, H, W = x_nchw.shape
    OH, OW = H - kh + 1, W - kw + 1
    cols = [x_nchw[:, c, i:i + OH, j:j + OW]
            for c in range(C) for i in range(kh) for j in range(kw)]
    return jnp.stack(cols, axis=-1)  # (N, OH, OW, C*kh*kw)


def reference_forward(params, x):
    """Pure-JAX reference with PyTorch MNISTNet semantics (f32-accurate matmuls)."""
    hi = jax.lax.Precision.HIGHEST

    def conv(xn, w, b):
        Cout, Cin, kh, kw = w.shape
        N, _, H, W = xn.shape
        OH, OW = H - kh + 1, W - kw + 1
        pat = _im2col(xn, kh, kw).reshape(N * OH * OW, Cin * kh * kw)
        y = jnp.maximum(jnp.dot(pat, w.reshape(Cout, -1).T, precision=hi)
                        + b.reshape(1, Cout), 0.0)
        return y.reshape(N, OH, OW, Cout)

    def pool(y):
        N, H, W, C = y.shape
        return jnp.max(y.reshape(N, H // 2, 2, W // 2, 2, C), axis=(2, 4))

    y = pool(conv(x, params["w_conv1"], params["b_conv1"]))
    y = pool(conv(jnp.transpose(y, (0, 3, 1, 2)), params["w_conv2"], params["b_conv2"]))
    flat = jnp.transpose(y, (0, 3, 1, 2)).reshape(y.shape[0], -1)   # torch.flatten (C,H,W)
    h = jnp.maximum(jnp.dot(flat, params["w_fc1"], precision=hi) + params["b_fc1"], 0.0)
    h = jnp.maximum(jnp.dot(h, params["w_fc2"], precision=hi) + params["b_fc2"], 0.0)
    return jnp.dot(h, params["w_fc3"], precision=hi) + params["b_fc3"]


if __name__ == "__main__":
    key = jax.random.PRNGKey(0)
    pkey, xkey = jax.random.split(key)
    params = init_params(pkey)

    # MNISTNet requires 28x28x1 inputs (fc1 expects 16*4*4 flattened features).
    x = jax.random.normal(xkey, (2, 1, 28, 28), jnp.float32)

    fwd = jax.jit(mnistnet_forward)
    out = jax.block_until_ready(fwd(params, x))
    ref = reference_forward(params, x)

    assert out.shape == (2, 10)
    # Tolerance covers MXU f32 multi-pass rounding vs. the HIGHEST-precision XLA
    # reference; any semantic/packing bug would produce errors orders of magnitude larger.
    np.testing.assert_allclose(np.asarray(out), np.asarray(ref), rtol=2e-2, atol=2e-2)
    print("KERNEL_OK")
</pallas_src>

<mosaic_0001>
module attributes {stable_mosaic.version = 11 : i64} {
  func.func @_mnist_fused_kernel(%arg0: i32, %arg1: memref<1x28x28xf32, #tpu.memory_space<vmem>>, %arg2: memref<5x28x192xf32, #tpu.memory_space<vmem>>, %arg3: memref<1x192xf32, #tpu.memory_space<vmem>>, %arg4: memref<12x24xf32, #tpu.memory_space<vmem>>, %arg5: memref<12x24xf32, #tpu.memory_space<vmem>>, %arg6: memref<192x96xf32, #tpu.memory_space<vmem>>, %arg7: memref<192x96xf32, #tpu.memory_space<vmem>>, %arg8: memref<5x96x128xf32, #tpu.memory_space<vmem>>, %arg9: memref<1x128xf32, #tpu.memory_space<vmem>>, %arg10: memref<4x8xf32, #tpu.memory_space<vmem>>, %arg11: memref<4x8xf32, #tpu.memory_space<vmem>>, %arg12: memref<128x64xf32, #tpu.memory_space<vmem>>, %arg13: memref<128x64xf32, #tpu.memory_space<vmem>>, %arg14: memref<4x64x128xf32, #tpu.memory_space<vmem>>, %arg15: memref<1x128xf32, #tpu.memory_space<vmem>>, %arg16: memref<128x64xf32, #tpu.memory_space<vmem>>, %arg17: memref<1x64xf32, #tpu.memory_space<vmem>>, %arg18: memref<64x10xf32, #tpu.memory_space<vmem>>, %arg19: memref<1x10xf32, #tpu.memory_space<vmem>>, %arg20: memref<1x1x10xf32, #tpu.memory_space<vmem>>) attributes {dimension_semantics = [#tpu.dimension_semantics<parallel>], iteration_bounds = array<i64: 2>, scalar_prefetch = 0 : i64, scratch_operands = 0 : i64, tpu.core_type = #tpu.core_type<tc>, window_params = [{transform_indices = @transform_0, window_bounds = array<i64: 1, 28, 28>}, {pipeline_mode = #tpu.pipeline_mode<synchronous>, transform_indices = @transform_1, window_bounds = array<i64: 5, 28, 192>}, {pipeline_mode = #tpu.pipeline_mode<synchronous>, transform_indices = @transform_2, window_bounds = array<i64: 1, 192>}, {pipeline_mode = #tpu.pipeline_mode<synchronous>, transform_indices = @transform_3, window_bounds = array<i64: 12, 24>}, {pipeline_mode = #tpu.pipeline_mode<synchronous>, transform_indices = @transform_4, window_bounds = array<i64: 12, 24>}, {pipeline_mode = #tpu.pipeline_mode<synchronous>, transform_indices = @transform_5, window_bounds = array<i64: 192, 96>}, {pipeline_mode = #tpu.pipeline_mode<synchronous>, transform_indices = @transform_6, window_bounds = array<i64: 192, 96>}, {pipeline_mode = #tpu.pipeline_mode<synchronous>, transform_indices = @transform_7, window_bounds = array<i64: 5, 96, 128>}, {pipeline_mode = #tpu.pipeline_mode<synchronous>, transform_indices = @transform_8, window_bounds = array<i64: 1, 128>}, {pipeline_mode = #tpu.pipeline_mode<synchronous>, transform_indices = @transform_9, window_bounds = array<i64: 4, 8>}, {pipeline_mode = #tpu.pipeline_mode<synchronous>, transform_indices = @transform_10, window_bounds = array<i64: 4, 8>}, {pipeline_mode = #tpu.pipeline_mode<synchronous>, transform_indices = @transform_11, window_bounds = array<i64: 128, 64>}, {pipeline_mode = #tpu.pipeline_mode<synchronous>, transform_indices = @transform_12, window_bounds = array<i64: 128, 64>}, {pipeline_mode = #tpu.pipeline_mode<synchronous>, transform_indices = @transform_13, window_bounds = array<i64: 4, 64, 128>}, {pipeline_mode = #tpu.pipeline_mode<synchronous>, transform_indices = @transform_14, window_bounds = array<i64: 1, 128>}, {pipeline_mode = #tpu.pipeline_mode<synchronous>, transform_indices = @transform_15, window_bounds = array<i64: 128, 64>}, {pipeline_mode = #tpu.pipeline_mode<synchronous>, transform_indices = @transform_16, window_bounds = array<i64: 1, 64>}, {pipeline_mode = #tpu.pipeline_mode<synchronous>, transform_indices = @transform_17, window_bounds = array<i64: 64, 10>}, {pipeline_mode = #tpu.pipeline_mode<synchronous>, transform_indices = @transform_18, window_bounds = array<i64: 1, 10>}, {transform_indices = @transform_19, window_bounds = array<i64: 1, 1, 10>}]} {
    %c0 = arith.constant 0 : index
    %c0_0 = arith.constant 0 : index
    %0 = vector.load %arg3[%c0, %c0_0] : memref<1x192xf32, #tpu.memory_space<vmem>>, vector<1x192xf32>
    %1 = vector.shape_cast %0 : vector<1x192xf32> to vector<1x192xf32>
    %2 = vector.broadcast %1 : vector<1x192xf32> to vector<24x192xf32>
    %c0_1 = arith.constant 0 : index
    %c0_2 = arith.constant 0 : index
    %c0_3 = arith.constant 0 : index
    %3 = vector.load %arg1[%c0_1, %c0_2, %c0_3] : memref<1x28x28xf32, #tpu.memory_space<vmem>>, vector<1x24x28xf32>
    %4 = vector.shape_cast %3 : vector<1x24x28xf32> to vector<24x28xf32>
    %c0_4 = arith.constant 0 : index
    %c0_5 = arith.constant 0 : index
    %c0_6 = arith.constant 0 : index
    %5 = vector.load %arg2[%c0_4, %c0_5, %c0_6] : memref<5x28x192xf32, #tpu.memory_space<vmem>>, vector<1x28x192xf32>
    %6 = vector.shape_cast %5 : vector<1x28x192xf32> to vector<28x192xf32>
    %cst = arith.constant dense<0.000000e+00> : vector<24x192xf32>
    %7 = tpu.matmul %4, %6, %cst {dimension_numbers = #tpu.dot_dimension_numbers<[1], [0], [0], [1], [0, 0, 1, 1], [], []>} : vector<24x28xf32>, vector<28x192xf32>, vector<24x192xf32> -> vector<24x192xf32>
    %8 = arith.addf %2, %7 : vector<24x192xf32>
    %c0_7 = arith.constant 0 : index
    %c1 = arith.constant 1 : index
    %c0_8 = arith.constant 0 : index
    %9 = vector.load %arg1[%c0_7, %c1, %c0_8] : memref<1x28x28xf32, #tpu.memory_space<vmem>>, vector<1x24x28xf32>
    %10 = vector.shape_cast %9 : vector<1x24x28xf32> to vector<24x28xf32>
    %c1_9 = arith.constant 1 : index
    %c0_10 = arith.constant 0 : index
    %c0_11 = arith.constant 0 : index
    %11 = vector.load %arg2[%c1_9, %c0_10, %c0_11] : memref<5x28x192xf32, #tpu.memory_space<vmem>>, vector<1x28x192xf32>
    %12 = vector.shape_cast %11 : vector<1x28x192xf32> to vector<28x192xf32>
    %cst_12 = arith.constant dense<0.000000e+00> : vector<24x192xf32>
    %13 = tpu.matmul %10, %12, %cst_12 {dimension_numbers = #tpu.dot_dimension_numbers<[1], [0], [0], [1], [0, 0, 1, 1], [], []>} : vector<24x28xf32>, vector<28x192xf32>, vector<24x192xf32> -> vector<24x192xf32>
    %14 = arith.addf %8, %13 : vector<24x192xf32>
    %c0_13 = arith.constant 0 : index
    %c2 = arith.constant 2 : index
    %c0_14 = arith.constant 0 : index
    %15 = vector.load %arg1[%c0_13, %c2, %c0_14] : memref<1x28x28xf32, #tpu.memory_space<vmem>>, vector<1x24x28xf32>
    %16 = vector.shape_cast %15 : vector<1x24x28xf32> to vector<24x28xf32>
    %c2_15 = arith.constant 2 : index
    %c0_16 = arith.constant 0 : index
    %c0_17 = arith.constant 0 : index
    %17 = vector.load %arg2[%c2_15, %c0_16, %c0_17] : memref<5x28x192xf32, #tpu.memory_space<vmem>>, vector<1x28x192xf32>
    %18 = vector.shape_cast %17 : vector<1x28x192xf32> to vector<28x192xf32>
    %cst_18 = arith.constant dense<0.000000e+00> : vector<24x192xf32>
    %19 = tpu.matmul %16, %18, %cst_18 {dimension_numbers = #tpu.dot_dimension_numbers<[1], [0], [0], [1], [0, 0, 1, 1], [], []>} : vector<24x28xf32>, vector<28x192xf32>, vector<24x192xf32> -> vector<24x192xf32>
    %20 = arith.addf %14, %19 : vector<24x192xf32>
    %c0_19 = arith.constant 0 : index
    %c3 = arith.constant 3 : index
    %c0_20 = arith.constant 0 : index
    %21 = vector.load %arg1[%c0_19, %c3, %c0_20] : memref<1x28x28xf32, #tpu.memory_space<vmem>>, vector<1x24x28xf32>
    %22 = vector.shape_cast %21 : vector<1x24x28xf32> to vector<24x28xf32>
    %c3_21 = arith.constant 3 : index
    %c0_22 = arith.constant 0 : index
    %c0_23 = arith.constant 0 : index
    %23 = vector.load %arg2[%c3_21, %c0_22, %c0_23] : memref<5x28x192xf32, #tpu.memory_space<vmem>>, vector<1x28x192xf32>
    %24 = vector.shape_cast %23 : vector<1x28x192xf32> to vector<28x192xf32>
    %cst_24 = arith.constant dense<0.000000e+00> : vector<24x192xf32>
    %25 = tpu.matmul %22, %24, %cst_24 {dimension_numbers = #tpu.dot_dimension_numbers<[1], [0], [0], [1], [0, 0, 1, 1], [], []>} : vector<24x28xf32>, vector<28x192xf32>, vector<24x192xf32> -> vector<24x192xf32>
    %26 = arith.addf %20, %25 : vector<24x192xf32>
    %c0_25 = arith.constant 0 : index
    %c4 = arith.constant 4 : index
    %c0_26 = arith.constant 0 : index
    %27 = vector.load %arg1[%c0_25, %c4, %c0_26] : memref<1x28x28xf32, #tpu.memory_space<vmem>>, vector<1x24x28xf32>
    %28 = vector.shape_cast %27 : vector<1x24x28xf32> to vector<24x28xf32>
    %c4_27 = arith.constant 4 : index
    %c0_28 = arith.constant 0 : index
    %c0_29 = arith.constant 0 : index
    %29 = vector.load %arg2[%c4_27, %c0_28, %c0_29] : memref<5x28x192xf32, #tpu.memory_space<vmem>>, vector<1x28x192xf32>
    %30 = vector.shape_cast %29 : vector<1x28x192xf32> to vector<28x192xf32>
    %cst_30 = arith.constant dense<0.000000e+00> : vector<24x192xf32>
    %31 = tpu.matmul %28, %30, %cst_30 {dimension_numbers = #tpu.dot_dimension_numbers<[1], [0], [0], [1], [0, 0, 1, 1], [], []>} : vector<24x28xf32>, vector<28x192xf32>, vector<24x192xf32> -> vector<24x192xf32>
    %32 = arith.addf %26, %31 : vector<24x192xf32>
    %cst_31 = arith.constant 0.000000e+00 : f32
    %33 = vector.broadcast %cst_31 : f32 to vector<24x192xf32>
    %34 = arith.maximumf %32, %33 : vector<24x192xf32>
    %c0_32 = arith.constant 0 : index
    %c0_33 = arith.constant 0 : index
    %35 = vector.load %arg4[%c0_32, %c0_33] : memref<12x24xf32, #tpu.memory_space<vmem>>, vector<12x24xf32>
    %cst_34 = arith.constant dense<0.000000e+00> : vector<12x192xf32>
    %36 = tpu.matmul %35, %34, %cst_34 {dimension_numbers = #tpu.dot_dimension_numbers<[1], [0], [0], [1], [0, 0, 1, 1], [], []>} : vector<12x24xf32>, vector<24x192xf32>, vector<12x192xf32> -> vector<12x192xf32>
    %c0_35 = arith.constant 0 : index
    %c0_36 = arith.constant 0 : index
    %37 = vector.load %arg5[%c0_35, %c0_36] : memref<12x24xf32, #tpu.memory_space<vmem>>, vector<12x24xf32>
    %cst_37 = arith.constant dense<0.000000e+00> : vector<12x192xf32>
    %38 = tpu.matmul %37, %34, %cst_37 {dimension_numbers = #tpu.dot_dimension_numbers<[1], [0], [0], [1], [0, 0, 1, 1], [], []>} : vector<12x24xf32>, vector<24x192xf32>, vector<12x192xf32> -> vector<12x192xf32>
    %39 = arith.maximumf %36, %38 : vector<12x192xf32>
    %c0_38 = arith.constant 0 : index
    %c0_39 = arith.constant 0 : index
    %40 = vector.load %arg6[%c0_38, %c0_39] : memref<192x96xf32, #tpu.memory_space<vmem>>, vector<192x96xf32>
    %cst_40 = arith.constant dense<0.000000e+00> : vector<12x96xf32>
    %41 = tpu.matmul %39, %40, %cst_40 {dimension_numbers = #tpu.dot_dimension_numbers<[1], [0], [0], [1], [0, 0, 1, 1], [], []>} : vector<12x192xf32>, vector<192x96xf32>, vector<12x96xf32> -> vector<12x96xf32>
    %c0_41 = arith.constant 0 : index
    %c0_42 = arith.constant 0 : index
    %42 = vector.load %arg7[%c0_41, %c0_42] : memref<192x96xf32, #tpu.memory_space<vmem>>, vector<192x96xf32>
    %cst_43 = arith.constant dense<0.000000e+00> : vector<12x96xf32>
    %43 = tpu.matmul %39, %42, %cst_43 {dimension_numbers = #tpu.dot_dimension_numbers<[1], [0], [0], [1], [0, 0, 1, 1], [], []>} : vector<12x192xf32>, vector<192x96xf32>, vector<12x96xf32> -> vector<12x96xf32>
    %44 = arith.maximumf %41, %43 : vector<12x96xf32>
    %c0_44 = arith.constant 0 : index
    %c0_45 = arith.constant 0 : index
    %45 = vector.load %arg9[%c0_44, %c0_45] : memref<1x128xf32, #tpu.memory_space<vmem>>, vector<1x128xf32>
    %46 = vector.shape_cast %45 : vector<1x128xf32> to vector<1x128xf32>
    %47 = vector.broadcast %46 : vector<1x128xf32> to vector<8x128xf32>
    %48 = vector.extract_strided_slice %44 {offsets = [0, 0], sizes = [8, 96], strides = [1, 1]} : vector<12x96xf32> to vector<8x96xf32>
    %c0_46 = arith.constant 0 : index
    %c0_47 = arith.constant 0 : index
    %c0_48 = arith.constant 0 : index
    %49 = vector.load %arg8[%c0_46, %c0_47, %c0_48] : memref<5x96x128xf32, #tpu.memory_space<vmem>>, vector<1x96x128xf32>
    %50 = vector.shape_cast %49 : vector<1x96x128xf32> to vector<96x128xf32>
    %cst_49 = arith.constant dense<0.000000e+00> : vector<8x128xf32>
    %51 = tpu.matmul %48, %50, %cst_49 {dimension_numbers = #tpu.dot_dimension_numbers<[1], [0], [0], [1], [0, 0, 1, 1], [], []>} : vector<8x96xf32>, vector<96x128xf32>, vector<8x128xf32> -> vector<8x128xf32>
    %52 = arith.addf %47, %51 : vector<8x128xf32>
    %53 = vector.extract_strided_slice %44 {offsets = [1, 0], sizes = [8, 96], strides = [1, 1]} : vector<12x96xf32> to vector<8x96xf32>
    %c1_50 = arith.constant 1 : index
    %c0_51 = arith.constant 0 : index
    %c0_52 = arith.constant 0 : index
    %54 = vector.load %arg8[%c1_50, %c0_51, %c0_52] : memref<5x96x128xf32, #tpu.memory_space<vmem>>, vector<1x96x128xf32>
    %55 = vector.shape_cast %54 : vector<1x96x128xf32> to vector<96x128xf32>
    %cst_53 = arith.constant dense<0.000000e+00> : vector<8x128xf32>
    %56 = tpu.matmul %53, %55, %cst_53 {dimension_numbers = #tpu.dot_dimension_numbers<[1], [0], [0], [1], [0, 0, 1, 1], [], []>} : vector<8x96xf32>, vector<96x128xf32>, vector<8x128xf32> -> vector<8x128xf32>
    %57 = arith.addf %52, %56 : vector<8x128xf32>
    %58 = vector.extract_strided_slice %44 {offsets = [2, 0], sizes = [8, 96], strides = [1, 1]} : vector<12x96xf32> to vector<8x96xf32>
    %c2_54 = arith.constant 2 : index
    %c0_55 = arith.constant 0 : index
    %c0_56 = arith.constant 0 : index
    %59 = vector.load %arg8[%c2_54, %c0_55, %c0_56] : memref<5x96x128xf32, #tpu.memory_space<vmem>>, vector<1x96x128xf32>
    %60 = vector.shape_cast %59 : vector<1x96x128xf32> to vector<96x128xf32>
    %cst_57 = arith.constant dense<0.000000e+00> : vector<8x128xf32>
    %61 = tpu.matmul %58, %60, %cst_57 {dimension_numbers = #tpu.dot_dimension_numbers<[1], [0], [0], [1], [0, 0, 1, 1], [], []>} : vector<8x96xf32>, vector<96x128xf32>, vector<8x128xf32> -> vector<8x128xf32>
    %62 = arith.addf %57, %61 : vector<8x128xf32>
    %63 = vector.extract_strided_slice %44 {offsets = [3, 0], sizes = [8, 96], strides = [1, 1]} : vector<12x96xf32> to vector<8x96xf32>
    %c3_58 = arith.constant 3 : index
    %c0_59 = arith.constant 0 : index
    %c0_60 = arith.constant 0 : index
    %64 = vector.load %arg8[%c3_58, %c0_59, %c0_60] : memref<5x96x128xf32, #tpu.memory_space<vmem>>, vector<1x96x128xf32>
    %65 = vector.shape_cast %64 : vector<1x96x128xf32> to vector<96x128xf32>
    %cst_61 = arith.constant dense<0.000000e+00> : vector<8x128xf32>
    %66 = tpu.matmul %63, %65, %cst_61 {dimension_numbers = #tpu.dot_dimension_numbers<[1], [0], [0], [1], [0, 0, 1, 1], [], []>} : vector<8x96xf32>, vector<96x128xf32>, vector<8x128xf32> -> vector<8x128xf32>
    %67 = arith.addf %62, %66 : vector<8x128xf32>
    %68 = vector.extract_strided_slice %44 {offsets = [4, 0], sizes = [8, 96], strides = [1, 1]} : vector<12x96xf32> to vector<8x96xf32>
    %c4_62 = arith.constant 4 : index
    %c0_63 = arith.constant 0 : index
    %c0_64 = arith.constant 0 : index
    %69 = vector.load %arg8[%c4_62, %c0_63, %c0_64] : memref<5x96x128xf32, #tpu.memory_space<vmem>>, vector<1x96x128xf32>
    %70 = vector.shape_cast %69 : vector<1x96x128xf32> to vector<96x128xf32>
    %cst_65 = arith.constant dense<0.000000e+00> : vector<8x128xf32>
    %71 = tpu.matmul %68, %70, %cst_65 {dimension_numbers = #tpu.dot_dimension_numbers<[1], [0], [0], [1], [0, 0, 1, 1], [], []>} : vector<8x96xf32>, vector<96x128xf32>, vector<8x128xf32> -> vector<8x128xf32>
    %72 = arith.addf %67, %71 : vector<8x128xf32>
    %cst_66 = arith.constant 0.000000e+00 : f32
    %73 = vector.broadcast %cst_66 : f32 to vector<8x128xf32>
    %74 = arith.maximumf %72, %73 : vector<8x128xf32>
    %c0_67 = arith.constant 0 : index
    %c0_68 = arith.constant 0 : index
    %75 = vector.load %arg10[%c0_67, %c0_68] : memref<4x8xf32, #tpu.memory_space<vmem>>, vector<4x8xf32>
    %cst_69 = arith.constant dense<0.000000e+00> : vector<4x128xf32>
    %76 = tpu.matmul %75, %74, %cst_69 {dimension_numbers = #tpu.dot_dimension_numbers<[1], [0], [0], [1], [0, 0, 1, 1], [], []>} : vector<4x8xf32>, vector<8x128xf32>, vector<4x128xf32> -> vector<4x128xf32>
    %c0_70 = arith.constant 0 : index
    %c0_71 = arith.constant 0 : index
    %77 = vector.load %arg11[%c0_70, %c0_71] : memref<4x8xf32, #tpu.memory_space<vmem>>, vector<4x8xf32>
    %cst_72 = arith.constant dense<0.000000e+00> : vector<4x128xf32>
    %78 = tpu.matmul %77, %74, %cst_72 {dimension_numbers = #tpu.dot_dimension_numbers<[1], [0], [0], [1], [0, 0, 1, 1], [], []>} : vector<4x8xf32>, vector<8x128xf32>, vector<4x128xf32> -> vector<4x128xf32>
    %79 = arith.maximumf %76, %78 : vector<4x128xf32>
    %c0_73 = arith.constant 0 : index
    %c0_74 = arith.constant 0 : index
    %80 = vector.load %arg12[%c0_73, %c0_74] : memref<128x64xf32, #tpu.memory_space<vmem>>, vector<128x64xf32>
    %cst_75 = arith.constant dense<0.000000e+00> : vector<4x64xf32>
    %81 = tpu.matmul %79, %80, %cst_75 {dimension_numbers = #tpu.dot_dimension_numbers<[1], [0], [0], [1], [0, 0, 1, 1], [], []>} : vector<4x128xf32>, vector<128x64xf32>, vector<4x64xf32> -> vector<4x64xf32>
    %c0_76 = arith.constant 0 : index
    %c0_77 = arith.constant 0 : index
    %82 = vector.load %arg13[%c0_76, %c0_77] : memref<128x64xf32, #tpu.memory_space<vmem>>, vector<128x64xf32>
    %cst_78 = arith.constant dense<0.000000e+00> : vector<4x64xf32>
    %83 = tpu.matmul %79, %82, %cst_78 {dimension_numbers = #tpu.dot_dimension_numbers<[1], [0], [0], [1], [0, 0, 1, 1], [], []>} : vector<4x128xf32>, vector<128x64xf32>, vector<4x64xf32> -> vector<4x64xf32>
    %84 = arith.maximumf %81, %83 : vector<4x64xf32>
    %c0_79 = arith.constant 0 : index
    %c0_80 = arith.constant 0 : index
    %85 = vector.load %arg15[%c0_79, %c0_80] : memref<1x128xf32, #tpu.memory_space<vmem>>, vector<1x128xf32>
    %86 = vector.extract_strided_slice %84 {offsets = [0, 0], sizes = [1, 64], strides = [1, 1]} : vector<4x64xf32> to vector<1x64xf32>
    %c0_81 = arith.constant 0 : index
    %c0_82 = arith.constant 0 : index
    %c0_83 = arith.constant 0 : index
    %87 = vector.load %arg14[%c0_81, %c0_82, %c0_83] : memref<4x64x128xf32, #tpu.memory_space<vmem>>, vector<1x64x128xf32>
    %88 = vector.shape_cast %87 : vector<1x64x128xf32> to vector<64x128xf32>
    %cst_84 = arith.constant dense<0.000000e+00> : vector<1x128xf32>
    %89 = tpu.matmul %86, %88, %cst_84 {dimension_numbers = #tpu.dot_dimension_numbers<[1], [0], [0], [1], [0, 0, 1, 1], [], []>} : vector<1x64xf32>, vector<64x128xf32>, vector<1x128xf32> -> vector<1x128xf32>
    %90 = arith.addf %85, %89 : vector<1x128xf32>
    %91 = vector.extract_strided_slice %84 {offsets = [1, 0], sizes = [1, 64], strides = [1, 1]} : vector<4x64xf32> to vector<1x64xf32>
    %c1_85 = arith.constant 1 : index
    %c0_86 = arith.constant 0 : index
    %c0_87 = arith.constant 0 : index
    %92 = vector.load %arg14[%c1_85, %c0_86, %c0_87] : memref<4x64x128xf32, #tpu.memory_space<vmem>>, vector<1x64x128xf32>
    %93 = vector.shape_cast %92 : vector<1x64x128xf32> to vector<64x128xf32>
    %cst_88 = arith.constant dense<0.000000e+00> : vector<1x128xf32>
    %94 = tpu.matmul %91, %93, %cst_88 {dimension_numbers = #tpu.dot_dimension_numbers<[1], [0], [0], [1], [0, 0, 1, 1], [], []>} : vector<1x64xf32>, vector<64x128xf32>, vector<1x128xf32> -> vector<1x128xf32>
    %95 = arith.addf %90, %94 : vector<1x128xf32>
    %96 = vector.extract_strided_slice %84 {offsets = [2, 0], sizes = [1, 64], strides = [1, 1]} : vector<4x64xf32> to vector<1x64xf32>
    %c2_89 = arith.constant 2 : index
    %c0_90 = arith.constant 0 : index
    %c0_91 = arith.constant 0 : index
    %97 = vector.load %arg14[%c2_89, %c0_90, %c0_91] : memref<4x64x128xf32, #tpu.memory_space<vmem>>, vector<1x64x128xf32>
    %98 = vector.shape_cast %97 : vector<1x64x128xf32> to vector<64x128xf32>
    %cst_92 = arith.constant dense<0.000000e+00> : vector<1x128xf32>
    %99 = tpu.matmul %96, %98, %cst_92 {dimension_numbers = #tpu.dot_dimension_numbers<[1], [0], [0], [1], [0, 0, 1, 1], [], []>} : vector<1x64xf32>, vector<64x128xf32>, vector<1x128xf32> -> vector<1x128xf32>
    %100 = arith.addf %95, %99 : vector<1x128xf32>
    %101 = vector.extract_strided_slice %84 {offsets = [3, 0], sizes = [1, 64], strides = [1, 1]} : vector<4x64xf32> to vector<1x64xf32>
    %c3_93 = arith.constant 3 : index
    %c0_94 = arith.constant 0 : index
    %c0_95 = arith.constant 0 : index
    %102 = vector.load %arg14[%c3_93, %c0_94, %c0_95] : memref<4x64x128xf32, #tpu.memory_space<vmem>>, vector<1x64x128xf32>
    %103 = vector.shape_cast %102 : vector<1x64x128xf32> to vector<64x128xf32>
    %cst_96 = arith.constant dense<0.000000e+00> : vector<1x128xf32>
    %104 = tpu.matmul %101, %103, %cst_96 {dimension_numbers = #tpu.dot_dimension_numbers<[1], [0], [0], [1], [0, 0, 1, 1], [], []>} : vector<1x64xf32>, vector<64x128xf32>, vector<1x128xf32> -> vector<1x128xf32>
    %105 = arith.addf %100, %104 : vector<1x128xf32>
    %cst_97 = arith.constant 0.000000e+00 : f32
    %106 = vector.broadcast %cst_97 : f32 to vector<1x128xf32>
    %107 = arith.maximumf %105, %106 : vector<1x128xf32>
    %c0_98 = arith.constant 0 : index
    %c0_99 = arith.constant 0 : index
    %108 = vector.load %arg16[%c0_98, %c0_99] : memref<128x64xf32, #tpu.memory_space<vmem>>, vector<128x64xf32>
    %cst_100 = arith.constant dense<0.000000e+00> : vector<1x64xf32>
    %109 = tpu.matmul %107, %108, %cst_100 {dimension_numbers = #tpu.dot_dimension_numbers<[1], [0], [0], [1], [0, 0, 1, 1], [], []>} : vector<1x128xf32>, vector<128x64xf32>, vector<1x64xf32> -> vector<1x64xf32>
    %c0_101 = arith.constant 0 : index
    %c0_102 = arith.constant 0 : index
    %110 = vector.load %arg17[%c0_101, %c0_102] : memref<1x64xf32, #tpu.memory_space<vmem>>, vector<1x64xf32>
    %111 = arith.addf %109, %110 : vector<1x64xf32>
    %cst_103 = arith.constant 0.000000e+00 : f32
    %112 = vector.broadcast %cst_103 : f32 to vector<1x64xf32>
    %113 = arith.maximumf %111, %112 : vector<1x64xf32>
    %c0_104 = arith.constant 0 : index
    %c0_105 = arith.constant 0 : index
    %114 = vector.load %arg18[%c0_104, %c0_105] : memref<64x10xf32, #tpu.memory_space<vmem>>, vector<64x10xf32>
    %cst_106 = arith.constant dense<0.000000e+00> : vector<1x10xf32>
    %115 = tpu.matmul %113, %114, %cst_106 {dimension_numbers = #tpu.dot_dimension_numbers<[1], [0], [0], [1], [0, 0, 1, 1], [], []>} : vector<1x64xf32>, vector<64x10xf32>, vector<1x10xf32> -> vector<1x10xf32>
    %c0_107 = arith.constant 0 : index
    %c0_108 = arith.constant 0 : index
    %116 = vector.load %arg19[%c0_107, %c0_108] : memref<1x10xf32, #tpu.memory_space<vmem>>, vector<1x10xf32>
    %117 = arith.addf %115, %116 : vector<1x10xf32>
    %c0_109 = arith.constant 0 : index
    %c0_110 = arith.constant 0 : index
    %c0_111 = arith.constant 0 : index
    %118 = vector.load %arg20[%c0_109, %c0_110, %c0_111] : memref<1x1x10xf32, #tpu.memory_space<vmem>>, vector<1x1x10xf32>
    %119 = vector.shape_cast %118 : vector<1x1x10xf32> to vector<1x10xf32>
    %120 = vector.shape_cast %117 : vector<1x10xf32> to vector<1x1x10xf32>
    tpu.vector_store %arg20[%c0_109, %c0_110, %c0_111], %120 {strides = array<i32>} : memref<1x1x10xf32, #tpu.memory_space<vmem>>, vector<1x1x10xf32>,
    return
  }
  func.func @transform_0(%arg0: i32) -> (i32, i32, i32) {
    %c0_i32 = arith.constant 0 : i32
    %c0_i32_0 = arith.constant 0 : i32
    %c0_i32_1 = arith.constant 0 : i32
    return %arg0, %c0_i32, %c0_i32_0 : i32, i32, i32
  }
  func.func @transform_1(%arg0: i32) -> (i32, i32, i32) {
    %c0_i32 = arith.constant 0 : i32
    %c0_i32_0 = arith.constant 0 : i32
    %c0_i32_1 = arith.constant 0 : i32
    %c0_i32_2 = arith.constant 0 : i32
    return %c0_i32, %c0_i32_0, %c0_i32_1 : i32, i32, i32
  }
  func.func @transform_2(%arg0: i32) -> (i32, i32) {
    %c0_i32 = arith.constant 0 : i32
    %c0_i32_0 = arith.constant 0 : i32
    %c0_i32_1 = arith.constant 0 : i32
    return %c0_i32, %c0_i32_0 : i32, i32
  }
  func.func @transform_3(%arg0: i32) -> (i32, i32) {
    %c0_i32 = arith.constant 0 : i32
    %c0_i32_0 = arith.constant 0 : i32
    %c0_i32_1 = arith.constant 0 : i32
    return %c0_i32, %c0_i32_0 : i32, i32
  }
  func.func @transform_4(%arg0: i32) -> (i32, i32) {
    %c0_i32 = arith.constant 0 : i32
    %c0_i32_0 = arith.constant 0 : i32
    %c0_i32_1 = arith.constant 0 : i32
    return %c0_i32, %c0_i32_0 : i32, i32
  }
  func.func @transform_5(%arg0: i32) -> (i32, i32) {
    %c0_i32 = arith.constant 0 : i32
    %c0_i32_0 = arith.constant 0 : i32
    %c0_i32_1 = arith.constant 0 : i32
    return %c0_i32, %c0_i32_0 : i32, i32
  }
  func.func @transform_6(%arg0: i32) -> (i32, i32) {
    %c0_i32 = arith.constant 0 : i32
    %c0_i32_0 = arith.constant 0 : i32
    %c0_i32_1 = arith.constant 0 : i32
    return %c0_i32, %c0_i32_0 : i32, i32
  }
  func.func @transform_7(%arg0: i32) -> (i32, i32, i32) {
    %c0_i32 = arith.constant 0 : i32
    %c0_i32_0 = arith.constant 0 : i32
    %c0_i32_1 = arith.constant 0 : i32
    %c0_i32_2 = arith.constant 0 : i32
    return %c0_i32, %c0_i32_0, %c0_i32_1 : i32, i32, i32
  }
  func.func @transform_8(%arg0: i32) -> (i32, i32) {
    %c0_i32 = arith.constant 0 : i32
    %c0_i32_0 = arith.constant 0 : i32
    %c0_i32_1 = arith.constant 0 : i32
    return %c0_i32, %c0_i32_0 : i32, i32
  }
  func.func @transform_9(%arg0: i32) -> (i32, i32) {
    %c0_i32 = arith.constant 0 : i32
    %c0_i32_0 = arith.constant 0 : i32
    %c0_i32_1 = arith.constant 0 : i32
    return %c0_i32, %c0_i32_0 : i32, i32
  }
  func.func @transform_10(%arg0: i32) -> (i32, i32) {
    %c0_i32 = arith.constant 0 : i32
    %c0_i32_0 = arith.constant 0 : i32
    %c0_i32_1 = arith.constant 0 : i32
    return %c0_i32, %c0_i32_0 : i32, i32
  }
  func.func @transform_11(%arg0: i32) -> (i32, i32) {
    %c0_i32 = arith.constant 0 : i32
    %c0_i32_0 = arith.constant 0 : i32
    %c0_i32_1 = arith.constant 0 : i32
    return %c0_i32, %c0_i32_0 : i32, i32
  }
  func.func @transform_12(%arg0: i32) -> (i32, i32) {
    %c0_i32 = arith.constant 0 : i32
    %c0_i32_0 = arith.constant 0 : i32
    %c0_i32_1 = arith.constant 0 : i32
    return %c0_i32, %c0_i32_0 : i32, i32
  }
  func.func @transform_13(%arg0: i32) -> (i32, i32, i32) {
    %c0_i32 = arith.constant 0 : i32
    %c0_i32_0 = arith.constant 0 : i32
    %c0_i32_1 = arith.constant 0 : i32
    %c0_i32_2 = arith.constant 0 : i32
    return %c0_i32, %c0_i32_0, %c0_i32_1 : i32, i32, i32
  }
  func.func @transform_14(%arg0: i32) -> (i32, i32) {
    %c0_i32 = arith.constant 0 : i32
    %c0_i32_0 = arith.constant 0 : i32
    %c0_i32_1 = arith.constant 0 : i32
    return %c0_i32, %c0_i32_0 : i32, i32
  }
  func.func @transform_15(%arg0: i32) -> (i32, i32) {
    %c0_i32 = arith.constant 0 : i32
    %c0_i32_0 = arith.constant 0 : i32
    %c0_i32_1 = arith.constant 0 : i32
    return %c0_i32, %c0_i32_0 : i32, i32
  }
  func.func @transform_16(%arg0: i32) -> (i32, i32) {
    %c0_i32 = arith.constant 0 : i32
    %c0_i32_0 = arith.constant 0 : i32
    %c0_i32_1 = arith.constant 0 : i32
    return %c0_i32, %c0_i32_0 : i32, i32
  }
  func.func @transform_17(%arg0: i32) -> (i32, i32) {
    %c0_i32 = arith.constant 0 : i32
    %c0_i32_0 = arith.constant 0 : i32
    %c0_i32_1 = arith.constant 0 : i32
    return %c0_i32, %c0_i32_0 : i32, i32
  }
  func.func @transform_18(%arg0: i32) -> (i32, i32) {
    %c0_i32 = arith.constant 0 : i32
    %c0_i32_0 = arith.constant 0 : i32
    %c0_i32_1 = arith.constant 0 : i32
    return %c0_i32, %c0_i32_0 : i32, i32
  }
  func.func @transform_19(%arg0: i32) -> (i32, i32, i32) {
    %c0_i32 = arith.constant 0 : i32
    %c0_i32_0 = arith.constant 0 : i32
    %c0_i32_1 = arith.constant 0 : i32
    return %arg0, %c0_i32, %c0_i32_0 : i32, i32, i32
  }
}

</mosaic_0001>

<llo_original>
// kernel: tile.13
$region0: #{tile.13}
  #allocation0 [shape = 's32[1]{0}', space=sflag, size = 0x4, scoped, tag = 'scoped memory for tile.13']
  %s0 = inlined_call_operand.vmem [shape: f32[8], index: 0, kind: input, shape index: {}]
  %s1 = inlined_call_operand.vmem [shape: f32[24,8], index: 1, kind: output, shape index: {}]
  // Predicated region
  $region2: #{tile.13} parent=0 // pred_check
    _
  $region3: #{tile.13} parent=0 // pred_check_branch
    %3 = sbr.rel (0) target = $region5
  $region4: #{tile.13} parent=0 // pred_region
    _
  $region5: #{tile.13} parent=0 // pred_fallthru
    _
  %v4 = vld [vmem:[%s0] ss:$0 sm:$0xff]
  %5 = vst [vmem:[%s1] sm:$0xff] %v4
  %s6 = scalar_lea.vmem %s1, 8
  %7 = vst [vmem:[%s6] sm:$0xff] %v4
  %s8 = scalar_lea.vmem %s1, 16
  %9 = vst [vmem:[%s8] sm:$0xff] %v4

// kernel: tile.14
$region0: #{tile.14}
  %s0 = inlined_call_operand.vmem [shape: f32[24,8], index: 0, kind: input, shape index: {}]
  %s1 = inlined_call_operand.vmem [shape: f32[1,192], index: 1, kind: output, shape index: {}]
  $region1: #{tile.14} parent=0
    #allocation0 [shape = 'u8[8192]{0}', space=vmem, size = 0x2000, scoped, tag = 'scoped mem for output reshape']
    %s2 = smov 3
    %v3 = vld [vmem:[%s0] ss:$16 sm:%s2]
    %vm4 = vcmask 64512
    %5 = vst.msk [vmem:[#allocation0] ss:$8 sm:$0x3] %vm4, %v3
    %s6 = scalar_lea.vmem %s0, 15
    %v7 = vld [vmem:[%s6] sm:$0x1]
    %8 = vrot.lane.b32.xlu0 %v7, 120
    %v9 = vpop.permute.xlu0 %8
    %vm10 = vcmask 1048512
    %11 = vst.msk [vmem:[#allocation0] sm:$0x1] %vm10, %v9
    %s12 = scalar_lea.vmem %s0, 14
    %v13 = vld [vmem:[%s12] sm:$0x1]
    %14 = vrot.lane.b32.xlu0 %v13, 112
    %v15 = vpop.permute.xlu0 %14
    %vm16 = vcmask 982912
    %17 = vst.msk [vmem:[#allocation0] sm:$0x1] %vm16, %v15
    %s18 = scalar_lea.vmem %s0, 13
    %v19 = vld [vmem:[%s18] sm:$0x1]
    %20 = vrot.lane.b32.xlu0 %v19, 104
    %v21 = vpop.permute.xlu0 %20
    %vm22 = vcmask 917312
    %23 = vst.msk [vmem:[#allocation0] sm:$0x1] %vm22, %v21
    %s24 = scalar_lea.vmem %s0, 12
    %v25 = vld [vmem:[%s24] sm:$0x1]
    %26 = vrot.lane.b32.xlu0 %v25, 96
    %v27 = vpop.permute.xlu0 %26
    %vm28 = vcmask 851712
    %29 = vst.msk [vmem:[#allocation0] sm:$0x1] %vm28, %v27
    %s30 = scalar_lea.vmem %s0, 11
    %v31 = vld [vmem:[%s30] sm:$0x1]
    %32 = vrot.lane.b32.xlu0 %v31, 88
    %v33 = vpop.permute.xlu0 %32
    %vm34 = vcmask 786112
    %35 = vst.msk [vmem:[#allocation0] sm:$0x1] %vm34, %v33
    %s36 = scalar_lea.vmem %s0, 10
    %v37 = vld [vmem:[%s36] sm:$0x1]
    %38 = vrot.lane.b32.xlu0 %v37, 80
    %v39 = vpop.permute.xlu0 %38
    %vm40 = vcmask 720512
    %41 = vst.msk [vmem:[#allocation0] sm:$0x1] %vm40, %v39
    %s42 = scalar_lea.vmem %s0, 9
    %v43 = vld [vmem:[%s42] sm:$0x1]
    %44 = vrot.lane.b32.xlu0 %v43, 72
    %v45 = vpop.permute.xlu0 %44
    %vm46 = vcmask 654912
    %47 = vst.msk [vmem:[#allocation0] sm:$0x1] %vm46, %v45
    %s48 = scalar_lea.vmem %s0, 8
    %v49 = vld [vmem:[%s48] sm:$0x1]
    %50 = vrot.lane.b32.xlu0 %v49, 64
    %v51 = vpop.permute.xlu0 %50
    %vm52 = vcmask 589312
    %53 = vst.msk [vmem:[#allocation0] sm:$0x1] %vm52, %v51
    %s54 = scalar_lea.vmem %s0, 7
    %s55 = smov 3
    %v56 = vld [vmem:[%s54] ss:$16 sm:%s55]
    %57 = vrot.lane.b32.xlu0 %v56, 56
    %v58 = vpop.permute.xlu0 %57
    %vm59 = vcmask 523712
    %60 = vst.msk [vmem:[#allocation0] ss:$8 sm:$0x3] %vm59, %v58
    %s61 = scalar_lea.vmem %s0, 6
    %s62 = smov 3
    %v63 = vld [vmem:[%s61] ss:$16 sm:%s62]
    %64 = vrot.lane.b32.xlu0 %v63, 48
    %v65 = vpop.permute.xlu0 %64
    %vm66 = vcmask 458112
    %67 = vst.msk [vmem:[#allocation0] ss:$8 sm:$0x3] %vm66, %v65
    %s68 = scalar_lea.vmem %s0, 5
    %s69 = smov 3
    %v70 = vld [vmem:[%s68] ss:$16 sm:%s69]
    %71 = vrot.lane.b32.xlu0 %v70, 40
    %v72 = vpop.permute.xlu0 %71
    %vm73 = vcmask 392512
    %74 = vst.msk [vmem:[#allocation0] ss:$8 sm:$0x3] %vm73, %v72
    %s75 = scalar_lea.vmem %s0, 4
    %s76 = smov 3
    %v77 = vld [vmem:[%s75] ss:$16 sm:%s76]
    %78 = vrot.lane.b32.xlu0 %v77, 32
    %v79 = vpop.permute.xlu0 %78
    %vm80 = vcmask 326912
    %81 = vst.msk [vmem:[#allocation0] ss:$8 sm:$0x3] %vm80, %v79
    %s82 = scalar_lea.vmem %s0, 3
    %s83 = smov 3
    %v84 = vld [vmem:[%s82] ss:$16 sm:%s83]
    %85 = vrot.lane.b32.xlu0 %v84, 24
    %v86 = vpop.permute.xlu0 %85
    %vm87 = vcmask 261312
    %88 = vst.msk [vmem:[#allocation0] ss:$8 sm:$0x3] %vm87, %v86
    %s89 = scalar_lea.vmem %s0, 2
    %s90 = smov 3
    %v91 = vld [vmem:[%s89] ss:$16 sm:%s90]
    %92 = vrot.lane.b32.xlu0 %v91, 16
    %v93 = vpop.permute.xlu0 %92
    %vm94 = vcmask 195712
    %95 = vst.msk [vmem:[#allocation0] ss:$8 sm:$0x3] %vm94, %v93
    %s96 = scalar_lea.vmem %s0, 1
    %s97 = smov 3
    %v98 = vld [vmem:[%s96] ss:$16 sm:%s97]
    %99 = vrot.lane.b32.xlu0 %v98, 8
    %v100 = vpop.permute.xlu0 %99
    %vm101 = vcmask 130112
    %102 = vst.msk [vmem:[#allocation0] ss:$8 sm:$0x3] %vm101, %v100
    %s104 = sshllo.u32 0, 1
    %v106 = vld [vmem:[#allocation0] sm:%s104]
    %s107 = sshllo.u32 0, 1
    %108 = vst [vmem:[%s1] sm:%s107] %v106
    %s109 = scalar_lea.vmem [#allocation0], 8
    %v110 = vld [vmem:[%s109] sm:%s104]
    %s111 = sshllo.u32 0, 1
    %s112 = scalar_lea.vmem %s1, 1
    %113 = vst [vmem:[%s112] sm:%s111] %v110

// kernel: tile.18
$region0: #{tile.18}
  #allocation0 [shape = 's32[1]{0}', space=sflag, size = 0x4, scoped, tag = 'scoped memory for tile.18']
  %s0 = inlined_call_operand.vmem [shape: f32[16], index: 0, kind: input, shape index: {}]
  %s1 = inlined_call_operand.vmem [shape: f32[8,16], index: 1, kind: output, shape index: {}]
  // Predicated region
  $region2: #{tile.18} parent=0 // pred_check
    _
  $region3: #{tile.18} parent=0 // pred_check_branch
    %3 = sbr.rel (0) target = $region5
  $region4: #{tile.18} parent=0 // pred_region
    _
  $region5: #{tile.18} parent=0 // pred_fallthru
    _
  %v4 = vld [vmem:[%s0] ss:$0 sm:$0xff]
  %5 = vst [vmem:[%s1] sm:$0xff] %v4

// kernel: tile.19
$region0: #{tile.19}
  %s0 = inlined_call_operand.vmem [shape: f32[8,16], index: 0, kind: input, shape index: {}]
  %s1 = inlined_call_operand.vmem [shape: f32[1,128], index: 1, kind: output, shape index: {}]
  $region1: #{tile.19} parent=0
    #allocation0 [shape = 'u8[4096]{0}', space=vmem, size = 0x1000, scoped, tag = 'scoped mem for output reshape']
    %v2 = vld [vmem:[%s0] sm:$0x1]
    %vm3 = vcmask 130048
    %4 = vst.msk [vmem:[#allocation0] sm:$0x1] %vm3, %v2
    %s5 = scalar_lea.vmem %s0, 7
    %v6 = vld [vmem:[%s5] sm:$0x1]
    %7 = vrot.lane.b32.xlu0 %v6, 112
    %v8 = vpop.permute.xlu0 %7
    %vm9 = vcmask 1048448
    %10 = vst.msk [vmem:[#allocation0] sm:$0x1] %vm9, %v8
    %s11 = scalar_lea.vmem %s0, 6
    %v12 = vld [vmem:[%s11] sm:$0x1]
    %13 = vrot.lane.b32.xlu0 %v12, 96
    %v14 = vpop.permute.xlu0 %13
    %vm15 = vcmask 917248
    %16 = vst.msk [vmem:[#allocation0] sm:$0x1] %vm15, %v14
    %s17 = scalar_lea.vmem %s0, 5
    %v18 = vld [vmem:[%s17] sm:$0x1]
    %19 = vrot.lane.b32.xlu0 %v18, 80
    %v20 = vpop.permute.xlu0 %19
    %vm21 = vcmask 786048
    %22 = vst.msk [vmem:[#allocation0] sm:$0x1] %vm21, %v20
    %s23 = scalar_lea.vmem %s0, 4
    %v24 = vld [vmem:[%s23] sm:$0x1]
    %25 = vrot.lane.b32.xlu0 %v24, 64
    %v26 = vpop.permute.xlu0 %25
    %vm27 = vcmask 654848
    %28 = vst.msk [vmem:[#allocation0] sm:$0x1] %vm27, %v26
    %s29 = scalar_lea.vmem %s0, 3
    %v30 = vld [vmem:[%s29] sm:$0x1]
    %31 = vrot.lane.b32.xlu0 %v30, 48
    %v32 = vpop.permute.xlu0 %31
    %vm33 = vcmask 523648
    %34 = vst.msk [vmem:[#allocation0] sm:$0x1] %vm33, %v32
    %s35 = scalar_lea.vmem %s0, 2
    %v36 = vld [vmem:[%s35] sm:$0x1]
    %37 = vrot.lane.b32.xlu0 %v36, 32
    %v38 = vpop.permute.xlu0 %37
    %vm39 = vcmask 392448
    %40 = vst.msk [vmem:[#allocation0] sm:$0x1] %vm39, %v38
    %s41 = scalar_lea.vmem %s0, 1
    %v42 = vld [vmem:[%s41] sm:$0x1]
    %43 = vrot.lane.b32.xlu0 %v42, 16
    %v44 = vpop.permute.xlu0 %43
    %vm45 = vcmask 261248
    %46 = vst.msk [vmem:[#allocation0] sm:$0x1] %vm45, %v44
    %s48 = sshllo.u32 0, 1
    %v50 = vld [vmem:[#allocation0] sm:%s48]
    %s51 = sshllo.u32 0, 1
    %52 = vst [vmem:[%s1] sm:%s51] %v50

// kernel: mnistnet_forward.1
$region0: #{mnistnet_forward.1}
  #allocation0 [shape = 'u32[]', space=smem, size = 0x4, offset = 0x4, fixed_abs, tag = 'smem constant byte address 0x4 - core index']
  #allocation1 [shape = 'u32[144,128]{1,0:T(1,128)}', space=vmem, size = 0x12000, scoped, tag = 'internal scratch']
  %s0 = inlined_call_operand.vmem [shape: f32[2,28,28], index: 0, kind: input, shape index: {}]
  %s1 = inlined_call_operand.vmem [shape: f32[5,28,192], index: 1, kind: input, shape index: {}]
  %s2 = inlined_call_operand.vmem [shape: f32[1,192], index: 2, kind: input, shape index: {}]
  %s3 = inlined_call_operand.vmem [shape: f32[12,24], index: 3, kind: input, shape index: {}]
  %s4 = inlined_call_operand.vmem [shape: f32[12,24], index: 4, kind: input, shape index: {}]
  %s5 = inlined_call_operand.vmem [shape: f32[192,96], index: 5, kind: input, shape index: {}]
  %s6 = inlined_call_operand.vmem [shape: f32[192,96], index: 6, kind: input, shape index: {}]
  %s7 = inlined_call_operand.vmem [shape: f32[5,96,128], index: 7, kind: input, shape index: {}]
  %s8 = inlined_call_operand.vmem [shape: f32[1,128], index: 8, kind: input, shape index: {}]
  %s9 = inlined_call_operand.vmem [shape: f32[4,8], index: 9, kind: input, shape index: {}]
  %s10 = inlined_call_operand.vmem [shape: f32[4,8], index: 10, kind: input, shape index: {}]
  %s11 = inlined_call_operand.vmem [shape: f32[128,64], index: 11, kind: input, shape index: {}]
  %s12 = inlined_call_operand.vmem [shape: f32[128,64], index: 12, kind: input, shape index: {}]
  %s13 = inlined_call_operand.vmem [shape: f32[4,64,128], index: 13, kind: input, shape index: {}]
  %s14 = inlined_call_operand.vmem [shape: f32[1,128], index: 14, kind: input, shape index: {}]
  %s15 = inlined_call_operand.vmem [shape: f32[128,64], index: 15, kind: input, shape index: {}]
  %s16 = inlined_call_operand.vmem [shape: f32[1,64], index: 16, kind: input, shape index: {}]
  %s17 = inlined_call_operand.vmem [shape: f32[64,10], index: 17, kind: input, shape index: {}]
  %s18 = inlined_call_operand.vmem [shape: f32[1,10], index: 18, kind: input, shape index: {}]
  %s19 = inlined_call_operand.hbm [shape: f32[2,1,10], index: 19, kind: output, shape index: {}]
  %s20 = sld [smem:[#allocation0]]
  $region109: #{mnistnet_forward.1} parent=0
    _
  %s22 = ssub.s32 1, %s20
  %s23 = scalar_select 0, %s22, %s20
  $region1: #{mnistnet_forward.1} parent=0
    #allocation2 [shape = 'u8[1024]{0}', space=vmem, size = 0x400, scoped, tag = 'output window, operand 0']
    #allocation3 [shape = 's32[2]{0}', space=sflag, size = 0x8, scoped, tag = 'scoped memory for mnistnet_forward.1']
    %24 = vsyncpa [#allocation3], 0
    %s25 = scalar_lea.sflag [#allocation3], 1
    %26 = vsyncpa %s25, 0
    loop: start=0, step=1, limit=4
    $region2: #{mnistnet_forward.1} parent=1 // loop_pre_header
      _
    $region3: #{mnistnet_forward.1} parent=1 // loop_header
      %s28 = sphi 0, %s32
      %p29 = scmp.ge.s32.totalorder %s28, 4
      %s38 = sphi 0, %s40
      %s41 = sphi 0, %s38
      %s42 = sphi 0, %s41
      %s58 = sphi 0, %s42
      %s62 = sphi 0, %s62
      %s64 = sphi 0, %s62
      %s65 = sphi 0, %s64
      %s79 = sphi 0, %s65
      %s83 = sphi 0, %s83
      %s85 = sphi 0, %s83
      %s86 = sphi 0, %s85
      %s100 = sphi 0, %s86
      %s104 = sphi 0, %s104
      %s106 = sphi 0, %s104
      %s107 = sphi 0, %s106
      %s121 = sphi 0, %s107
      %s125 = sphi 0, %s125
      %s127 = sphi 0, %s125
      %s128 = sphi 0, %s127
      %s142 = sphi 0, %s128
      %s146 = sphi 0, %s146
      %s148 = sphi 0, %s146
      %s149 = sphi 0, %s148
      %s163 = sphi 0, %s149
      %s167 = sphi 0, %s167
      %s169 = sphi 0, %s167
      %s170 = sphi 0, %s169
      %s184 = sphi 0, %s170
      %s188 = sphi 0, %s188
      %s190 = sphi 0, %s188
      %s191 = sphi 0, %s190
      %s205 = sphi 0, %s191
      %s209 = sphi 0, %s209
      %s211 = sphi 0, %s209
      %s212 = sphi 0, %s211
      %s226 = sphi 0, %s212
      %s230 = sphi 0, %s230
      %s232 = sphi 0, %s230
      %s233 = sphi 0, %s232
      %s247 = sphi 0, %s233
      %s251 = sphi 0, %s251
      %s253 = sphi 0, %s251
      %s254 = sphi 0, %s253
      %s268 = sphi 0, %s254
      %s272 = sphi 0, %s272
      %s274 = sphi 0, %s272
      %s275 = sphi 0, %s274
      %s289 = sphi 0, %s275
      %s293 = sphi 0, %s293
      %s295 = sphi 0, %s293
      %s296 = sphi 0, %s295
      %s310 = sphi 0, %s296
      %s314 = sphi 0, %s314
      %s316 = sphi 0, %s314
      %s317 = sphi 0, %s316
      %s331 = sphi 0, %s317
      %s335 = sphi 0, %s335
      %s337 = sphi 0, %s335
      %s338 = sphi 0, %s337
      %s352 = sphi 0, %s338
      %s356 = sphi 0, %s356
      %s358 = sphi 0, %s356
      %s359 = sphi 0, %s358
      %s373 = sphi 0, %s359
      %s377 = sphi 0, %s377
      %s379 = sphi 0, %s377
      %s380 = sphi 0, %s379
      %s394 = sphi 0, %s380
      %s398 = sphi 0, %s398
      %s400 = sphi 0, %s398
      %s401 = sphi 0, %s400
      %s415 = sphi 0, %s401
      %s419 = sphi 0, %s419
      %s421 = sphi 0, %s419
      %s422 = sphi 0, %s421
      %s436 = sphi 0, %s422
      %s442 = sphi 0, %s444
      %s445 = sphi 0, %s442
      %s446 = sphi 0, %s445
      %s462 = sphi 0, %s446
    $region4: #{mnistnet_forward.1} parent=1 // loop_header_branch
      %31 = sbr.rel (%p29) target = $region8
    $region5: #{mnistnet_forward.1} parent=1 // loop_body
      %s33 = ssub.s32 %s28, 1
      %s34 = ssub.s32 %s28, 2
      %s35 = sadd.s32 %s28, 1
      %s36 = ssub.s32 %s28, %s35
      %p37 = scmp.eq.s32.totalorder %s36, 0
      %s39 = sadd.s32 %s38, 1
      %s40 = scalar_select %p37, %s38, %s39
      %p43 = pneg %p37
      %p44 = scmp.eq.s32.totalorder %s28, 1
      %p45 = por %p43, %p44
      %p46 = scmp.ne.s32.totalorder %s38, %s41
      %p47 = scmp.eq.s32.totalorder %s28, 0
      %p48 = por %p46, %p47
      %p49 = scmp.ne.s32.totalorder %s38, %s41
      %p50 = scmp.eq.s32.totalorder %s33, 1
      %p51 = por %p49, %p50
      %p52 = scmp.ne.s32.totalorder %s41, %s42
      %p53 = scmp.eq.s32.totalorder %s33, 0
      %p54 = por %p52, %p53
      %p55 = scmp.ne.s32.totalorder %s41, %s42
      %p56 = scmp.eq.s32.totalorder %s34, 1
      %p57 = por %p55, %p56
      %p59 = scmp.ne.s32.totalorder %s42, %s58
      %p60 = scmp.eq.s32.totalorder %s34, 0
      %p61 = por %p59, %p60
      %s63 = sadd.s32 %s62, 1
      %p66 = scmp.eq.s32.totalorder %s28, 1
      %p67 = scmp.ne.s32.totalorder %s62, %s64
      %p68 = scmp.eq.s32.totalorder %s28, 0
      %p69 = por %p67, %p68
      %p70 = scmp.ne.s32.totalorder %s62, %s64
      %p71 = scmp.eq.s32.totalorder %s33, 1
      %p72 = por %p70, %p71
      %p73 = scmp.ne.s32.totalorder %s64, %s65
      %p74 = scmp.eq.s32.totalorder %s33, 0
      %p75 = por %p73, %p74
      %p76 = scmp.ne.s32.totalorder %s64, %s65
      %p77 = scmp.eq.s32.totalorder %s34, 1
      %p78 = por %p76, %p77
      %p80 = scmp.ne.s32.totalorder %s65, %s79
      %p81 = scmp.eq.s32.totalorder %s34, 0
      %p82 = por %p80, %p81
      %s84 = sadd.s32 %s83, 1
      %p87 = scmp.eq.s32.totalorder %s28, 1
      %p88 = scmp.ne.s32.totalorder %s83, %s85
      %p89 = scmp.eq.s32.totalorder %s28, 0
      %p90 = por %p88, %p89
      %p91 = scmp.ne.s32.totalorder %s83, %s85
      %p92 = scmp.eq.s32.totalorder %s33, 1
      %p93 = por %p91, %p92
      %p94 = scmp.ne.s32.totalorder %s85, %s86
      %p95 = scmp.eq.s32.totalorder %s33, 0
      %p96 = por %p94, %p95
      %p97 = scmp.ne.s32.totalorder %s85, %s86
      %p98 = scmp.eq.s32.totalorder %s34, 1
      %p99 = por %p97, %p98
      %p101 = scmp.ne.s32.totalorder %s86, %s100
      %p102 = scmp.eq.s32.totalorder %s34, 0
      %p103 = por %p101, %p102
      %s105 = sadd.s32 %s104, 1
      %p108 = scmp.eq.s32.totalorder %s28, 1
      %p109 = scmp.ne.s32.totalorder %s104, %s106
      %p110 = scmp.eq.s32.totalorder %s28, 0
      %p111 = por %p109, %p110
      %p112 = scmp.ne.s32.totalorder %s104, %s106
      %p113 = scmp.eq.s32.totalorder %s33, 1
      %p114 = por %p112, %p113
      %p115 = scmp.ne.s32.totalorder %s106, %s107
      %p116 = scmp.eq.s32.totalorder %s33, 0
      %p117 = por %p115, %p116
      %p118 = scmp.ne.s32.totalorder %s106, %s107
      %p119 = scmp.eq.s32.totalorder %s34, 1
      %p120 = por %p118, %p119
      %p122 = scmp.ne.s32.totalorder %s107, %s121
      %p123 = scmp.eq.s32.totalorder %s34, 0
      %p124 = por %p122, %p123
      %s126 = sadd.s32 %s125, 1
      %p129 = scmp.eq.s32.totalorder %s28, 1
      %p130 = scmp.ne.s32.totalorder %s125, %s127
      %p131 = scmp.eq.s32.totalorder %s28, 0
      %p132 = por %p130, %p131
      %p133 = scmp.ne.s32.totalorder %s125, %s127
      %p134 = scmp.eq.s32.totalorder %s33, 1
      %p135 = por %p133, %p134
      %p136 = scmp.ne.s32.totalorder %s127, %s128
      %p137 = scmp.eq.s32.totalorder %s33, 0
      %p138 = por %p136, %p137
      %p139 = scmp.ne.s32.totalorder %s127, %s128
      %p140 = scmp.eq.s32.totalorder %s34, 1
      %p141 = por %p139, %p140
      %p143 = scmp.ne.s32.totalorder %s128, %s142
      %p144 = scmp.eq.s32.totalorder %s34, 0
      %p145 = por %p143, %p144
      %s147 = sadd.s32 %s146, 1
      %p150 = scmp.eq.s32.totalorder %s28, 1
      %p151 = scmp.ne.s32.totalorder %s146, %s148
      %p152 = scmp.eq.s32.totalorder %s28, 0
      %p153 = por %p151, %p152
      %p154 = scmp.ne.s32.totalorder %s146, %s148
      %p155 = scmp.eq.s32.totalorder %s33, 1
      %p156 = por %p154, %p155
      %p157 = scmp.ne.s32.totalorder %s148, %s149
      %p158 = scmp.eq.s32.totalorder %s33, 0
      %p159 = por %p157, %p158
      %p160 = scmp.ne.s32.totalorder %s148, %s149
      %p161 = scmp.eq.s32.totalorder %s34, 1
      %p162 = por %p160, %p161
      %p164 = scmp.ne.s32.totalorder %s149, %s163
      %p165 = scmp.eq.s32.totalorder %s34, 0
      %p166 = por %p164, %p165
      %s168 = sadd.s32 %s167, 1
      %p171 = scmp.eq.s32.totalorder %s28, 1
      %p172 = scmp.ne.s32.totalorder %s167, %s169
      %p173 = scmp.eq.s32.totalorder %s28, 0
      %p174 = por %p172, %p173
      %p175 = scmp.ne.s32.totalorder %s167, %s169
      %p176 = scmp.eq.s32.totalorder %s33, 1
      %p177 = por %p175, %p176
      %p178 = scmp.ne.s32.totalorder %s169, %s170
      %p179 = scmp.eq.s32.totalorder %s33, 0
      %p180 = por %p178, %p179
      %p181 = scmp.ne.s32.totalorder %s169, %s170
      %p182 = scmp.eq.s32.totalorder %s34, 1
      %p183 = por %p181, %p182
      %p185 = scmp.ne.s32.totalorder %s170, %s184
      %p186 = scmp.eq.s32.totalorder %s34, 0
      %p187 = por %p185, %p186
      %s189 = sadd.s32 %s188, 1
      %p192 = scmp.eq.s32.totalorder %s28, 1
      %p193 = scmp.ne.s32.totalorder %s188, %s190
      %p194 = scmp.eq.s32.totalorder %s28, 0
      %p195 = por %p193, %p194
      %p196 = scmp.ne.s32.totalorder %s188, %s190
      %p197 = scmp.eq.s32.totalorder %s33, 1
      %p198 = por %p196, %p197
      %p199 = scmp.ne.s32.totalorder %s190, %s191
      %p200 = scmp.eq.s32.totalorder %s33, 0
      %p201 = por %p199, %p200
      %p202 = scmp.ne.s32.totalorder %s190, %s191
      %p203 = scmp.eq.s32.totalorder %s34, 1
      %p204 = por %p202, %p203
      %p206 = scmp.ne.s32.totalorder %s191, %s205
      %p207 = scmp.eq.s32.totalorder %s34, 0
      %p208 = por %p206, %p207
      %s210 = sadd.s32 %s209, 1
      %p213 = scmp.eq.s32.totalorder %s28, 1
      %p214 = scmp.ne.s32.totalorder %s209, %s211
      %p215 = scmp.eq.s32.totalorder %s28, 0
      %p216 = por %p214, %p215
      %p217 = scmp.ne.s32.totalorder %s209, %s211
      %p218 = scmp.eq.s32.totalorder %s33, 1
      %p219 = por %p217, %p218
      %p220 = scmp.ne.s32.totalorder %s211, %s212
      %p221 = scmp.eq.s32.totalorder %s33, 0
      %p222 = por %p220, %p221
      %p223 = scmp.ne.s32.totalorder %s211, %s212
      %p224 = scmp.eq.s32.totalorder %s34, 1
      %p225 = por %p223, %p224
      %p227 = scmp.ne.s32.totalorder %s212, %s226
      %p228 = scmp.eq.s32.totalorder %s34, 0
      %p229 = por %p227, %p228
      %s231 = sadd.s32 %s230, 1
      %p234 = scmp.eq.s32.totalorder %s28, 1
      %p235 = scmp.ne.s32.totalorder %s230, %s232
      %p236 = scmp.eq.s32.totalorder %s28, 0
      %p237 = por %p235, %p236
      %p238 = scmp.ne.s32.totalorder %s230, %s232
      %p239 = scmp.eq.s32.totalorder %s33, 1
      %p240 = por %p238, %p239
      %p241 = scmp.ne.s32.totalorder %s232, %s233
      %p242 = scmp.eq.s32.totalorder %s33, 0
      %p243 = por %p241, %p242
      %p244 = scmp.ne.s32.totalorder %s232, %s233
      %p245 = scmp.eq.s32.totalorder %s34, 1
      %p246 = por %p244, %p245
      %p248 = scmp.ne.s32.totalorder %s233, %s247
      %p249 = scmp.eq.s32.totalorder %s34, 0
      %p250 = por %p248, %p249
      %s252 = sadd.s32 %s251, 1
      %p255 = scmp.eq.s32.totalorder %s28, 1
      %p256 = scmp.ne.s32.totalorder %s251, %s253
      %p257 = scmp.eq.s32.totalorder %s28, 0
      %p258 = por %p256, %p257
      %p259 = scmp.ne.s32.totalorder %s251, %s253
      %p260 = scmp.eq.s32.totalorder %s33, 1
      %p261 = por %p259, %p260
      %p262 = scmp.ne.s32.totalorder %s253, %s254
      %p263 = scmp.eq.s32.totalorder %s33, 0
      %p264 = por %p262, %p263
      %p265 = scmp.ne.s32.totalorder %s253, %s254
      %p266 = scmp.eq.s32.totalorder %s34, 1
      %p267 = por %p265, %p266
      %p269 = scmp.ne.s32.totalorder %s254, %s268
      %p270 = scmp.eq.s32.totalorder %s34, 0
      %p271 = por %p269, %p270
      %s273 = sadd.s32 %s272, 1
      %p276 = scmp.eq.s32.totalorder %s28, 1
      %p277 = scmp.ne.s32.totalorder %s272, %s274
      %p278 = scmp.eq.s32.totalorder %s28, 0
      %p279 = por %p277, %p278
      %p280 = scmp.ne.s32.totalorder %s272, %s274
      %p281 = scmp.eq.s32.totalorder %s33, 1
      %p282 = por %p280, %p281
      %p283 = scmp.ne.s32.totalorder %s274, %s275
      %p284 = scmp.eq.s32.totalorder %s33, 0
      %p285 = por %p283, %p284
      %p286 = scmp.ne.s32.totalorder %s274, %s275
      %p287 = scmp.eq.s32.totalorder %s34, 1
      %p288 = por %p286, %p287
      %p290 = scmp.ne.s32.totalorder %s275, %s289
      %p291 = scmp.eq.s32.totalorder %s34, 0
      %p292 = por %p290, %p291
      %s294 = sadd.s32 %s293, 1
      %p297 = scmp.eq.s32.totalorder %s28, 1
      %p298 = scmp.ne.s32.totalorder %s293, %s295
      %p299 = scmp.eq.s32.totalorder %s28, 0
      %p300 = por %p298, %p299
      %p301 = scmp.ne.s32.totalorder %s293, %s295
      %p302 = scmp.eq.s32.totalorder %s33, 1
      %p303 = por %p301, %p302
      %p304 = scmp.ne.s32.totalorder %s295, %s296
      %p305 = scmp.eq.s32.totalorder %s33, 0
      %p306 = por %p304, %p305
      %p307 = scmp.ne.s32.totalorder %s295, %s296
      %p308 = scmp.eq.s32.totalorder %s34, 1
      %p309 = por %p307, %p308
      %p311 = scmp.ne.s32.totalorder %s296, %s310
      %p312 = scmp.eq.s32.totalorder %s34, 0
      %p313 = por %p311, %p312
      %s315 = sadd.s32 %s314, 1
      %p318 = scmp.eq.s32.totalorder %s28, 1
      %p319 = scmp.ne.s32.totalorder %s314, %s316
      %p320 = scmp.eq.s32.totalorder %s28, 0
      %p321 = por %p319, %p320
      %p322 = scmp.ne.s32.totalorder %s314, %s316
      %p323 = scmp.eq.s32.totalorder %s33, 1
      %p324 = por %p322, %p323
      %p325 = scmp.ne.s32.totalorder %s316, %s317
      %p326 = scmp.eq.s32.totalorder %s33, 0
      %p327 = por %p325, %p326
      %p328 = scmp.ne.s32.totalorder %s316, %s317
      %p329 = scmp.eq.s32.totalorder %s34, 1
      %p330 = por %p328, %p329
      %p332 = scmp.ne.s32.totalorder %s317, %s331
      %p333 = scmp.eq.s32.totalorder %s34, 0
      %p334 = por %p332, %p333
      %s336 = sadd.s32 %s335, 1
      %p339 = scmp.eq.s32.totalorder %s28, 1
      %p340 = scmp.ne.s32.totalorder %s335, %s337
      %p341 = scmp.eq.s32.totalorder %s28, 0
      %p342 = por %p340, %p341
      %p343 = scmp.ne.s32.totalorder %s335, %s337
      %p344 = scmp.eq.s32.totalorder %s33, 1
      %p345 = por %p343, %p344
      %p346 = scmp.ne.s32.totalorder %s337, %s338
      %p347 = scmp.eq.s32.totalorder %s33, 0
      %p348 = por %p346, %p347
      %p349 = scmp.ne.s32.totalorder %s337, %s338
      %p350 = scmp.eq.s32.totalorder %s34, 1
      %p351 = por %p349, %p350
      %p353 = scmp.ne.s32.totalorder %s338, %s352
      %p354 = scmp.eq.s32.totalorder %s34, 0
      %p355 = por %p353, %p354
      %s357 = sadd.s32 %s356, 1
      %p360 = scmp.eq.s32.totalorder %s28, 1
      %p361 = scmp.ne.s32.totalorder %s356, %s358
      %p362 = scmp.eq.s32.totalorder %s28, 0
      %p363 = por %p361, %p362
      %p364 = scmp.ne.s32.totalorder %s356, %s358
      %p365 = scmp.eq.s32.totalorder %s33, 1
      %p366 = por %p364, %p365
      %p367 = scmp.ne.s32.totalorder %s358, %s359
      %p368 = scmp.eq.s32.totalorder %s33, 0
      %p369 = por %p367, %p368
      %p370 = scmp.ne.s32.totalorder %s358, %s359
      %p371 = scmp.eq.s32.totalorder %s34, 1
      %p372 = por %p370, %p371
      %p374 = scmp.ne.s32.totalorder %s359, %s373
      %p375 = scmp.eq.s32.totalorder %s34, 0
      %p376 = por %p374, %p375
      %s378 = sadd.s32 %s377, 1
      %p381 = scmp.eq.s32.totalorder %s28, 1
      %p382 = scmp.ne.s32.totalorder %s377, %s379
      %p383 = scmp.eq.s32.totalorder %s28, 0
      %p384 = por %p382, %p383
      %p385 = scmp.ne.s32.totalorder %s377, %s379
      %p386 = scmp.eq.s32.totalorder %s33, 1
      %p387 = por %p385, %p386
      %p388 = scmp.ne.s32.totalorder %s379, %s380
      %p389 = scmp.eq.s32.totalorder %s33, 0
      %p390 = por %p388, %p389
      %p391 = scmp.ne.s32.totalorder %s379, %s380
      %p392 = scmp.eq.s32.totalorder %s34, 1
      %p393 = por %p391, %p392
      %p395 = scmp.ne.s32.totalorder %s380, %s394
      %p396 = scmp.eq.s32.totalorder %s34, 0
      %p397 = por %p395, %p396
      %s399 = sadd.s32 %s398, 1
      %p402 = scmp.eq.s32.totalorder %s28, 1
      %p403 = scmp.ne.s32.totalorder %s398, %s400
      %p404 = scmp.eq.s32.totalorder %s28, 0
      %p405 = por %p403, %p404
      %p406 = scmp.ne.s32.totalorder %s398, %s400
      %p407 = scmp.eq.s32.totalorder %s33, 1
      %p408 = por %p406, %p407
      %p409 = scmp.ne.s32.totalorder %s400, %s401
      %p410 = scmp.eq.s32.totalorder %s33, 0
      %p411 = por %p409, %p410
      %p412 = scmp.ne.s32.totalorder %s400, %s401
      %p413 = scmp.eq.s32.totalorder %s34, 1
      %p414 = por %p412, %p413
      %p416 = scmp.ne.s32.totalorder %s401, %s415
      %p417 = scmp.eq.s32.totalorder %s34, 0
      %p418 = por %p416, %p417
      %s420 = sadd.s32 %s419, 1
      %p423 = scmp.eq.s32.totalorder %s28, 1
      %p424 = scmp.ne.s32.totalorder %s419, %s421
      %p425 = scmp.eq.s32.totalorder %s28, 0
      %p426 = por %p424, %p425
      %p427 = scmp.ne.s32.totalorder %s419, %s421
      %p428 = scmp.eq.s32.totalorder %s33, 1
      %p429 = por %p427, %p428
      %p430 = scmp.ne.s32.totalorder %s421, %s422
      %p431 = scmp.eq.s32.totalorder %s33, 0
      %p432 = por %p430, %p431
      %p433 = scmp.ne.s32.totalorder %s421, %s422
      %p434 = scmp.eq.s32.totalorder %s34, 1
      %p435 = por %p433, %p434
      %p437 = scmp.ne.s32.totalorder %s422, %s436
      %p438 = scmp.eq.s32.totalorder %s34, 0
      %p439 = por %p437, %p438
      %s440 = ssub.s32 %s28, %s35
      %p441 = scmp.eq.s32.totalorder %s440, 0
      %s443 = sadd.s32 %s442, 1
      %s444 = scalar_select %p441, %s442, %s443
      %p447 = pneg %p441
      %p448 = scmp.eq.s32.totalorder %s28, 1
      %p449 = por %p447, %p448
      %p450 = scmp.ne.s32.totalorder %s442, %s445
      %p451 = scmp.eq.s32.totalorder %s28, 0
      %p452 = por %p450, %p451
      %p453 = scmp.ne.s32.totalorder %s442, %s445
      %p454 = scmp.eq.s32.totalorder %s33, 1
      %p455 = por %p453, %p454
      %p456 = scmp.ne.s32.totalorder %s445, %s446
      %p457 = scmp.eq.s32.totalorder %s33, 0
      %p458 = por %p456, %p457
      %p459 = scmp.ne.s32.totalorder %s445, %s446
      %p460 = scmp.eq.s32.totalorder %s34, 1
      %p461 = por %p459, %p460
      %p463 = scmp.ne.s32.totalorder %s446, %s462
      %p464 = scmp.eq.s32.totalorder %s34, 0
      %p465 = por %p463, %p464
      %p466 = scmp.le.s32.totalorder 1, %s28
      %p467 = scmp.lt.s32.totalorder %s28, 3
      %p468 = pnand %p466, %p467
      %p469 = pneg %p468
      // Predicated region
      $region9: #{mnistnet_forward.1} parent=5 // pred_check
        _
      $region10: #{mnistnet_forward.1} parent=5 // pred_check_branch
        %471 = sbr.rel (%p468) target = $region12
      $region11: #{mnistnet_forward.1} parent=5 // pred_region
        %s472 = ssub.s32 %s28, 1
        // Predicated region
        $region13: #{mnistnet_forward.1} parent=11 // pred_check
          %p473 = pneg %p75
        $region14: #{mnistnet_forward.1} parent=11 // pred_check_branch
          %475 = sbr.rel (%p473) target = $region16
        $region15: #{mnistnet_forward.1} parent=11 // pred_region
          _
        $region16: #{mnistnet_forward.1} parent=11 // pred_fallthru
          _
        // Predicated region
        $region17: #{mnistnet_forward.1} parent=11 // pred_check
          %p476 = pneg %p96
        $region18: #{mnistnet_forward.1} parent=11 // pred_check_branch
          %478 = sbr.rel (%p476) target = $region20
        $region19: #{mnistnet_forward.1} parent=11 // pred_region
          _
        $region20: #{mnistnet_forward.1} parent=11 // pred_fallthru
          _
        // Predicated region
        $region21: #{mnistnet_forward.1} parent=11 // pred_check
          %p479 = pneg %p117
        $region22: #{mnistnet_forward.1} parent=11 // pred_check_branch
          %481 = sbr.rel (%p479) target = $region24
        $region23: #{mnistnet_forward.1} parent=11 // pred_region
          _
        $region24: #{mnistnet_forward.1} parent=11 // pred_fallthru
          _
        // Predicated region
        $region25: #{mnistnet_forward.1} parent=11 // pred_check
          %p482 = pneg %p138
        $region26: #{mnistnet_forward.1} parent=11 // pred_check_branch
          %484 = sbr.rel (%p482) target = $region28
        $region27: #{mnistnet_forward.1} parent=11 // pred_region
          _
        $region28: #{mnistnet_forward.1} parent=11 // pred_fallthru
          _
        // Predicated region
        $region29: #{mnistnet_forward.1} parent=11 // pred_check
          %p485 = pneg %p159
        $region30: #{mnistnet_forward.1} parent=11 // pred_check_branch
          %487 = sbr.rel (%p485) target = $region32
        $region31: #{mnistnet_forward.1} parent=11 // pred_region
          _
        $region32: #{mnistnet_forward.1} parent=11 // pred_fallthru
          _
        // Predicated region
        $region33: #{mnistnet_forward.1} parent=11 // pred_check
          %p488 = pneg %p180
        $region34: #{mnistnet_forward.1} parent=11 // pred_check_branch
          %490 = sbr.rel (%p488) target = $region36
        $region35: #{mnistnet_forward.1} parent=11 // pred_region
          _
        $region36: #{mnistnet_forward.1} parent=11 // pred_fallthru
          _
        // Predicated region
        $region37: #{mnistnet_forward.1} parent=11 // pred_check
          %p491 = pneg %p201
        $region38: #{mnistnet_forward.1} parent=11 // pred_check_branch
          %493 = sbr.rel (%p491) target = $region40
        $region39: #{mnistnet_forward.1} parent=11 // pred_region
          _
        $region40: #{mnistnet_forward.1} parent=11 // pred_fallthru
          _
        // Predicated region
        $region41: #{mnistnet_forward.1} parent=11 // pred_check
          %p494 = pneg %p222
        $region42: #{mnistnet_forward.1} parent=11 // pred_check_branch
          %496 = sbr.rel (%p494) target = $region44
        $region43: #{mnistnet_forward.1} parent=11 // pred_region
          _
        $region44: #{mnistnet_forward.1} parent=11 // pred_fallthru
          _
        // Predicated region
        $region45: #{mnistnet_forward.1} parent=11 // pred_check
          %p497 = pneg %p243
        $region46: #{mnistnet_forward.1} parent=11 // pred_check_branch
          %499 = sbr.rel (%p497) target = $region48
        $region47: #{mnistnet_forward.1} parent=11 // pred_region
          _
        $region48: #{mnistnet_forward.1} parent=11 // pred_fallthru
          _
        // Predicated region
        $region49: #{mnistnet_forward.1} parent=11 // pred_check
          %p500 = pneg %p264
        $region50: #{mnistnet_forward.1} parent=11 // pred_check_branch
          %502 = sbr.rel (%p500) target = $region52
        $region51: #{mnistnet_forward.1} parent=11 // pred_region
          _
        $region52: #{mnistnet_forward.1} parent=11 // pred_fallthru
          _
        // Predicated region
        $region53: #{mnistnet_forward.1} parent=11 // pred_check
          %p503 = pneg %p285
        $region54: #{mnistnet_forward.1} parent=11 // pred_check_branch
          %505 = sbr.rel (%p503) target = $region56
        $region55: #{mnistnet_forward.1} parent=11 // pred_region
          _
        $region56: #{mnistnet_forward.1} parent=11 // pred_fallthru
          _
        // Predicated region
        $region57: #{mnistnet_forward.1} parent=11 // pred_check
          %p506 = pneg %p306
        $region58: #{mnistnet_forward.1} parent=11 // pred_check_branch
          %508 = sbr.rel (%p506) target = $region60
        $region59: #{mnistnet_forward.1} parent=11 // pred_region
          _
        $region60: #{mnistnet_forward.1} parent=11 // pred_fallthru
          _
        // Predicated region
        $region61: #{mnistnet_forward.1} parent=11 // pred_check
          %p509 = pneg %p327
        $region62: #{mnistnet_forward.1} parent=11 // pred_check_branch
          %511 = sbr.rel (%p509) target = $region64
        $region63: #{mnistnet_forward.1} parent=11 // pred_region
          _
        $region64: #{mnistnet_forward.1} parent=11 // pred_fallthru
          _
        // Predicated region
        $region65: #{mnistnet_forward.1} parent=11 // pred_check
          %p512 = pneg %p348
        $region66: #{mnistnet_forward.1} parent=11 // pred_check_branch
          %514 = sbr.rel (%p512) target = $region68
        $region67: #{mnistnet_forward.1} parent=11 // pred_region
          _
        $region68: #{mnistnet_forward.1} parent=11 // pred_fallthru
          _
        // Predicated region
        $region69: #{mnistnet_forward.1} parent=11 // pred_check
          %p515 = pneg %p369
        $region70: #{mnistnet_forward.1} parent=11 // pred_check_branch
          %517 = sbr.rel (%p515) target = $region72
        $region71: #{mnistnet_forward.1} parent=11 // pred_region
          _
        $region72: #{mnistnet_forward.1} parent=11 // pred_fallthru
          _
        // Predicated region
        $region73: #{mnistnet_forward.1} parent=11 // pred_check
          %p518 = pneg %p390
        $region74: #{mnistnet_forward.1} parent=11 // pred_check_branch
          %520 = sbr.rel (%p518) target = $region76
        $region75: #{mnistnet_forward.1} parent=11 // pred_region
          _
        $region76: #{mnistnet_forward.1} parent=11 // pred_fallthru
          _
        // Predicated region
        $region77: #{mnistnet_forward.1} parent=11 // pred_check
          %p521 = pneg %p411
        $region78: #{mnistnet_forward.1} parent=11 // pred_check_branch
          %523 = sbr.rel (%p521) target = $region80
        $region79: #{mnistnet_forward.1} parent=11 // pred_region
          _
        $region80: #{mnistnet_forward.1} parent=11 // pred_fallthru
          _
        // Predicated region
        $region81: #{mnistnet_forward.1} parent=11 // pred_check
          %p524 = pneg %p432
        $region82: #{mnistnet_forward.1} parent=11 // pred_check_branch
          %526 = sbr.rel (%p524) target = $region84
        $region83: #{mnistnet_forward.1} parent=11 // pred_region
          _
        $region84: #{mnistnet_forward.1} parent=11 // pred_fallthru
          _
      $region12: #{mnistnet_forward.1} parent=5 // pred_fallthru
        _
      %p527 = scmp.lt.s32.totalorder %s28, 2
      // Predicated region
      $region85: #{mnistnet_forward.1} parent=5 // pred_check
        %p528 = pneg %p527
      $region86: #{mnistnet_forward.1} parent=5 // pred_check_branch
        %530 = sbr.rel (%p528) target = $region88
      $region87: #{mnistnet_forward.1} parent=5 // pred_region
        // Predicated region
        $region89: #{mnistnet_forward.1} parent=87 // pred_check
          %p531 = pneg %p48
        $region90: #{mnistnet_forward.1} parent=87 // pred_check_branch
          %533 = sbr.rel (%p531) target = $region92
        $region91: #{mnistnet_forward.1} parent=87 // pred_region
          %p534 = scmp.lt.s32.totalorder %s28, 1
          %s535 = scalar_select %p534, %s28, 1
          %s536 = smul.addr %s535, 4
          %s537 = smul.addr %s536, 8
          %s538 = scalar_lea.vmem %s0, %s537
        $region92: #{mnistnet_forward.1} parent=87 // pred_fallthru
          _
      $region88: #{mnistnet_forward.1} parent=5 // pred_fallthru
        _
      %p539 = scmp.le.s32.totalorder 1, %s28
      %p540 = scmp.lt.s32.totalorder %s28, 3
      %p541 = pnand %p539, %p540
      %p542 = pneg %p541
      // Predicated region
      $region93: #{mnistnet_forward.1} parent=5 // pred_check
        _
      $region94: #{mnistnet_forward.1} parent=5 // pred_check_branch
        %544 = sbr.rel (%p541) target = $region96
      $region95: #{mnistnet_forward.1} parent=5 // pred_region
        %s545 = ssub.s32 %s28, 1
        %p546 = scmp.lt.s32.totalorder %s33, 1
        %s547 = scalar_select %p546, %s33, 1
        %s548 = smul.addr %s547, 4
        %s549 = smul.addr %s548, 8
        %s550 = scalar_lea.vmem %s0, %s549
        %p551 = pneg %p54
        %p552 = pneg %p51
        %p553 = pneg %p75
        %p554 = pneg %p72
        %p555 = pneg %p96
        %p556 = pneg %p93
        %p557 = pneg %p117
        %p558 = pneg %p114
        %p559 = pneg %p138
        %p560 = pneg %p135
        %p561 = pneg %p159
        %p562 = pneg %p156
        %p563 = pneg %p180
        %p564 = pneg %p177
        %p565 = pneg %p201
        %p566 = pneg %p198
        %p567 = pneg %p222
        %p568 = pneg %p219
        %p569 = pneg %p243
        %p570 = pneg %p240
        %p571 = pneg %p264
        %p572 = pneg %p261
        %p573 = pneg %p285
        %p574 = pneg %p282
        %p575 = pneg %p306
        %p576 = pneg %p303
        %p577 = pneg %p327
        %p578 = pneg %p324
        %p579 = pneg %p348
        %p580 = pneg %p345
        %p581 = pneg %p369
        %p582 = pneg %p366
        %p583 = pneg %p390
        %p584 = pneg %p387
        %p585 = pneg %p411
        %p586 = pneg %p408
        %p587 = pneg %p432
        %p588 = pneg %p429
        %p589 = pneg %p458
        %p590 = pneg %p455
        %s591 = sand.u32 %s445, 1
        %s592 = scalar_lea.sflag [#allocation3], %s591
        %s593 = sand.u32 %s445, 1
        %s594 = scalar_lea.vmem [#allocation2], %s593
        %p595 = scmp.lt.s32.totalorder %s33, 1
        %s596 = scalar_select %p595, %s33, 1
        %s597 = smul.addr %s596, 4
        %s598 = smul.addr %s597, 8
        %s599 = scalar_lea.vmem %s0, %s598
        %v600 = vld [vmem:[%s2] sm:$0x3]
        %v602 = vlaneseq
        %v603 = vshrl.u32 %v602, 7
        %v604 = vsub.s32 0, %v603
        %v605 = vrot.slane %v600, %v604
        %v606 = vlaneseq
        %v607 = vshrl.u32 %v606, 7
        %v608 = vsub.s32 1, %v607
        %v609 = vrot.slane %v600, %v608
        %v612 = vld [vmem:[%s599] sm:$0xff]
        %v613 = vld [vmem:[%s599 + $0x8] sm:$0xff]
        %v614 = vld [vmem:[%s599 + $0x10] sm:$0xff]
        %v615 = vld [vmem:[%s1] sm:$0xff]
        %v616 = vld [vmem:[%s1 + $0x8] sm:$0xff]
        %v617 = vld [vmem:[%s1 + $0x10] sm:$0xff]
        %v618 = vld [vmem:[%s1 + $0x18] sm:$0xff]
        %v619 = vld [vmem:[%s1 + $0x20] sm:$0xff]
        %v620 = vld [vmem:[%s1 + $0x28] sm:$0xff]
        %v621 = vld [vmem:[%s1 + $0x30] sm:$0xf]
        %v622 = vld [vmem:[%s1 + $0x38] sm:$0xf]
        %vm623 = vcmask 228352
        %v625 = vsel %vm623, %v612, 0
        %v628 = vsel %vm623, %v613, 0
        %v631 = vsel %vm623, %v614, 0
        %vm633 = vcmask 1043456
        %v635 = vsel %vm633, %v621, 0
        %v638 = vsel %vm633, %v622, 0
        %640 = vmatprep.subr.mxu0 %v616
        %641 = vmatpush1.msra.mxu0 %v615
        %642 = vmatprep.subr.mxu0 %v618
        %643 = vmatpush1.msra.mxu0 %v617
        %644 = vmatprep.subr.mxu0 %v620
        %645 = vmatpush1.msra.mxu0 %v619
        %646 = vmatprep.subr.mxu0 %v638
        %647 = vmatpush1.msra.mxu0 %v635
        %648 = vmatprep.subr.mxu0 0.0
        %649 = vmatpush1.msra.mxu0 0.0
        %650 = vmatprep.subr.mxu0 0.0
        %651 = vmatpush1.msra.mxu0 0.0
        %652 = vmatprep.subr.mxu0 0.0
        %653 = vmatpush1.msra.mxu0 0.0
        %654 = vmatprep.subr.mxu0 0.0
        %655 = vmatpush1.msra.mxu0 0.0
        %656 = vmatprep.subr.mxu0 0.0
        %657 = vmatpush1.msra.mxu0 0.0
        %658 = vmatprep.subr.mxu0 0.0
        %659 = vmatpush1.msra.mxu0 0.0
        %660 = vmatprep.subr.mxu0 0.0
        %661 = vmatpush1.msra.mxu0 0.0
        %662 = vmatprep.subr.mxu0 0.0
        %663 = vmatpush1.msra.mxu0 0.0
        %664 = vmatprep.subr.mxu0 0.0
        %665 = vmatpush1.msra.mxu0 0.0
        %666 = vmatprep.subr.mxu0 0.0
        %667 = vmatpush1.msra.mxu0 0.0
        %668 = vmatprep.subr.mxu0 0.0
        %669 = vmatpush1.msra.mxu0 0.0
        %670 = vmatprep.subr.mxu0 0.0
        %671 = vmatpush1.msra.mxu0 0.0
        %672 = vmatprep.subr.mxu0 0.0
        %673 = vmatpush1.msra.mxu0 0.0
        %674 = vmatprep.subr.mxu0 0.0
        %675 = vmatpush1.msra.mxu0 0.0
        %676 = vmatprep.subr.mxu0 0.0
        %677 = vmatpush1.msra.mxu0 0.0
        %678 = vmatprep.subr.mxu0 0.0
        %679 = vmatpush1.msra.mxu0 0.0
        %680 = vmatprep.subr.mxu0 0.0
        %681 = vmatpush1.msra.mxu0 0.0
        %682 = vmatprep.subr.mxu0 0.0
        %683 = vmatpush1.msra.mxu0 0.0
        %684 = vmatprep.subr.mxu0 0.0
        %685 = vmatpush1.msra.mxu0 0.0
        %686 = vmatprep.subr.mxu0 0.0
        %687 = vmatpush1.msra.mxu0 0.0
        %688 = vmatprep.subr.mxu0 0.0
        %689 = vmatpush1.msra.mxu0 0.0
        %690 = vmatprep.subr.mxu0 0.0
        %691 = vmatpush1.msra.mxu0 0.0
        %692 = vmatprep.subr.mxu0 0.0
        %693 = vmatpush1.msra.mxu0 0.0
        %694 = vmatprep.subr.mxu0 0.0
        %695 = vmatpush1.msra.mxu0 0.0
        %696 = vmatprep.subr.mxu0 0.0
        %697 = vmatpush1.msra.mxu0 0.0
        %698 = vmatprep.subr.mxu0 0.0
        %699 = vmatpush1.msra.mxu0 0.0
        %700 = vmatprep.subr.mxu0 0.0
        %701 = vmatpush1.msra.mxu0 0.0
        %702 = vmatprep.subr.mxu0 0.0
        %703 = vmatpush1.msra.mxu0 0.0
        %704 = vmatprep.mubr.f32.mxu0 0.0
        %705 = vmatmul.mubr.f32.gmra.mrb[0].mxu0 %v625
        %v706 = vpop.f32.mrb[0].mxu0
        %v707 = vadd.f32 0.0, %v706
        %v708 = vpop.f32.mrb[0].mxu0
        %v709 = vadd.f32 0.0, %v708
        %710 = vmatprep.mubr.f32.mxu0 0.0
        %711 = vmatmul.mubr.f32.gmra.mrb[0].mxu0 %v628
        %v712 = vpop.f32.mrb[0].mxu0
        %v713 = vadd.f32 0.0, %v712
        %v714 = vpop.f32.mrb[0].mxu0
        %v715 = vadd.f32 0.0, %v714
        %716 = vmatprep.mubr.f32.mxu0 0.0
        %717 = vmatmul.mubr.f32.gmra.mrb[0].mxu0 %v631
        %v718 = vpop.f32.mrb[0].mxu0
        %v719 = vadd.f32 0.0, %v718
        %v720 = vpop.f32.mrb[0].mxu0
        %v721 = vadd.f32 0.0, %v720
        %722 = vdwg.mxu0
        %v723 = vadd.f32 %v605, %v707
        %v724 = vadd.f32 %v609, %v709
        %v725 = vadd.f32 %v605, %v713
        %v726 = vadd.f32 %v609, %v715
        %v727 = vadd.f32 %v605, %v719
        %v728 = vadd.f32 %v609, %v721
        %v729 = vld [vmem:[%s599 + $0x1] sm:$0xff]
        %v730 = vld [vmem:[%s599 + $0x9] sm:$0xff]
        %v731 = vld [vmem:[%s599 + $0x11] sm:$0xff]
        %s732 = scalar_lea.vmem %s1, 64
        %v733 = vld [vmem:[%s732] sm:$0xff]
        %v734 = vld [vmem:[%s732 + $0x8] sm:$0xff]
        %v735 = vld [vmem:[%s732 + $0x10] sm:$0xff]
        %v736 = vld [vmem:[%s732 + $0x18] sm:$0xff]
        %v737 = vld [vmem:[%s732 + $0x20] sm:$0xff]
        %v738 = vld [vmem:[%s732 + $0x28] sm:$0xff]
        %v739 = vld [vmem:[%s732 + $0x30] sm:$0xf]
        %v740 = vld [vmem:[%s732 + $0x38] sm:$0xf]
        %v742 = vsel %vm623, %v729, 0
        %v745 = vsel %vm623, %v730, 0
        %v748 = vsel %vm623, %v731, 0
        %v751 = vsel %vm633, %v739, 0
        %v754 = vsel %vm633, %v740, 0
        %756 = vmatprep.subr.mxu0 %v734
        %757 = vmatpush1.msra.mxu0 %v733
        %758 = vmatprep.subr.mxu0 %v736
        %759 = vmatpush1.msra.mxu0 %v735
        %760 = vmatprep.subr.mxu0 %v738
        %761 = vmatpush1.msra.mxu0 %v737
        %762 = vmatprep.subr.mxu0 %v754
        %763 = vmatpush1.msra.mxu0 %v751
        %764 = vmatprep.subr.mxu0 0.0
        %765 = vmatpush1.msra.mxu0 0.0
        %766 = vmatprep.subr.mxu0 0.0
        %767 = vmatpush1.msra.mxu0 0.0
        %768 = vmatprep.subr.mxu0 0.0
        %769 = vmatpush1.msra.mxu0 0.0
        %770 = vmatprep.subr.mxu0 0.0
        %771 = vmatpush1.msra.mxu0 0.0
        %772 = vmatprep.subr.mxu0 0.0
        %773 = vmatpush1.msra.mxu0 0.0
        %774 = vmatprep.subr.mxu0 0.0
        %775 = vmatpush1.msra.mxu0 0.0
        %776 = vmatprep.subr.mxu0 0.0
        %777 = vmatpush1.msra.mxu0 0.0
        %778 = vmatprep.subr.mxu0 0.0
        %779 = vmatpush1.msra.mxu0 0.0
        %780 = vmatprep.subr.mxu0 0.0
        %781 = vmatpush1.msra.mxu0 0.0
        %782 = vmatprep.subr.mxu0 0.0
        %783 = vmatpush1.msra.mxu0 0.0
        %784 = vmatprep.subr.mxu0 0.0
        %785 = vmatpush1.msra.mxu0 0.0
        %786 = vmatprep.subr.mxu0 0.0
        %787 = vmatpush1.msra.mxu0 0.0
        %788 = vmatprep.subr.mxu0 0.0
        %789 = vmatpush1.msra.mxu0 0.0
        %790 = vmatprep.subr.mxu0 0.0
        %791 = vmatpush1.msra.mxu0 0.0
        %792 = vmatprep.subr.mxu0 0.0
        %793 = vmatpush1.msra.mxu0 0.0
        %794 = vmatprep.subr.mxu0 0.0
        %795 = vmatpush1.msra.mxu0 0.0
        %796 = vmatprep.subr.mxu0 0.0
        %797 = vmatpush1.msra.mxu0 0.0
        %798 = vmatprep.subr.mxu0 0.0
        %799 = vmatpush1.msra.mxu0 0.0
        %800 = vmatprep.subr.mxu0 0.0
        %801 = vmatpush1.msra.mxu0 0.0
        %802 = vmatprep.subr.mxu0 0.0
        %803 = vmatpush1.msra.mxu0 0.0
        %804 = vmatprep.subr.mxu0 0.0
        %805 = vmatpush1.msra.mxu0 0.0
        %806 = vmatprep.subr.mxu0 0.0
        %807 = vmatpush1.msra.mxu0 0.0
        %808 = vmatprep.subr.mxu0 0.0
        %809 = vmatpush1.msra.mxu0 0.0
        %810 = vmatprep.subr.mxu0 0.0
        %811 = vmatpush1.msra.mxu0 0.0
        %812 = vmatprep.subr.mxu0 0.0
        %813 = vmatpush1.msra.mxu0 0.0
        %814 = vmatprep.subr.mxu0 0.0
        %815 = vmatpush1.msra.mxu0 0.0
        %816 = vmatprep.subr.mxu0 0.0
        %817 = vmatpush1.msra.mxu0 0.0
        %818 = vmatprep.subr.mxu0 0.0
        %819 = vmatpush1.msra.mxu0 0.0
        %820 = vmatprep.mubr.f32.mxu0 0.0
        %821 = vmatmul.mubr.f32.gmra.mrb[0].mxu0 %v742
        %v822 = vpop.f32.mrb[0].mxu0
        %v823 = vadd.f32 0.0, %v822
        %v824 = vpop.f32.mrb[0].mxu0
        %v825 = vadd.f32 0.0, %v824
        %826 = vmatprep.mubr.f32.mxu0 0.0
        %827 = vmatmul.mubr.f32.gmra.mrb[0].mxu0 %v745
        %v828 = vpop.f32.mrb[0].mxu0
        %v829 = vadd.f32 0.0, %v828
        %v830 = vpop.f32.mrb[0].mxu0
        %v831 = vadd.f32 0.0, %v830
        %832 = vmatprep.mubr.f32.mxu0 0.0
        %833 = vmatmul.mubr.f32.gmra.mrb[0].mxu0 %v748
        %v834 = vpop.f32.mrb[0].mxu0
        %v835 = vadd.f32 0.0, %v834
        %v836 = vpop.f32.mrb[0].mxu0
        %v837 = vadd.f32 0.0, %v836
        %838 = vdwg.mxu0
        %v839 = vadd.f32 %v723, %v823
        %v840 = vadd.f32 %v724, %v825
        %v841 = vadd.f32 %v725, %v829
        %v842 = vadd.f32 %v726, %v831
        %v843 = vadd.f32 %v727, %v835
        %v844 = vadd.f32 %v728, %v837
        %v845 = vld [vmem:[%s599 + $0x2] sm:$0xff]
        %v846 = vld [vmem:[%s599 + $0xa] sm:$0xff]
        %v847 = vld [vmem:[%s599 + $0x12] sm:$0xff]
        %s848 = scalar_lea.vmem %s1, 128
        %v849 = vld [vmem:[%s848] sm:$0xff]
        %v850 = vld [vmem:[%s848 + $0x8] sm:$0xff]
        %v851 = vld [vmem:[%s848 + $0x10] sm:$0xff]
        %v852 = vld [vmem:[%s848 + $0x18] sm:$0xff]
        %v853 = vld [vmem:[%s848 + $0x20] sm:$0xff]
        %v854 = vld [vmem:[%s848 + $0x28] sm:$0xff]
        %v855 = vld [vmem:[%s848 + $0x30] sm:$0xf]
        %v856 = vld [vmem:[%s848 + $0x38] sm:$0xf]
        %v858 = vsel %vm623, %v845, 0
        %v861 = vsel %vm623, %v846, 0
        %v864 = vsel %vm623, %v847, 0
        %v867 = vsel %vm633, %v855, 0
        %v870 = vsel %vm633, %v856, 0
        %872 = vmatprep.subr.mxu0 %v850
        %873 = vmatpush1.msra.mxu0 %v849
        %874 = vmatprep.subr.mxu0 %v852
        %875 = vmatpush1.msra.mxu0 %v851
        %876 = vmatprep.subr.mxu0 %v854
        %877 = vmatpush1.msra.mxu0 %v853
        %878 = vmatprep.subr.mxu0 %v870
        %879 = vmatpush1.msra.mxu0 %v867
        %880 = vmatprep.subr.mxu0 0.0
        %881 = vmatpush1.msra.mxu0 0.0
        %882 = vmatprep.subr.mxu0 0.0
        %883 = vmatpush1.msra.mxu0 0.0
        %884 = vmatprep.subr.mxu0 0.0
        %885 = vmatpush1.msra.mxu0 0.0
        %886 = vmatprep.subr.mxu0 0.0
        %887 = vmatpush1.msra.mxu0 0.0
        %888 = vmatprep.subr.mxu0 0.0
        %889 = vmatpush1.msra.mxu0 0.0
        %890 = vmatprep.subr.mxu0 0.0
        %891 = vmatpush1.msra.mxu0 0.0
        %892 = vmatprep.subr.mxu0 0.0
        %893 = vmatpush1.msra.mxu0 0.0
        %894 = vmatprep.subr.mxu0 0.0
        %895 = vmatpush1.msra.mxu0 0.0
        %896 = vmatprep.subr.mxu0 0.0
        %897 = vmatpush1.msra.mxu0 0.0
        %898 = vmatprep.subr.mxu0 0.0
        %899 = vmatpush1.msra.mxu0 0.0
        %900 = vmatprep.subr.mxu0 0.0
        %901 = vmatpush1.msra.mxu0 0.0
        %902 = vmatprep.subr.mxu0 0.0
        %903 = vmatpush1.msra.mxu0 0.0
        %904 = vmatprep.subr.mxu0 0.0
        %905 = vmatpush1.msra.mxu0 0.0
        %906 = vmatprep.subr.mxu0 0.0
        %907 = vmatpush1.msra.mxu0 0.0
        %908 = vmatprep.subr.mxu0 0.0
        %909 = vmatpush1.msra.mxu0 0.0
        %910 = vmatprep.subr.mxu0 0.0
        %911 = vmatpush1.msra.mxu0 0.0
        %912 = vmatprep.subr.mxu0 0.0
        %913 = vmatpush1.msra.mxu0 0.0
        %914 = vmatprep.subr.mxu0 0.0
        %915 = vmatpush1.msra.mxu0 0.0
        %916 = vmatprep.subr.mxu0 0.0
        %917 = vmatpush1.msra.mxu0 0.0
        %918 = vmatprep.subr.mxu0 0.0
        %919 = vmatpush1.msra.mxu0 0.0
        %920 = vmatprep.subr.mxu0 0.0
        %921 = vmatpush1.msra.mxu0 0.0
        %922 = vmatprep.subr.mxu0 0.0
        %923 = vmatpush1.msra.mxu0 0.0
        %924 = vmatprep.subr.mxu0 0.0
        %925 = vmatpush1.msra.mxu0 0.0
        %926 = vmatprep.subr.mxu0 0.0
        %927 = vmatpush1.msra.mxu0 0.0
        %928 = vmatprep.subr.mxu0 0.0
        %929 = vmatpush1.msra.mxu0 0.0
        %930 = vmatprep.subr.mxu0 0.0
        %931 = vmatpush1.msra.mxu0 0.0
        %932 = vmatprep.subr.mxu0 0.0
        %933 = vmatpush1.msra.mxu0 0.0
        %934 = vmatprep.subr.mxu0 0.0
        %935 = vmatpush1.msra.mxu0 0.0
        %936 = vmatprep.mubr.f32.mxu0 0.0
        %937 = vmatmul.mubr.f32.gmra.mrb[0].mxu0 %v858
        %v938 = vpop.f32.mrb[0].mxu0
        %v939 = vadd.f32 0.0, %v938
        %v940 = vpop.f32.mrb[0].mxu0
        %v941 = vadd.f32 0.0, %v940
        %942 = vmatprep.mubr.f32.mxu0 0.0
        %943 = vmatmul.mubr.f32.gmra.mrb[0].mxu0 %v861
        %v944 = vpop.f32.mrb[0].mxu0
        %v945 = vadd.f32 0.0, %v944
        %v946 = vpop.f32.mrb[0].mxu0
        %v947 = vadd.f32 0.0, %v946
        %948 = vmatprep.mubr.f32.mxu0 0.0
        %949 = vmatmul.mubr.f32.gmra.mrb[0].mxu0 %v864
        %v950 = vpop.f32.mrb[0].mxu0
        %v951 = vadd.f32 0.0, %v950
        %v952 = vpop.f32.mrb[0].mxu0
        %v953 = vadd.f32 0.0, %v952
        %954 = vdwg.mxu0
        %v955 = vadd.f32 %v839, %v939
        %v956 = vadd.f32 %v840, %v941
        %v957 = vadd.f32 %v841, %v945
        %v958 = vadd.f32 %v842, %v947
        %v959 = vadd.f32 %v843, %v951
        %v960 = vadd.f32 %v844, %v953
        %v961 = vld [vmem:[%s599 + $0x3] sm:$0xff]
        %v962 = vld [vmem:[%s599 + $0xb] sm:$0xff]
        %v963 = vld [vmem:[%s599 + $0x13] sm:$0xff]
        %s964 = scalar_lea.vmem %s1, 192
        %v965 = vld [vmem:[%s964] sm:$0xff]
        %v966 = vld [vmem:[%s964 + $0x8] sm:$0xff]
        %v967 = vld [vmem:[%s964 + $0x10] sm:$0xff]
        %v968 = vld [vmem:[%s964 + $0x18] sm:$0xff]
        %v969 = vld [vmem:[%s964 + $0x20] sm:$0xff]
        %v970 = vld [vmem:[%s964 + $0x28] sm:$0xff]
        %v971 = vld [vmem:[%s964 + $0x30] sm:$0xf]
        %v972 = vld [vmem:[%s964 + $0x38] sm:$0xf]
        %v974 = vsel %vm623, %v961, 0
        %v977 = vsel %vm623, %v962, 0
        %v980 = vsel %vm623, %v963, 0
        %v983 = vsel %vm633, %v971, 0
        %v986 = vsel %vm633, %v972, 0
        %988 = vmatprep.subr.mxu0 %v966
        %989 = vmatpush1.msra.mxu0 %v965
        %990 = vmatprep.subr.mxu0 %v968
        %991 = vmatpush1.msra.mxu0 %v967
        %992 = vmatprep.subr.mxu0 %v970
        %993 = vmatpush1.msra.mxu0 %v969
        %994 = vmatprep.subr.mxu0 %v986
        %995 = vmatpush1.msra.mxu0 %v983
        %996 = vmatprep.subr.mxu0 0.0
        %997 = vmatpush1.msra.mxu0 0.0
        %998 = vmatprep.subr.mxu0 0.0
        %999 = vmatpush1.msra.mxu0 0.0
        %1000 = vmatprep.subr.mxu0 0.0
        %1001 = vmatpush1.msra.mxu0 0.0
        %1002 = vmatprep.subr.mxu0 0.0
        %1003 = vmatpush1.msra.mxu0 0.0
        %1004 = vmatprep.subr.mxu0 0.0
        %1005 = vmatpush1.msra.mxu0 0.0
        %1006 = vmatprep.subr.mxu0 0.0
        %1007 = vmatpush1.msra.mxu0 0.0
        %1008 = vmatprep.subr.mxu0 0.0
        %1009 = vmatpush1.msra.mxu0 0.0
        %1010 = vmatprep.subr.mxu0 0.0
        %1011 = vmatpush1.msra.mxu0 0.0
        %1012 = vmatprep.subr.mxu0 0.0
        %1013 = vmatpush1.msra.mxu0 0.0
        %1014 = vmatprep.subr.mxu0 0.0
        %1015 = vmatpush1.msra.mxu0 0.0
        %1016 = vmatprep.subr.mxu0 0.0
        %1017 = vmatpush1.msra.mxu0 0.0
        %1018 = vmatprep.subr.mxu0 0.0
        %1019 = vmatpush1.msra.mxu0 0.0
        %1020 = vmatprep.subr.mxu0 0.0
        %1021 = vmatpush1.msra.mxu0 0.0
        %1022 = vmatprep.subr.mxu0 0.0
        %1023 = vmatpush1.msra.mxu0 0.0
        %1024 = vmatprep.subr.mxu0 0.0
        %1025 = vmatpush1.msra.mxu0 0.0
        %1026 = vmatprep.subr.mxu0 0.0
        %1027 = vmatpush1.msra.mxu0 0.0
        %1028 = vmatprep.subr.mxu0 0.0
        %1029 = vmatpush1.msra.mxu0 0.0
        %1030 = vmatprep.subr.mxu0 0.0
        %1031 = vmatpush1.msra.mxu0 0.0
        %1032 = vmatprep.subr.mxu0 0.0
        %1033 = vmatpush1.msra.mxu0 0.0
        %1034 = vmatprep.subr.mxu0 0.0
        %1035 = vmatpush1.msra.mxu0 0.0
        %1036 = vmatprep.subr.mxu0 0.0
        %1037 = vmatpush1.msra.mxu0 0.0
        %1038 = vmatprep.subr.mxu0 0.0
        %1039 = vmatpush1.msra.mxu0 0.0
        %1040 = vmatprep.subr.mxu0 0.0
        %1041 = vmatpush1.msra.mxu0 0.0
        %1042 = vmatprep.subr.mxu0 0.0
        %1043 = vmatpush1.msra.mxu0 0.0
        %1044 = vmatprep.subr.mxu0 0.0
        %1045 = vmatpush1.msra.mxu0 0.0
        %1046 = vmatprep.subr.mxu0 0.0
        %1047 = vmatpush1.msra.mxu0 0.0
        %1048 = vmatprep.subr.mxu0 0.0
        %1049 = vmatpush1.msra.mxu0 0.0
        %1050 = vmatprep.subr.mxu0 0.0
        %1051 = vmatpush1.msra.mxu0 0.0
        %1052 = vmatprep.mubr.f32.mxu0 0.0
        %1053 = vmatmul.mubr.f32.gmra.mrb[0].mxu0 %v974
        %v1054 = vpop.f32.mrb[0].mxu0
        %v1055 = vadd.f32 0.0, %v1054
        %v1056 = vpop.f32.mrb[0].mxu0
        %v1057 = vadd.f32 0.0, %v1056
        %1058 = vmatprep.mubr.f32.mxu0 0.0
        %1059 = vmatmul.mubr.f32.gmra.mrb[0].mxu0 %v977
        %v1060 = vpop.f32.mrb[0].mxu0
        %v1061 = vadd.f32 0.0, %v1060
        %v1062 = vpop.f32.mrb[0].mxu0
        %v1063 = vadd.f32 0.0, %v1062
        %1064 = vmatprep.mubr.f32.mxu0 0.0
        %1065 = vmatmul.mubr.f32.gmra.mrb[0].mxu0 %v980
        %v1066 = vpop.f32.mrb[0].mxu0
        %v1067 = vadd.f32 0.0, %v1066
        %v1068 = vpop.f32.mrb[0].mxu0
        %v1069 = vadd.f32 0.0, %v1068
        %1070 = vdwg.mxu0
        %v1071 = vadd.f32 %v955, %v1055
        %v1072 = vadd.f32 %v956, %v1057
        %v1073 = vadd.f32 %v957, %v1061
        %v1074 = vadd.f32 %v958, %v1063
        %v1075 = vadd.f32 %v959, %v1067
        %v1076 = vadd.f32 %v960, %v1069
        %v1077 = vld [vmem:[%s599 + $0x4] sm:$0xff]
        %v1078 = vld [vmem:[%s599 + $0xc] sm:$0xff]
        %v1079 = vld [vmem:[%s599 + $0x14] sm:$0xff]
        %s1080 = scalar_lea.vmem %s1, 256
        %v1081 = vld [vmem:[%s1080] sm:$0xff]
        %v1082 = vld [vmem:[%s1080 + $0x8] sm:$0xff]
        %v1083 = vld [vmem:[%s1080 + $0x10] sm:$0xff]
        %v1084 = vld [vmem:[%s1080 + $0x18] sm:$0xff]
        %v1085 = vld [vmem:[%s1080 + $0x20] sm:$0xff]
        %v1086 = vld [vmem:[%s1080 + $0x28] sm:$0xff]
        %v1087 = vld [vmem:[%s1080 + $0x30] sm:$0xf]
        %v1088 = vld [vmem:[%s1080 + $0x38] sm:$0xf]
        %v1090 = vsel %vm623, %v1077, 0
        %v1093 = vsel %vm623, %v1078, 0
        %v1096 = vsel %vm623, %v1079, 0
        %v1099 = vsel %vm633, %v1087, 0
        %v1102 = vsel %vm633, %v1088, 0
        %1104 = vmatprep.subr.mxu0 %v1082
        %1105 = vmatpush1.msra.mxu0 %v1081
        %1106 = vmatprep.subr.mxu0 %v1084
        %1107 = vmatpush1.msra.mxu0 %v1083
        %1108 = vmatprep.subr.mxu0 %v1086
        %1109 = vmatpush1.msra.mxu0 %v1085
        %1110 = vmatprep.subr.mxu0 %v1102
        %1111 = vmatpush1.msra.mxu0 %v1099
        %1112 = vmatprep.subr.mxu0 0.0
        %1113 = vmatpush1.msra.mxu0 0.0
        %1114 = vmatprep.subr.mxu0 0.0
        %1115 = vmatpush1.msra.mxu0 0.0
        %1116 = vmatprep.subr.mxu0 0.0
        %1117 = vmatpush1.msra.mxu0 0.0
        %1118 = vmatprep.subr.mxu0 0.0
        %1119 = vmatpush1.msra.mxu0 0.0
        %1120 = vmatprep.subr.mxu0 0.0
        %1121 = vmatpush1.msra.mxu0 0.0
        %1122 = vmatprep.subr.mxu0 0.0
        %1123 = vmatpush1.msra.mxu0 0.0
        %1124 = vmatprep.subr.mxu0 0.0
        %1125 = vmatpush1.msra.mxu0 0.0
        %1126 = vmatprep.subr.mxu0 0.0
        %1127 = vmatpush1.msra.mxu0 0.0
        %1128 = vmatprep.subr.mxu0 0.0
        %1129 = vmatpush1.msra.mxu0 0.0
        %1130 = vmatprep.subr.mxu0 0.0
        %1131 = vmatpush1.msra.mxu0 0.0
        %1132 = vmatprep.subr.mxu0 0.0
        %1133 = vmatpush1.msra.mxu0 0.0
        %1134 = vmatprep.subr.mxu0 0.0
        %1135 = vmatpush1.msra.mxu0 0.0
        %1136 = vmatprep.subr.mxu0 0.0
        %1137 = vmatpush1.msra.mxu0 0.0
        %1138 = vmatprep.subr.mxu0 0.0
        %1139 = vmatpush1.msra.mxu0 0.0
        %1140 = vmatprep.subr.mxu0 0.0
        %1141 = vmatpush1.msra.mxu0 0.0
        %1142 = vmatprep.subr.mxu0 0.0
        %1143 = vmatpush1.msra.mxu0 0.0
        %1144 = vmatprep.subr.mxu0 0.0
        %1145 = vmatpush1.msra.mxu0 0.0
        %1146 = vmatprep.subr.mxu0 0.0
        %1147 = vmatpush1.msra.mxu0 0.0
        %1148 = vmatprep.subr.mxu0 0.0
        %1149 = vmatpush1.msra.mxu0 0.0
        %1150 = vmatprep.subr.mxu0 0.0
        %1151 = vmatpush1.msra.mxu0 0.0
        %1152 = vmatprep.subr.mxu0 0.0
        %1153 = vmatpush1.msra.mxu0 0.0
        %1154 = vmatprep.subr.mxu0 0.0
        %1155 = vmatpush1.msra.mxu0 0.0
        %1156 = vmatprep.subr.mxu0 0.0
        %1157 = vmatpush1.msra.mxu0 0.0
        %1158 = vmatprep.subr.mxu0 0.0
        %1159 = vmatpush1.msra.mxu0 0.0
        %1160 = vmatprep.subr.mxu0 0.0
        %1161 = vmatpush1.msra.mxu0 0.0
        %1162 = vmatprep.subr.mxu0 0.0
        %1163 = vmatpush1.msra.mxu0 0.0
        %1164 = vmatprep.subr.mxu0 0.0
        %1165 = vmatpush1.msra.mxu0 0.0
        %1166 = vmatprep.subr.mxu0 0.0
        %1167 = vmatpush1.msra.mxu0 0.0
        %1168 = vmatprep.mubr.f32.mxu0 0.0
        %1169 = vmatmul.mubr.f32.gmra.mrb[0].mxu0 %v1090
        %v1170 = vpop.f32.mrb[0].mxu0
        %v1171 = vadd.f32 0.0, %v1170
        %v1172 = vpop.f32.mrb[0].mxu0
        %v1173 = vadd.f32 0.0, %v1172
        %1174 = vmatprep.mubr.f32.mxu0 0.0
        %1175 = vmatmul.mubr.f32.gmra.mrb[0].mxu0 %v1093
        %v1176 = vpop.f32.mrb[0].mxu0
        %v1177 = vadd.f32 0.0, %v1176
        %v1178 = vpop.f32.mrb[0].mxu0
        %v1179 = vadd.f32 0.0, %v1178
        %1180 = vmatprep.mubr.f32.mxu0 0.0
        %1181 = vmatmul.mubr.f32.gmra.mrb[0].mxu0 %v1096
        %v1182 = vpop.f32.mrb[0].mxu0
        %v1183 = vadd.f32 0.0, %v1182
        %v1184 = vpop.f32.mrb[0].mxu0
        %v1185 = vadd.f32 0.0, %v1184
        %1186 = vdwg.mxu0
        %v1187 = vadd.f32 %v1071, %v1171
        %v1188 = vadd.f32 %v1072, %v1173
        %v1189 = vadd.f32 %v1073, %v1177
        %v1190 = vadd.f32 %v1074, %v1179
        %v1191 = vadd.f32 %v1075, %v1183
        %v1192 = vadd.f32 %v1076, %v1185
        %v1193 = vmax.f32 %v1187, 0.0
        %v1194 = vmax.f32 %v1188, 0.0
        %v1195 = vmax.f32 %v1189, 0.0
        %v1196 = vmax.f32 %v1190, 0.0
        %v1197 = vmax.f32 %v1191, 0.0
        %v1198 = vmax.f32 %v1192, 0.0
        %v1199 = vld [vmem:[%s3] sm:$0xff]
        %v1200 = vld [vmem:[%s3 + $0x8] sm:$0xf]
        %vm1201 = vcmask 195584
        %v1203 = vsel %vm1201, %v1199, 0
        %v1206 = vsel %vm1201, %v1200, 0
        %1208 = vmatprep.subr.mxu0 %v1194
        %1209 = vmatpush1.msra.mxu0 %v1193
        %1210 = vmatprep.subr.mxu0 %v1196
        %1211 = vmatpush1.msra.mxu0 %v1195
        %1212 = vmatprep.subr.mxu0 %v1198
        %1213 = vmatpush1.msra.mxu0 %v1197
        %1214 = vmatprep.subr.mxu0 0.0
        %1215 = vmatpush1.msra.mxu0 0.0
        %1216 = vmatprep.subr.mxu0 0.0
        %1217 = vmatpush1.msra.mxu0 0.0
        %1218 = vmatprep.subr.mxu0 0.0
        %1219 = vmatpush1.msra.mxu0 0.0
        %1220 = vmatprep.subr.mxu0 0.0
        %1221 = vmatpush1.msra.mxu0 0.0
        %1222 = vmatprep.subr.mxu0 0.0
        %1223 = vmatpush1.msra.mxu0 0.0
        %1224 = vmatprep.subr.mxu0 0.0
        %1225 = vmatpush1.msra.mxu0 0.0
        %1226 = vmatprep.subr.mxu0 0.0
        %1227 = vmatpush1.msra.mxu0 0.0
        %1228 = vmatprep.subr.mxu0 0.0
        %1229 = vmatpush1.msra.mxu0 0.0
        %1230 = vmatprep.subr.mxu0 0.0
        %1231 = vmatpush1.msra.mxu0 0.0
        %1232 = vmatprep.subr.mxu0 0.0
        %1233 = vmatpush1.msra.mxu0 0.0
        %1234 = vmatprep.subr.mxu0 0.0
        %1235 = vmatpush1.msra.mxu0 0.0
        %1236 = vmatprep.subr.mxu0 0.0
        %1237 = vmatpush1.msra.mxu0 0.0
        %1238 = vmatprep.subr.mxu0 0.0
        %1239 = vmatpush1.msra.mxu0 0.0
        %1240 = vmatprep.subr.mxu0 0.0
        %1241 = vmatpush1.msra.mxu0 0.0
        %1242 = vmatprep.subr.mxu0 0.0
        %1243 = vmatpush1.msra.mxu0 0.0
        %1244 = vmatprep.subr.mxu0 0.0
        %1245 = vmatpush1.msra.mxu0 0.0
        %1246 = vmatprep.subr.mxu0 0.0
        %1247 = vmatpush1.msra.mxu0 0.0
        %1248 = vmatprep.subr.mxu0 0.0
        %1249 = vmatpush1.msra.mxu0 0.0
        %1250 = vmatprep.subr.mxu0 0.0
        %1251 = vmatpush1.msra.mxu0 0.0
        %1252 = vmatprep.subr.mxu0 0.0
        %1253 = vmatpush1.msra.mxu0 0.0
        %1254 = vmatprep.subr.mxu0 0.0
        %1255 = vmatpush1.msra.mxu0 0.0
        %1256 = vmatprep.subr.mxu0 0.0
        %1257 = vmatpush1.msra.mxu0 0.0
        %1258 = vmatprep.subr.mxu0 0.0
        %1259 = vmatpush1.msra.mxu0 0.0
        %1260 = vmatprep.subr.mxu0 0.0
        %1261 = vmatpush1.msra.mxu0 0.0
        %1262 = vmatprep.subr.mxu0 0.0
        %1263 = vmatpush1.msra.mxu0 0.0
        %1264 = vmatprep.subr.mxu0 0.0
        %1265 = vmatpush1.msra.mxu0 0.0
        %1266 = vmatprep.subr.mxu0 0.0
        %1267 = vmatpush1.msra.mxu0 0.0
        %1268 = vmatprep.subr.mxu0 0.0
        %1269 = vmatpush1.msra.mxu0 0.0
        %1270 = vmatprep.subr.mxu0 0.0
        %1271 = vmatpush1.msra.mxu0 0.0
        %1272 = vmatprep.mubr.f32.mxu0 0.0
        %1273 = vmatmul.mubr.f32.gmra.mrb[0].mxu0 %v1203
        %v1274 = vpop.f32.mrb[0].mxu0
        %v1275 = vadd.f32 0.0, %v1274
        %v1276 = vpop.f32.mrb[0].mxu0
        %v1277 = vadd.f32 0.0, %v1276
        %1278 = vmatprep.mubr.f32.mxu0 0.0
        %1279 = vmatmul.mubr.f32.gmra.mrb[0].mxu0 %v1206
        %v1280 = vpop.f32.mrb[0].mxu0
        %v1281 = vadd.f32 0.0, %v1280
        %v1282 = vpop.f32.mrb[0].mxu0
        %v1283 = vadd.f32 0.0, %v1282
        %1284 = vdwg.mxu0
        %v1285 = vld [vmem:[%s4] sm:$0xff]
        %v1286 = vld [vmem:[%s4 + $0x8] sm:$0xf]
        %v1288 = vsel %vm1201, %v1285, 0
        %v1291 = vsel %vm1201, %v1286, 0
        %1293 = vmatprep.subr.mxu0 %v1194
        %1294 = vmatpush1.msra.mxu0 %v1193
        %1295 = vmatprep.subr.mxu0 %v1196
        %1296 = vmatpush1.msra.mxu0 %v1195
        %1297 = vmatprep.subr.mxu0 %v1198
        %1298 = vmatpush1.msra.mxu0 %v1197
        %1299 = vmatprep.subr.mxu0 0.0
        %1300 = vmatpush1.msra.mxu0 0.0
        %1301 = vmatprep.subr.mxu0 0.0
        %1302 = vmatpush1.msra.mxu0 0.0
        %1303 = vmatprep.subr.mxu0 0.0
        %1304 = vmatpush1.msra.mxu0 0.0
        %1305 = vmatprep.subr.mxu0 0.0
        %1306 = vmatpush1.msra.mxu0 0.0
        %1307 = vmatprep.subr.mxu0 0.0
        %1308 = vmatpush1.msra.mxu0 0.0
        %1309 = vmatprep.subr.mxu0 0.0
        %1310 = vmatpush1.msra.mxu0 0.0
        %1311 = vmatprep.subr.mxu0 0.0
        %1312 = vmatpush1.msra.mxu0 0.0
        %1313 = vmatprep.subr.mxu0 0.0
        %1314 = vmatpush1.msra.mxu0 0.0
        %1315 = vmatprep.subr.mxu0 0.0
        %1316 = vmatpush1.msra.mxu0 0.0
        %1317 = vmatprep.subr.mxu0 0.0
        %1318 = vmatpush1.msra.mxu0 0.0
        %1319 = vmatprep.subr.mxu0 0.0
        %1320 = vmatpush1.msra.mxu0 0.0
        %1321 = vmatprep.subr.mxu0 0.0
        %1322 = vmatpush1.msra.mxu0 0.0
        %1323 = vmatprep.subr.mxu0 0.0
        %1324 = vmatpush1.msra.mxu0 0.0
        %1325 = vmatprep.subr.mxu0 0.0
        %1326 = vmatpush1.msra.mxu0 0.0
        %1327 = vmatprep.subr.mxu0 0.0
        %1328 = vmatpush1.msra.mxu0 0.0
        %1329 = vmatprep.subr.mxu0 0.0
        %1330 = vmatpush1.msra.mxu0 0.0
        %1331 = vmatprep.subr.mxu0 0.0
        %1332 = vmatpush1.msra.mxu0 0.0
        %1333 = vmatprep.subr.mxu0 0.0
        %1334 = vmatpush1.msra.mxu0 0.0
        %1335 = vmatprep.subr.mxu0 0.0
        %1336 = vmatpush1.msra.mxu0 0.0
        %1337 = vmatprep.subr.mxu0 0.0
        %1338 = vmatpush1.msra.mxu0 0.0
        %1339 = vmatprep.subr.mxu0 0.0
        %1340 = vmatpush1.msra.mxu0 0.0
        %1341 = vmatprep.subr.mxu0 0.0
        %1342 = vmatpush1.msra.mxu0 0.0
        %1343 = vmatprep.subr.mxu0 0.0
        %1344 = vmatpush1.msra.mxu0 0.0
        %1345 = vmatprep.subr.mxu0 0.0
        %1346 = vmatpush1.msra.mxu0 0.0
        %1347 = vmatprep.subr.mxu0 0.0
        %1348 = vmatpush1.msra.mxu0 0.0
        %1349 = vmatprep.subr.mxu0 0.0
        %1350 = vmatpush1.msra.mxu0 0.0
        %1351 = vmatprep.subr.mxu0 0.0
        %1352 = vmatpush1.msra.mxu0 0.0
        %1353 = vmatprep.subr.mxu0 0.0
        %1354 = vmatpush1.msra.mxu0 0.0
        %1355 = vmatprep.subr.mxu0 0.0
        %1356 = vmatpush1.msra.mxu0 0.0
        %1357 = vmatprep.mubr.f32.mxu0 0.0
        %1358 = vmatmul.mubr.f32.gmra.mrb[0].mxu0 %v1288
        %v1359 = vpop.f32.mrb[0].mxu0
        %v1360 = vadd.f32 0.0, %v1359
        %v1361 = vpop.f32.mrb[0].mxu0
        %v1362 = vadd.f32 0.0, %v1361
        %1363 = vmatprep.mubr.f32.mxu0 0.0
        %1364 = vmatmul.mubr.f32.gmra.mrb[0].mxu0 %v1291
        %v1365 = vpop.f32.mrb[0].mxu0
        %v1366 = vadd.f32 0.0, %v1365
        %v1367 = vpop.f32.mrb[0].mxu0
        %v1368 = vadd.f32 0.0, %v1367
        %1369 = vdwg.mxu0
        %v1370 = vmax.f32 %v1275, %v1360
        %v1371 = vmax.f32 %v1277, %v1362
        %v1372 = vmax.f32 %v1281, %v1366
        %v1373 = vmax.f32 %v1283, %v1368
        %v1374 = vld [vmem:[%s5] sm:$0xff]
        %v1375 = vld [vmem:[%s5 + $0x8] sm:$0xff]
        %v1376 = vld [vmem:[%s5 + $0x10] sm:$0xff]
        %v1377 = vld [vmem:[%s5 + $0x18] sm:$0xff]
        %v1378 = vld [vmem:[%s5 + $0x20] sm:$0xff]
        %v1379 = vld [vmem:[%s5 + $0x28] sm:$0xff]
        %v1380 = vld [vmem:[%s5 + $0x30] sm:$0xff]
        %v1381 = vld [vmem:[%s5 + $0x38] sm:$0xff]
        %v1382 = vld [vmem:[%s5 + $0x40] sm:$0xff]
        %v1383 = vld [vmem:[%s5 + $0x48] sm:$0xff]
        %v1384 = vld [vmem:[%s5 + $0x50] sm:$0xff]
        %v1385 = vld [vmem:[%s5 + $0x58] sm:$0xff]
        %v1386 = vld [vmem:[%s5 + $0x60] sm:$0xff]
        %v1387 = vld [vmem:[%s5 + $0x68] sm:$0xff]
        %v1388 = vld [vmem:[%s5 + $0x70] sm:$0xff]
        %v1389 = vld [vmem:[%s5 + $0x78] sm:$0xff]
        %v1390 = vld [vmem:[%s5 + $0x80] sm:$0xff]
        %v1391 = vld [vmem:[%s5 + $0x88] sm:$0xff]
        %v1392 = vld [vmem:[%s5 + $0x90] sm:$0xff]
        %v1393 = vld [vmem:[%s5 + $0x98] sm:$0xff]
        %v1394 = vld [vmem:[%s5 + $0xa0] sm:$0xff]
        %v1395 = vld [vmem:[%s5 + $0xa8] sm:$0xff]
        %v1396 = vld [vmem:[%s5 + $0xb0] sm:$0xff]
        %v1397 = vld [vmem:[%s5 + $0xb8] sm:$0xff]
        %vm1398 = vcmask 523264
        %v1400 = vsel %vm1398, %v1371, 0
        %v1403 = vsel %vm1398, %v1373, 0
        %1405 = vmatprep.subr.mxu0 0.0
        %1406 = vmatpush1.msra.mxu0 %v1374
        %1407 = vmatprep.subr.mxu0 0.0
        %1408 = vmatpush1.msra.mxu0 %v1375
        %1409 = vmatprep.subr.mxu0 0.0
        %1410 = vmatpush1.msra.mxu0 %v1376
        %1411 = vmatprep.subr.mxu0 0.0
        %1412 = vmatpush1.msra.mxu0 %v1377
        %1413 = vmatprep.subr.mxu0 0.0
        %1414 = vmatpush1.msra.mxu0 %v1378
        %1415 = vmatprep.subr.mxu0 0.0
        %1416 = vmatpush1.msra.mxu0 %v1379
        %1417 = vmatprep.subr.mxu0 0.0
        %1418 = vmatpush1.msra.mxu0 %v1380
        %1419 = vmatprep.subr.mxu0 0.0
        %1420 = vmatpush1.msra.mxu0 %v1381
        %1421 = vmatprep.subr.mxu0 0.0
        %1422 = vmatpush1.msra.mxu0 %v1382
        %1423 = vmatprep.subr.mxu0 0.0
        %1424 = vmatpush1.msra.mxu0 %v1383
        %1425 = vmatprep.subr.mxu0 0.0
        %1426 = vmatpush1.msra.mxu0 %v1384
        %1427 = vmatprep.subr.mxu0 0.0
        %1428 = vmatpush1.msra.mxu0 %v1385
        %1429 = vmatprep.subr.mxu0 0.0
        %1430 = vmatpush1.msra.mxu0 %v1386
        %1431 = vmatprep.subr.mxu0 0.0
        %1432 = vmatpush1.msra.mxu0 %v1387
        %1433 = vmatprep.subr.mxu0 0.0
        %1434 = vmatpush1.msra.mxu0 %v1388
        %1435 = vmatprep.subr.mxu0 0.0
        %1436 = vmatpush1.msra.mxu0 %v1389
        %1437 = vmatprep.subr.mxu0 0.0
        %1438 = vmatpush1.msra.mxu0 %v1390
        %1439 = vmatprep.subr.mxu0 0.0
        %1440 = vmatpush1.msra.mxu0 %v1391
        %1441 = vmatprep.subr.mxu0 0.0
        %1442 = vmatpush1.msra.mxu0 %v1392
        %1443 = vmatprep.subr.mxu0 0.0
        %1444 = vmatpush1.msra.mxu0 %v1393
        %1445 = vmatprep.subr.mxu0 0.0
        %1446 = vmatpush1.msra.mxu0 %v1394
        %1447 = vmatprep.subr.mxu0 0.0
        %1448 = vmatpush1.msra.mxu0 %v1395
        %1449 = vmatprep.subr.mxu0 0.0
        %1450 = vmatpush1.msra.mxu0 %v1396
        %1451 = vmatprep.subr.mxu0 0.0
        %1452 = vmatpush1.msra.mxu0 %v1397
        %1453 = vmatprep.subr.mxu0 0.0
        %1454 = vmatpush1.msra.mxu0 0.0
        %1455 = vmatprep.subr.mxu0 0.0
        %1456 = vmatpush1.msra.mxu0 0.0
        %1457 = vmatprep.subr.mxu0 0.0
        %1458 = vmatpush1.msra.mxu0 0.0
        %1459 = vmatprep.subr.mxu0 0.0
        %1460 = vmatpush1.msra.mxu0 0.0
        %1461 = vmatprep.subr.mxu0 0.0
        %1462 = vmatpush1.msra.mxu0 0.0
        %1463 = vmatprep.subr.mxu0 0.0
        %1464 = vmatpush1.msra.mxu0 0.0
        %1465 = vmatprep.subr.mxu0 0.0
        %1466 = vmatpush1.msra.mxu0 0.0
        %1467 = vmatprep.subr.mxu0 0.0
        %1468 = vmatpush1.msra.mxu0 0.0
        %1469 = vmatprep.mubr.f32.mxu0 %v1400
        %1470 = vmatmul.mubr.f32.gmra.mrb[0].mxu0 %v1370
        %v1471 = vpop.f32.mrb[0].mxu0
        %v1472 = vadd.f32 0.0, %v1471
        %v1473 = vpop.f32.mrb[0].mxu0
        %1474 = vmatprep.mubr.f32.mxu0 %v1403
        %1475 = vmatmul.mubr.f32.gmra.mrb[0].mxu0 %v1372
        %v1476 = vpop.f32.mrb[0].mxu0
        %v1477 = vadd.f32 0.0, %v1476
        %v1478 = vpop.f32.mrb[0].mxu0
        %1479 = vdwg.mxu0
        %v1480 = vld [vmem:[%s6] sm:$0xff]
        %v1481 = vld [vmem:[%s6 + $0x8] sm:$0xff]
        %v1482 = vld [vmem:[%s6 + $0x10] sm:$0xff]
        %v1483 = vld [vmem:[%s6 + $0x18] sm:$0xff]
        %v1484 = vld [vmem:[%s6 + $0x20] sm:$0xff]
        %v1485 = vld [vmem:[%s6 + $0x28] sm:$0xff]
        %v1486 = vld [vmem:[%s6 + $0x30] sm:$0xff]
        %v1487 = vld [vmem:[%s6 + $0x38] sm:$0xff]
        %v1488 = vld [vmem:[%s6 + $0x40] sm:$0xff]
        %v1489 = vld [vmem:[%s6 + $0x48] sm:$0xff]
        %v1490 = vld [vmem:[%s6 + $0x50] sm:$0xff]
        %v1491 = vld [vmem:[%s6 + $0x58] sm:$0xff]
        %v1492 = vld [vmem:[%s6 + $0x60] sm:$0xff]
        %v1493 = vld [vmem:[%s6 + $0x68] sm:$0xff]
        %v1494 = vld [vmem:[%s6 + $0x70] sm:$0xff]
        %v1495 = vld [vmem:[%s6 + $0x78] sm:$0xff]
        %v1496 = vld [vmem:[%s6 + $0x80] sm:$0xff]
        %v1497 = vld [vmem:[%s6 + $0x88] sm:$0xff]
        %v1498 = vld [vmem:[%s6 + $0x90] sm:$0xff]
        %v1499 = vld [vmem:[%s6 + $0x98] sm:$0xff]
        %v1500 = vld [vmem:[%s6 + $0xa0] sm:$0xff]
        %v1501 = vld [vmem:[%s6 + $0xa8] sm:$0xff]
        %v1502 = vld [vmem:[%s6 + $0xb0] sm:$0xff]
        %v1503 = vld [vmem:[%s6 + $0xb8] sm:$0xff]
        %1504 = vmatprep.subr.mxu0 0.0
        %1505 = vmatpush1.msra.mxu0 %v1480
        %1506 = vmatprep.subr.mxu0 0.0
        %1507 = vmatpush1.msra.mxu0 %v1481
        %1508 = vmatprep.subr.mxu0 0.0
        %1509 = vmatpush1.msra.mxu0 %v1482
        %1510 = vmatprep.subr.mxu0 0.0
        %1511 = vmatpush1.msra.mxu0 %v1483
        %1512 = vmatprep.subr.mxu0 0.0
        %1513 = vmatpush1.msra.mxu0 %v1484
        %1514 = vmatprep.subr.mxu0 0.0
        %1515 = vmatpush1.msra.mxu0 %v1485
        %1516 = vmatprep.subr.mxu0 0.0
        %1517 = vmatpush1.msra.mxu0 %v1486
        %1518 = vmatprep.subr.mxu0 0.0
        %1519 = vmatpush1.msra.mxu0 %v1487
        %1520 = vmatprep.subr.mxu0 0.0
        %1521 = vmatpush1.msra.mxu0 %v1488
        %1522 = vmatprep.subr.mxu0 0.0
        %1523 = vmatpush1.msra.mxu0 %v1489
        %1524 = vmatprep.subr.mxu0 0.0
        %1525 = vmatpush1.msra.mxu0 %v1490
        %1526 = vmatprep.subr.mxu0 0.0
        %1527 = vmatpush1.msra.mxu0 %v1491
        %1528 = vmatprep.subr.mxu0 0.0
        %1529 = vmatpush1.msra.mxu0 %v1492
        %1530 = vmatprep.subr.mxu0 0.0
        %1531 = vmatpush1.msra.mxu0 %v1493
        %1532 = vmatprep.subr.mxu0 0.0
        %1533 = vmatpush1.msra.mxu0 %v1494
        %1534 = vmatprep.subr.mxu0 0.0
        %1535 = vmatpush1.msra.mxu0 %v1495
        %1536 = vmatprep.subr.mxu0 0.0
        %1537 = vmatpush1.msra.mxu0 %v1496
        %1538 = vmatprep.subr.mxu0 0.0
        %1539 = vmatpush1.msra.mxu0 %v1497
        %1540 = vmatprep.subr.mxu0 0.0
        %1541 = vmatpush1.msra.mxu0 %v1498
        %1542 = vmatprep.subr.mxu0 0.0
        %1543 = vmatpush1.msra.mxu0 %v1499
        %1544 = vmatprep.subr.mxu0 0.0
        %1545 = vmatpush1.msra.mxu0 %v1500
        %1546 = vmatprep.subr.mxu0 0.0
        %1547 = vmatpush1.msra.mxu0 %v1501
        %1548 = vmatprep.subr.mxu0 0.0
        %1549 = vmatpush1.msra.mxu0 %v1502
        %1550 = vmatprep.subr.mxu0 0.0
        %1551 = vmatpush1.msra.mxu0 %v1503
        %1552 = vmatprep.subr.mxu0 0.0
        %1553 = vmatpush1.msra.mxu0 0.0
        %1554 = vmatprep.subr.mxu0 0.0
        %1555 = vmatpush1.msra.mxu0 0.0
        %1556 = vmatprep.subr.mxu0 0.0
        %1557 = vmatpush1.msra.mxu0 0.0
        %1558 = vmatprep.subr.mxu0 0.0
        %1559 = vmatpush1.msra.mxu0 0.0
        %1560 = vmatprep.subr.mxu0 0.0
        %1561 = vmatpush1.msra.mxu0 0.0
        %1562 = vmatprep.subr.mxu0 0.0
        %1563 = vmatpush1.msra.mxu0 0.0
        %1564 = vmatprep.subr.mxu0 0.0
        %1565 = vmatpush1.msra.mxu0 0.0
        %1566 = vmatprep.subr.mxu0 0.0
        %1567 = vmatpush1.msra.mxu0 0.0
        %1568 = vmatprep.mubr.f32.mxu0 %v1400
        %1569 = vmatmul.mubr.f32.gmra.mrb[0].mxu0 %v1370
        %v1570 = vpop.f32.mrb[0].mxu0
        %v1571 = vadd.f32 0.0, %v1570
        %v1572 = vpop.f32.mrb[0].mxu0
        %1573 = vmatprep.mubr.f32.mxu0 %v1403
        %1574 = vmatmul.mubr.f32.gmra.mrb[0].mxu0 %v1372
        %v1575 = vpop.f32.mrb[0].mxu0
        %v1576 = vadd.f32 0.0, %v1575
        %v1577 = vpop.f32.mrb[0].mxu0
        %1578 = vdwg.mxu0
        %v1579 = vmax.f32 %v1472, %v1571
        %v1580 = vmax.f32 %v1477, %v1576
        %v1581 = vld [vmem:[%s8] sm:$0x1]
        %v1583 = vlaneseq
        %v1584 = vshrl.u32 %v1583, 7
        %v1585 = vsub.s32 0, %v1584
        %v1586 = vrot.slane %v1581, %v1585
        %v1588 = vld [vmem:[%s7] sm:$0xff]
        %v1589 = vld [vmem:[%s7 + $0x8] sm:$0xff]
        %v1590 = vld [vmem:[%s7 + $0x10] sm:$0xff]
        %v1591 = vld [vmem:[%s7 + $0x18] sm:$0xff]
        %v1592 = vld [vmem:[%s7 + $0x20] sm:$0xff]
        %v1593 = vld [vmem:[%s7 + $0x28] sm:$0xff]
        %v1594 = vld [vmem:[%s7 + $0x30] sm:$0xff]
        %v1595 = vld [vmem:[%s7 + $0x38] sm:$0xff]
        %v1596 = vld [vmem:[%s7 + $0x40] sm:$0xff]
        %v1597 = vld [vmem:[%s7 + $0x48] sm:$0xff]
        %v1598 = vld [vmem:[%s7 + $0x50] sm:$0xff]
        %v1599 = vld [vmem:[%s7 + $0x58] sm:$0xff]
        %vm1600 = vcmask 785408
        %v1602 = vsel %vm1600, %v1579, 0
        %1604 = vmatprep.subr.mxu0 0.0
        %1605 = vmatpush1.msra.mxu0 %v1588
        %1606 = vmatprep.subr.mxu0 0.0
        %1607 = vmatpush1.msra.mxu0 %v1589
        %1608 = vmatprep.subr.mxu0 0.0
        %1609 = vmatpush1.msra.mxu0 %v1590
        %1610 = vmatprep.subr.mxu0 0.0
        %1611 = vmatpush1.msra.mxu0 %v1591
        %1612 = vmatprep.subr.mxu0 0.0
        %1613 = vmatpush1.msra.mxu0 %v1592
        %1614 = vmatprep.subr.mxu0 0.0
        %1615 = vmatpush1.msra.mxu0 %v1593
        %1616 = vmatprep.subr.mxu0 0.0
        %1617 = vmatpush1.msra.mxu0 %v1594
        %1618 = vmatprep.subr.mxu0 0.0
        %1619 = vmatpush1.msra.mxu0 %v1595
        %1620 = vmatprep.subr.mxu0 0.0
        %1621 = vmatpush1.msra.mxu0 %v1596
        %1622 = vmatprep.subr.mxu0 0.0
        %1623 = vmatpush1.msra.mxu0 %v1597
        %1624 = vmatprep.subr.mxu0 0.0
        %1625 = vmatpush1.msra.mxu0 %v1598
        %1626 = vmatprep.subr.mxu0 0.0
        %1627 = vmatpush1.msra.mxu0 %v1599
        %1628 = vmatprep.subr.mxu0 0.0
        %1629 = vmatpush1.msra.mxu0 0.0
        %1630 = vmatprep.subr.mxu0 0.0
        %1631 = vmatpush1.msra.mxu0 0.0
        %1632 = vmatprep.subr.mxu0 0.0
        %1633 = vmatpush1.msra.mxu0 0.0
        %1634 = vmatprep.subr.mxu0 0.0
        %1635 = vmatpush1.msra.mxu0 0.0
        %1636 = vmatprep.subr.mxu0 0.0
        %1637 = vmatpush1.msra.mxu0 0.0
        %1638 = vmatprep.subr.mxu0 0.0
        %1639 = vmatpush1.msra.mxu0 0.0
        %1640 = vmatprep.subr.mxu0 0.0
        %1641 = vmatpush1.msra.mxu0 0.0
        %1642 = vmatprep.subr.mxu0 0.0
        %1643 = vmatpush1.msra.mxu0 0.0
        %1644 = vmatprep.subr.mxu0 0.0
        %1645 = vmatpush1.msra.mxu0 0.0
        %1646 = vmatprep.subr.mxu0 0.0
        %1647 = vmatpush1.msra.mxu0 0.0
        %1648 = vmatprep.subr.mxu0 0.0
        %1649 = vmatpush1.msra.mxu0 0.0
        %1650 = vmatprep.subr.mxu0 0.0
        %1651 = vmatpush1.msra.mxu0 0.0
        %1652 = vmatprep.subr.mxu0 0.0
        %1653 = vmatpush1.msra.mxu0 0.0
        %1654 = vmatprep.subr.mxu0 0.0
        %1655 = vmatpush1.msra.mxu0 0.0
        %1656 = vmatprep.subr.mxu0 0.0
        %1657 = vmatpush1.msra.mxu0 0.0
        %1658 = vmatprep.subr.mxu0 0.0
        %1659 = vmatpush1.msra.mxu0 0.0
        %1660 = vmatprep.subr.mxu0 0.0
        %1661 = vmatpush1.msra.mxu0 0.0
        %1662 = vmatprep.subr.mxu0 0.0
        %1663 = vmatpush1.msra.mxu0 0.0
        %1664 = vmatprep.subr.mxu0 0.0
        %1665 = vmatpush1.msra.mxu0 0.0
        %1666 = vmatprep.subr.mxu0 0.0
        %1667 = vmatpush1.msra.mxu0 0.0
        %1668 = vmatprep.mubr.f32.mxu0 0.0
        %1669 = vmatmul.mubr.f32.gmra.mrb[0].mxu0 %v1602
        %v1670 = vpop.f32.mrb[0].mxu0
        %v1671 = vadd.f32 0.0, %v1670
        %v1672 = vpop.f32.mrb[0].mxu0
        %1673 = vdwg.mxu0
        %v1674 = vadd.f32 %v1586, %v1671
        %s1675 = scalar_lea.vmem %s7, 96
        %v1676 = vld [vmem:[%s1675] sm:$0xff]
        %v1677 = vld [vmem:[%s1675 + $0x8] sm:$0xff]
        %v1678 = vld [vmem:[%s1675 + $0x10] sm:$0xff]
        %v1679 = vld [vmem:[%s1675 + $0x18] sm:$0xff]
        %v1680 = vld [vmem:[%s1675 + $0x20] sm:$0xff]
        %v1681 = vld [vmem:[%s1675 + $0x28] sm:$0xff]
        %v1682 = vld [vmem:[%s1675 + $0x30] sm:$0xff]
        %v1683 = vld [vmem:[%s1675 + $0x38] sm:$0xff]
        %v1684 = vld [vmem:[%s1675 + $0x40] sm:$0xff]
        %v1685 = vld [vmem:[%s1675 + $0x48] sm:$0xff]
        %v1686 = vld [vmem:[%s1675 + $0x50] sm:$0xff]
        %v1687 = vld [vmem:[%s1675 + $0x58] sm:$0xff]
        %vm1689 = vcmask 1046528
        %v1690 = vrot.slane %v1579, 1
        %v1691 = vrot.slane %v1580, 1
        %v1692 = vsel %vm1689, %v1690, %v1691
        %v1693 = vsel %vm1600, %v1692, 0
        %1695 = vmatprep.subr.mxu0 0.0
        %1696 = vmatpush1.msra.mxu0 %v1676
        %1697 = vmatprep.subr.mxu0 0.0
        %1698 = vmatpush1.msra.mxu0 %v1677
        %1699 = vmatprep.subr.mxu0 0.0
        %1700 = vmatpush1.msra.mxu0 %v1678
        %1701 = vmatprep.subr.mxu0 0.0
        %1702 = vmatpush1.msra.mxu0 %v1679
        %1703 = vmatprep.subr.mxu0 0.0
        %1704 = vmatpush1.msra.mxu0 %v1680
        %1705 = vmatprep.subr.mxu0 0.0
        %1706 = vmatpush1.msra.mxu0 %v1681
        %1707 = vmatprep.subr.mxu0 0.0
        %1708 = vmatpush1.msra.mxu0 %v1682
        %1709 = vmatprep.subr.mxu0 0.0
        %1710 = vmatpush1.msra.mxu0 %v1683
        %1711 = vmatprep.subr.mxu0 0.0
        %1712 = vmatpush1.msra.mxu0 %v1684
        %1713 = vmatprep.subr.mxu0 0.0
        %1714 = vmatpush1.msra.mxu0 %v1685
        %1715 = vmatprep.subr.mxu0 0.0
        %1716 = vmatpush1.msra.mxu0 %v1686
        %1717 = vmatprep.subr.mxu0 0.0
        %1718 = vmatpush1.msra.mxu0 %v1687
        %1719 = vmatprep.subr.mxu0 0.0
        %1720 = vmatpush1.msra.mxu0 0.0
        %1721 = vmatprep.subr.mxu0 0.0
        %1722 = vmatpush1.msra.mxu0 0.0
        %1723 = vmatprep.subr.mxu0 0.0
        %1724 = vmatpush1.msra.mxu0 0.0
        %1725 = vmatprep.subr.mxu0 0.0
        %1726 = vmatpush1.msra.mxu0 0.0
        %1727 = vmatprep.subr.mxu0 0.0
        %1728 = vmatpush1.msra.mxu0 0.0
        %1729 = vmatprep.subr.mxu0 0.0
        %1730 = vmatpush1.msra.mxu0 0.0
        %1731 = vmatprep.subr.mxu0 0.0
        %1732 = vmatpush1.msra.mxu0 0.0
        %1733 = vmatprep.subr.mxu0 0.0
        %1734 = vmatpush1.msra.mxu0 0.0
        %1735 = vmatprep.subr.mxu0 0.0
        %1736 = vmatpush1.msra.mxu0 0.0
        %1737 = vmatprep.subr.mxu0 0.0
        %1738 = vmatpush1.msra.mxu0 0.0
        %1739 = vmatprep.subr.mxu0 0.0
        %1740 = vmatpush1.msra.mxu0 0.0
        %1741 = vmatprep.subr.mxu0 0.0
        %1742 = vmatpush1.msra.mxu0 0.0
        %1743 = vmatprep.subr.mxu0 0.0
        %1744 = vmatpush1.msra.mxu0 0.0
        %1745 = vmatprep.subr.mxu0 0.0
        %1746 = vmatpush1.msra.mxu0 0.0
        %1747 = vmatprep.subr.mxu0 0.0
        %1748 = vmatpush1.msra.mxu0 0.0
        %1749 = vmatprep.subr.mxu0 0.0
        %1750 = vmatpush1.msra.mxu0 0.0
        %1751 = vmatprep.subr.mxu0 0.0
        %1752 = vmatpush1.msra.mxu0 0.0
        %1753 = vmatprep.subr.mxu0 0.0
        %1754 = vmatpush1.msra.mxu0 0.0
        %1755 = vmatprep.subr.mxu0 0.0
        %1756 = vmatpush1.msra.mxu0 0.0
        %1757 = vmatprep.subr.mxu0 0.0
        %1758 = vmatpush1.msra.mxu0 0.0
        %1759 = vmatprep.mubr.f32.mxu0 0.0
        %1760 = vmatmul.mubr.f32.gmra.mrb[0].mxu0 %v1693
        %v1761 = vpop.f32.mrb[0].mxu0
        %v1762 = vadd.f32 0.0, %v1761
        %v1763 = vpop.f32.mrb[0].mxu0
        %1764 = vdwg.mxu0
        %v1765 = vadd.f32 %v1674, %v1762
        %s1766 = scalar_lea.vmem %s7, 192
        %v1767 = vld [vmem:[%s1766] sm:$0xff]
        %v1768 = vld [vmem:[%s1766 + $0x8] sm:$0xff]
        %v1769 = vld [vmem:[%s1766 + $0x10] sm:$0xff]
        %v1770 = vld [vmem:[%s1766 + $0x18] sm:$0xff]
        %v1771 = vld [vmem:[%s1766 + $0x20] sm:$0xff]
        %v1772 = vld [vmem:[%s1766 + $0x28] sm:$0xff]
        %v1773 = vld [vmem:[%s1766 + $0x30] sm:$0xff]
        %v1774 = vld [vmem:[%s1766 + $0x38] sm:$0xff]
        %v1775 = vld [vmem:[%s1766 + $0x40] sm:$0xff]
        %v1776 = vld [vmem:[%s1766 + $0x48] sm:$0xff]
        %v1777 = vld [vmem:[%s1766 + $0x50] sm:$0xff]
        %v1778 = vld [vmem:[%s1766 + $0x58] sm:$0xff]
        %vm1779 = vcmask 1045504
        %v1780 = vrot.slane %v1579, 2
        %v1781 = vrot.slane %v1580, 2
        %v1782 = vsel %vm1779, %v1780, %v1781
        %v1783 = vsel %vm1600, %v1782, 0
        %1785 = vmatprep.subr.mxu0 0.0
        %1786 = vmatpush1.msra.mxu0 %v1767
        %1787 = vmatprep.subr.mxu0 0.0
        %1788 = vmatpush1.msra.mxu0 %v1768
        %1789 = vmatprep.subr.mxu0 0.0
        %1790 = vmatpush1.msra.mxu0 %v1769
        %1791 = vmatprep.subr.mxu0 0.0
        %1792 = vmatpush1.msra.mxu0 %v1770
        %1793 = vmatprep.subr.mxu0 0.0
        %1794 = vmatpush1.msra.mxu0 %v1771
        %1795 = vmatprep.subr.mxu0 0.0
        %1796 = vmatpush1.msra.mxu0 %v1772
        %1797 = vmatprep.subr.mxu0 0.0
        %1798 = vmatpush1.msra.mxu0 %v1773
        %1799 = vmatprep.subr.mxu0 0.0
        %1800 = vmatpush1.msra.mxu0 %v1774
        %1801 = vmatprep.subr.mxu0 0.0
        %1802 = vmatpush1.msra.mxu0 %v1775
        %1803 = vmatprep.subr.mxu0 0.0
        %1804 = vmatpush1.msra.mxu0 %v1776
        %1805 = vmatprep.subr.mxu0 0.0
        %1806 = vmatpush1.msra.mxu0 %v1777
        %1807 = vmatprep.subr.mxu0 0.0
        %1808 = vmatpush1.msra.mxu0 %v1778
        %1809 = vmatprep.subr.mxu0 0.0
        %1810 = vmatpush1.msra.mxu0 0.0
        %1811 = vmatprep.subr.mxu0 0.0
        %1812 = vmatpush1.msra.mxu0 0.0
        %1813 = vmatprep.subr.mxu0 0.0
        %1814 = vmatpush1.msra.mxu0 0.0
        %1815 = vmatprep.subr.mxu0 0.0
        %1816 = vmatpush1.msra.mxu0 0.0
        %1817 = vmatprep.subr.mxu0 0.0
        %1818 = vmatpush1.msra.mxu0 0.0
        %1819 = vmatprep.subr.mxu0 0.0
        %1820 = vmatpush1.msra.mxu0 0.0
        %1821 = vmatprep.subr.mxu0 0.0
        %1822 = vmatpush1.msra.mxu0 0.0
        %1823 = vmatprep.subr.mxu0 0.0
        %1824 = vmatpush1.msra.mxu0 0.0
        %1825 = vmatprep.subr.mxu0 0.0
        %1826 = vmatpush1.msra.mxu0 0.0
        %1827 = vmatprep.subr.mxu0 0.0
        %1828 = vmatpush1.msra.mxu0 0.0
        %1829 = vmatprep.subr.mxu0 0.0
        %1830 = vmatpush1.msra.mxu0 0.0
        %1831 = vmatprep.subr.mxu0 0.0
        %1832 = vmatpush1.msra.mxu0 0.0
        %1833 = vmatprep.subr.mxu0 0.0
        %1834 = vmatpush1.msra.mxu0 0.0
        %1835 = vmatprep.subr.mxu0 0.0
        %1836 = vmatpush1.msra.mxu0 0.0
        %1837 = vmatprep.subr.mxu0 0.0
        %1838 = vmatpush1.msra.mxu0 0.0
        %1839 = vmatprep.subr.mxu0 0.0
        %1840 = vmatpush1.msra.mxu0 0.0
        %1841 = vmatprep.subr.mxu0 0.0
        %1842 = vmatpush1.msra.mxu0 0.0
        %1843 = vmatprep.subr.mxu0 0.0
        %1844 = vmatpush1.msra.mxu0 0.0
        %1845 = vmatprep.subr.mxu0 0.0
        %1846 = vmatpush1.msra.mxu0 0.0
        %1847 = vmatprep.subr.mxu0 0.0
        %1848 = vmatpush1.msra.mxu0 0.0
        %1849 = vmatprep.mubr.f32.mxu0 0.0
        %1850 = vmatmul.mubr.f32.gmra.mrb[0].mxu0 %v1783
        %v1851 = vpop.f32.mrb[0].mxu0
        %v1852 = vadd.f32 0.0, %v1851
        %v1853 = vpop.f32.mrb[0].mxu0
        %1854 = vdwg.mxu0
        %v1855 = vadd.f32 %v1765, %v1852
        %s1856 = scalar_lea.vmem %s7, 288
        %v1857 = vld [vmem:[%s1856] sm:$0xff]
        %v1858 = vld [vmem:[%s1856 + $0x8] sm:$0xff]
        %v1859 = vld [vmem:[%s1856 + $0x10] sm:$0xff]
        %v1860 = vld [vmem:[%s1856 + $0x18] sm:$0xff]
        %v1861 = vld [vmem:[%s1856 + $0x20] sm:$0xff]
        %v1862 = vld [vmem:[%s1856 + $0x28] sm:$0xff]
        %v1863 = vld [vmem:[%s1856 + $0x30] sm:$0xff]
        %v1864 = vld [vmem:[%s1856 + $0x38] sm:$0xff]
        %v1865 = vld [vmem:[%s1856 + $0x40] sm:$0xff]
        %v1866 = vld [vmem:[%s1856 + $0x48] sm:$0xff]
        %v1867 = vld [vmem:[%s1856 + $0x50] sm:$0xff]
        %v1868 = vld [vmem:[%s1856 + $0x58] sm:$0xff]
        %vm1869 = vcmask 1044480
        %v1870 = vrot.slane %v1579, 3
        %v1871 = vrot.slane %v1580, 3
        %v1872 = vsel %vm1869, %v1870, %v1871
        %v1873 = vsel %vm1600, %v1872, 0
        %1875 = vmatprep.subr.mxu0 0.0
        %1876 = vmatpush1.msra.mxu0 %v1857
        %1877 = vmatprep.subr.mxu0 0.0
        %1878 = vmatpush1.msra.mxu0 %v1858
        %1879 = vmatprep.subr.mxu0 0.0
        %1880 = vmatpush1.msra.mxu0 %v1859
        %1881 = vmatprep.subr.mxu0 0.0
        %1882 = vmatpush1.msra.mxu0 %v1860
        %1883 = vmatprep.subr.mxu0 0.0
        %1884 = vmatpush1.msra.mxu0 %v1861
        %1885 = vmatprep.subr.mxu0 0.0
        %1886 = vmatpush1.msra.mxu0 %v1862
        %1887 = vmatprep.subr.mxu0 0.0
        %1888 = vmatpush1.msra.mxu0 %v1863
        %1889 = vmatprep.subr.mxu0 0.0
        %1890 = vmatpush1.msra.mxu0 %v1864
        %1891 = vmatprep.subr.mxu0 0.0
        %1892 = vmatpush1.msra.mxu0 %v1865
        %1893 = vmatprep.subr.mxu0 0.0
        %1894 = vmatpush1.msra.mxu0 %v1866
        %1895 = vmatprep.subr.mxu0 0.0
        %1896 = vmatpush1.msra.mxu0 %v1867
        %1897 = vmatprep.subr.mxu0 0.0
        %1898 = vmatpush1.msra.mxu0 %v1868
        %1899 = vmatprep.subr.mxu0 0.0
        %1900 = vmatpush1.msra.mxu0 0.0
        %1901 = vmatprep.subr.mxu0 0.0
        %1902 = vmatpush1.msra.mxu0 0.0
        %1903 = vmatprep.subr.mxu0 0.0
        %1904 = vmatpush1.msra.mxu0 0.0
        %1905 = vmatprep.subr.mxu0 0.0
        %1906 = vmatpush1.msra.mxu0 0.0
        %1907 = vmatprep.subr.mxu0 0.0
        %1908 = vmatpush1.msra.mxu0 0.0
        %1909 = vmatprep.subr.mxu0 0.0
        %1910 = vmatpush1.msra.mxu0 0.0
        %1911 = vmatprep.subr.mxu0 0.0
        %1912 = vmatpush1.msra.mxu0 0.0
        %1913 = vmatprep.subr.mxu0 0.0
        %1914 = vmatpush1.msra.mxu0 0.0
        %1915 = vmatprep.subr.mxu0 0.0
        %1916 = vmatpush1.msra.mxu0 0.0
        %1917 = vmatprep.subr.mxu0 0.0
        %1918 = vmatpush1.msra.mxu0 0.0
        %1919 = vmatprep.subr.mxu0 0.0
        %1920 = vmatpush1.msra.mxu0 0.0
        %1921 = vmatprep.subr.mxu0 0.0
        %1922 = vmatpush1.msra.mxu0 0.0
        %1923 = vmatprep.subr.mxu0 0.0
        %1924 = vmatpush1.msra.mxu0 0.0
        %1925 = vmatprep.subr.mxu0 0.0
        %1926 = vmatpush1.msra.mxu0 0.0
        %1927 = vmatprep.subr.mxu0 0.0
        %1928 = vmatpush1.msra.mxu0 0.0
        %1929 = vmatprep.subr.mxu0 0.0
        %1930 = vmatpush1.msra.mxu0 0.0
        %1931 = vmatprep.subr.mxu0 0.0
        %1932 = vmatpush1.msra.mxu0 0.0
        %1933 = vmatprep.subr.mxu0 0.0
        %1934 = vmatpush1.msra.mxu0 0.0
        %1935 = vmatprep.subr.mxu0 0.0
        %1936 = vmatpush1.msra.mxu0 0.0
        %1937 = vmatprep.subr.mxu0 0.0
        %1938 = vmatpush1.msra.mxu0 0.0
        %1939 = vmatprep.mubr.f32.mxu0 0.0
        %1940 = vmatmul.mubr.f32.gmra.mrb[0].mxu0 %v1873
        %v1941 = vpop.f32.mrb[0].mxu0
        %v1942 = vadd.f32 0.0, %v1941
        %v1943 = vpop.f32.mrb[0].mxu0
        %1944 = vdwg.mxu0
        %v1945 = vadd.f32 %v1855, %v1942
        %s1946 = scalar_lea.vmem %s7, 384
        %v1947 = vld [vmem:[%s1946] sm:$0xff]
        %v1948 = vld [vmem:[%s1946 + $0x8] sm:$0xff]
        %v1949 = vld [vmem:[%s1946 + $0x10] sm:$0xff]
        %v1950 = vld [vmem:[%s1946 + $0x18] sm:$0xff]
        %v1951 = vld [vmem:[%s1946 + $0x20] sm:$0xff]
        %v1952 = vld [vmem:[%s1946 + $0x28] sm:$0xff]
        %v1953 = vld [vmem:[%s1946 + $0x30] sm:$0xff]
        %v1954 = vld [vmem:[%s1946 + $0x38] sm:$0xff]
        %v1955 = vld [vmem:[%s1946 + $0x40] sm:$0xff]
        %v1956 = vld [vmem:[%s1946 + $0x48] sm:$0xff]
        %v1957 = vld [vmem:[%s1946 + $0x50] sm:$0xff]
        %v1958 = vld [vmem:[%s1946 + $0x58] sm:$0xff]
        %v1959 = vrot.slane %v1579, 4
        %v1960 = vrot.slane %v1580, 4
        %v1961 = vsel %vm633, %v1959, %v1960
        %v1962 = vsel %vm1600, %v1961, 0
        %1964 = vmatprep.subr.mxu0 0.0
        %1965 = vmatpush1.msra.mxu0 %v1947
        %1966 = vmatprep.subr.mxu0 0.0
        %1967 = vmatpush1.msra.mxu0 %v1948
        %1968 = vmatprep.subr.mxu0 0.0
        %1969 = vmatpush1.msra.mxu0 %v1949
        %1970 = vmatprep.subr.mxu0 0.0
        %1971 = vmatpush1.msra.mxu0 %v1950
        %1972 = vmatprep.subr.mxu0 0.0
        %1973 = vmatpush1.msra.mxu0 %v1951
        %1974 = vmatprep.subr.mxu0 0.0
        %1975 = vmatpush1.msra.mxu0 %v1952
        %1976 = vmatprep.subr.mxu0 0.0
        %1977 = vmatpush1.msra.mxu0 %v1953
        %1978 = vmatprep.subr.mxu0 0.0
        %1979 = vmatpush1.msra.mxu0 %v1954
        %1980 = vmatprep.subr.mxu0 0.0
        %1981 = vmatpush1.msra.mxu0 %v1955
        %1982 = vmatprep.subr.mxu0 0.0
        %1983 = vmatpush1.msra.mxu0 %v1956
        %1984 = vmatprep.subr.mxu0 0.0
        %1985 = vmatpush1.msra.mxu0 %v1957
        %1986 = vmatprep.subr.mxu0 0.0
        %1987 = vmatpush1.msra.mxu0 %v1958
        %1988 = vmatprep.subr.mxu0 0.0
        %1989 = vmatpush1.msra.mxu0 0.0
        %1990 = vmatprep.subr.mxu0 0.0
        %1991 = vmatpush1.msra.mxu0 0.0
        %1992 = vmatprep.subr.mxu0 0.0
        %1993 = vmatpush1.msra.mxu0 0.0
        %1994 = vmatprep.subr.mxu0 0.0
        %1995 = vmatpush1.msra.mxu0 0.0
        %1996 = vmatprep.subr.mxu0 0.0
        %1997 = vmatpush1.msra.mxu0 0.0
        %1998 = vmatprep.subr.mxu0 0.0
        %1999 = vmatpush1.msra.mxu0 0.0
        %2000 = vmatprep.subr.mxu0 0.0
        %2001 = vmatpush1.msra.mxu0 0.0
        %2002 = vmatprep.subr.mxu0 0.0
        %2003 = vmatpush1.msra.mxu0 0.0
        %2004 = vmatprep.subr.mxu0 0.0
        %2005 = vmatpush1.msra.mxu0 0.0
        %2006 = vmatprep.subr.mxu0 0.0
        %2007 = vmatpush1.msra.mxu0 0.0
        %2008 = vmatprep.subr.mxu0 0.0
        %2009 = vmatpush1.msra.mxu0 0.0
        %2010 = vmatprep.subr.mxu0 0.0
        %2011 = vmatpush1.msra.mxu0 0.0
        %2012 = vmatprep.subr.mxu0 0.0
        %2013 = vmatpush1.msra.mxu0 0.0
        %2014 = vmatprep.subr.mxu0 0.0
        %2015 = vmatpush1.msra.mxu0 0.0
        %2016 = vmatprep.subr.mxu0 0.0
        %2017 = vmatpush1.msra.mxu0 0.0
        %2018 = vmatprep.subr.mxu0 0.0
        %2019 = vmatpush1.msra.mxu0 0.0
        %2020 = vmatprep.subr.mxu0 0.0
        %2021 = vmatpush1.msra.mxu0 0.0
        %2022 = vmatprep.subr.mxu0 0.0
        %2023 = vmatpush1.msra.mxu0 0.0
        %2024 = vmatprep.subr.mxu0 0.0
        %2025 = vmatpush1.msra.mxu0 0.0
        %2026 = vmatprep.subr.mxu0 0.0
        %2027 = vmatpush1.msra.mxu0 0.0
        %2028 = vmatprep.mubr.f32.mxu0 0.0
        %2029 = vmatmul.mubr.f32.gmra.mrb[0].mxu0 %v1962
        %v2030 = vpop.f32.mrb[0].mxu0
        %v2031 = vadd.f32 0.0, %v2030
        %v2032 = vpop.f32.mrb[0].mxu0
        %2033 = vdwg.mxu0
        %v2034 = vadd.f32 %v1945, %v2031
        %v2035 = vmax.f32 %v2034, 0.0
        %v2036 = vld [vmem:[%s9] sm:$0xf]
        %vm2037 = vcmask 64512
        %v2039 = vsel %vm2037, %v2036, 0
        %2041 = vmatprep.subr.mxu0 0.0
        %2042 = vmatpush1.msra.mxu0 %v2035
        %2043 = vmatprep.subr.mxu0 0.0
        %2044 = vmatpush1.msra.mxu0 0.0
        %2045 = vmatprep.subr.mxu0 0.0
        %2046 = vmatpush1.msra.mxu0 0.0
        %2047 = vmatprep.subr.mxu0 0.0
        %2048 = vmatpush1.msra.mxu0 0.0
        %2049 = vmatprep.subr.mxu0 0.0
        %2050 = vmatpush1.msra.mxu0 0.0
        %2051 = vmatprep.subr.mxu0 0.0
        %2052 = vmatpush1.msra.mxu0 0.0
        %2053 = vmatprep.subr.mxu0 0.0
        %2054 = vmatpush1.msra.mxu0 0.0
        %2055 = vmatprep.subr.mxu0 0.0
        %2056 = vmatpush1.msra.mxu0 0.0
        %2057 = vmatprep.subr.mxu0 0.0
        %2058 = vmatpush1.msra.mxu0 0.0
        %2059 = vmatprep.subr.mxu0 0.0
        %2060 = vmatpush1.msra.mxu0 0.0
        %2061 = vmatprep.subr.mxu0 0.0
        %2062 = vmatpush1.msra.mxu0 0.0
        %2063 = vmatprep.subr.mxu0 0.0
        %2064 = vmatpush1.msra.mxu0 0.0
        %2065 = vmatprep.subr.mxu0 0.0
        %2066 = vmatpush1.msra.mxu0 0.0
        %2067 = vmatprep.subr.mxu0 0.0
        %2068 = vmatpush1.msra.mxu0 0.0
        %2069 = vmatprep.subr.mxu0 0.0
        %2070 = vmatpush1.msra.mxu0 0.0
        %2071 = vmatprep.subr.mxu0 0.0
        %2072 = vmatpush1.msra.mxu0 0.0
        %2073 = vmatprep.subr.mxu0 0.0
        %2074 = vmatpush1.msra.mxu0 0.0
        %2075 = vmatprep.subr.mxu0 0.0
        %2076 = vmatpush1.msra.mxu0 0.0
        %2077 = vmatprep.subr.mxu0 0.0
        %2078 = vmatpush1.msra.mxu0 0.0
        %2079 = vmatprep.subr.mxu0 0.0
        %2080 = vmatpush1.msra.mxu0 0.0
        %2081 = vmatprep.subr.mxu0 0.0
        %2082 = vmatpush1.msra.mxu0 0.0
        %2083 = vmatprep.subr.mxu0 0.0
        %2084 = vmatpush1.msra.mxu0 0.0
        %2085 = vmatprep.subr.mxu0 0.0
        %2086 = vmatpush1.msra.mxu0 0.0
        %2087 = vmatprep.subr.mxu0 0.0
        %2088 = vmatpush1.msra.mxu0 0.0
        %2089 = vmatprep.subr.mxu0 0.0
        %2090 = vmatpush1.msra.mxu0 0.0
        %2091 = vmatprep.subr.mxu0 0.0
        %2092 = vmatpush1.msra.mxu0 0.0
        %2093 = vmatprep.subr.mxu0 0.0
        %2094 = vmatpush1.msra.mxu0 0.0
        %2095 = vmatprep.subr.mxu0 0.0
        %2096 = vmatpush1.msra.mxu0 0.0
        %2097 = vmatprep.subr.mxu0 0.0
        %2098 = vmatpush1.msra.mxu0 0.0
        %2099 = vmatprep.subr.mxu0 0.0
        %2100 = vmatpush1.msra.mxu0 0.0
        %2101 = vmatprep.subr.mxu0 0.0
        %2102 = vmatpush1.msra.mxu0 0.0
        %2103 = vmatprep.subr.mxu0 0.0
        %2104 = vmatpush1.msra.mxu0 0.0
        %2105 = vmatprep.mubr.f32.mxu0 0.0
        %2106 = vmatmul.mubr.f32.gmra.mrb[0].mxu0 %v2039
        %v2107 = vpop.f32.mrb[0].mxu0
        %v2108 = vadd.f32 0.0, %v2107
        %v2109 = vpop.f32.mrb[0].mxu0
        %2110 = vdwg.mxu0
        %v2111 = vld [vmem:[%s10] sm:$0xf]
        %v2113 = vsel %vm2037, %v2111, 0
        %2115 = vmatprep.subr.mxu0 0.0
        %2116 = vmatpush1.msra.mxu0 %v2035
        %2117 = vmatprep.subr.mxu0 0.0
        %2118 = vmatpush1.msra.mxu0 0.0
        %2119 = vmatprep.subr.mxu0 0.0
        %2120 = vmatpush1.msra.mxu0 0.0
        %2121 = vmatprep.subr.mxu0 0.0
        %2122 = vmatpush1.msra.mxu0 0.0
        %2123 = vmatprep.subr.mxu0 0.0
        %2124 = vmatpush1.msra.mxu0 0.0
        %2125 = vmatprep.subr.mxu0 0.0
        %2126 = vmatpush1.msra.mxu0 0.0
        %2127 = vmatprep.subr.mxu0 0.0
        %2128 = vmatpush1.msra.mxu0 0.0
        %2129 = vmatprep.subr.mxu0 0.0
        %2130 = vmatpush1.msra.mxu0 0.0
        %2131 = vmatprep.subr.mxu0 0.0
        %2132 = vmatpush1.msra.mxu0 0.0
        %2133 = vmatprep.subr.mxu0 0.0
        %2134 = vmatpush1.msra.mxu0 0.0
        %2135 = vmatprep.subr.mxu0 0.0
        %2136 = vmatpush1.msra.mxu0 0.0
        %2137 = vmatprep.subr.mxu0 0.0
        %2138 = vmatpush1.msra.mxu0 0.0
        %2139 = vmatprep.subr.mxu0 0.0
        %2140 = vmatpush1.msra.mxu0 0.0
        %2141 = vmatprep.subr.mxu0 0.0
        %2142 = vmatpush1.msra.mxu0 0.0
        %2143 = vmatprep.subr.mxu0 0.0
        %2144 = vmatpush1.msra.mxu0 0.0
        %2145 = vmatprep.subr.mxu0 0.0
        %2146 = vmatpush1.msra.mxu0 0.0
        %2147 = vmatprep.subr.mxu0 0.0
        %2148 = vmatpush1.msra.mxu0 0.0
        %2149 = vmatprep.subr.mxu0 0.0
        %2150 = vmatpush1.msra.mxu0 0.0
        %2151 = vmatprep.subr.mxu0 0.0
        %2152 = vmatpush1.msra.mxu0 0.0
        %2153 = vmatprep.subr.mxu0 0.0
        %2154 = vmatpush1.msra.mxu0 0.0
        %2155 = vmatprep.subr.mxu0 0.0
        %2156 = vmatpush1.msra.mxu0 0.0
        %2157 = vmatprep.subr.mxu0 0.0
        %2158 = vmatpush1.msra.mxu0 0.0
        %2159 = vmatprep.subr.mxu0 0.0
        %2160 = vmatpush1.msra.mxu0 0.0
        %2161 = vmatprep.subr.mxu0 0.0
        %2162 = vmatpush1.msra.mxu0 0.0
        %2163 = vmatprep.subr.mxu0 0.0
        %2164 = vmatpush1.msra.mxu0 0.0
        %2165 = vmatprep.subr.mxu0 0.0
        %2166 = vmatpush1.msra.mxu0 0.0
        %2167 = vmatprep.subr.mxu0 0.0
        %2168 = vmatpush1.msra.mxu0 0.0
        %2169 = vmatprep.subr.mxu0 0.0
        %2170 = vmatpush1.msra.mxu0 0.0
        %2171 = vmatprep.subr.mxu0 0.0
        %2172 = vmatpush1.msra.mxu0 0.0
        %2173 = vmatprep.subr.mxu0 0.0
        %2174 = vmatpush1.msra.mxu0 0.0
        %2175 = vmatprep.subr.mxu0 0.0
        %2176 = vmatpush1.msra.mxu0 0.0
        %2177 = vmatprep.subr.mxu0 0.0
        %2178 = vmatpush1.msra.mxu0 0.0
        %2179 = vmatprep.mubr.f32.mxu0 0.0
        %2180 = vmatmul.mubr.f32.gmra.mrb[0].mxu0 %v2113
        %v2181 = vpop.f32.mrb[0].mxu0
        %v2182 = vadd.f32 0.0, %v2181
        %v2183 = vpop.f32.mrb[0].mxu0
        %2184 = vdwg.mxu0
        %v2185 = vmax.f32 %v2108, %v2182
        %v2186 = vld [vmem:[%s11] sm:$0xff]
        %v2187 = vld [vmem:[%s11 + $0x8] sm:$0xff]
        %v2188 = vld [vmem:[%s11 + $0x10] sm:$0xff]
        %v2189 = vld [vmem:[%s11 + $0x18] sm:$0xff]
        %v2190 = vld [vmem:[%s11 + $0x20] sm:$0xff]
        %v2191 = vld [vmem:[%s11 + $0x28] sm:$0xff]
        %v2192 = vld [vmem:[%s11 + $0x30] sm:$0xff]
        %v2193 = vld [vmem:[%s11 + $0x38] sm:$0xff]
        %v2194 = vld [vmem:[%s11 + $0x40] sm:$0xff]
        %v2195 = vld [vmem:[%s11 + $0x48] sm:$0xff]
        %v2196 = vld [vmem:[%s11 + $0x50] sm:$0xff]
        %v2197 = vld [vmem:[%s11 + $0x58] sm:$0xff]
        %v2198 = vld [vmem:[%s11 + $0x60] sm:$0xff]
        %v2199 = vld [vmem:[%s11 + $0x68] sm:$0xff]
        %v2200 = vld [vmem:[%s11 + $0x70] sm:$0xff]
        %v2201 = vld [vmem:[%s11 + $0x78] sm:$0xff]
        %2202 = vmatprep.subr.mxu0 0.0
        %2203 = vmatpush1.msra.mxu0 %v2186
        %2204 = vmatprep.subr.mxu0 0.0
        %2205 = vmatpush1.msra.mxu0 %v2187
        %2206 = vmatprep.subr.mxu0 0.0
        %2207 = vmatpush1.msra.mxu0 %v2188
        %2208 = vmatprep.subr.mxu0 0.0
        %2209 = vmatpush1.msra.mxu0 %v2189
        %2210 = vmatprep.subr.mxu0 0.0
        %2211 = vmatpush1.msra.mxu0 %v2190
        %2212 = vmatprep.subr.mxu0 0.0
        %2213 = vmatpush1.msra.mxu0 %v2191
        %2214 = vmatprep.subr.mxu0 0.0
        %2215 = vmatpush1.msra.mxu0 %v2192
        %2216 = vmatprep.subr.mxu0 0.0
        %2217 = vmatpush1.msra.mxu0 %v2193
        %2218 = vmatprep.subr.mxu0 0.0
        %2219 = vmatpush1.msra.mxu0 %v2194
        %2220 = vmatprep.subr.mxu0 0.0
        %2221 = vmatpush1.msra.mxu0 %v2195
        %2222 = vmatprep.subr.mxu0 0.0
        %2223 = vmatpush1.msra.mxu0 %v2196
        %2224 = vmatprep.subr.mxu0 0.0
        %2225 = vmatpush1.msra.mxu0 %v2197
        %2226 = vmatprep.subr.mxu0 0.0
        %2227 = vmatpush1.msra.mxu0 %v2198
        %2228 = vmatprep.subr.mxu0 0.0
        %2229 = vmatpush1.msra.mxu0 %v2199
        %2230 = vmatprep.subr.mxu0 0.0
        %2231 = vmatpush1.msra.mxu0 %v2200
        %2232 = vmatprep.subr.mxu0 0.0
        %2233 = vmatpush1.msra.mxu0 %v2201
        %2234 = vmatprep.subr.mxu0 0.0
        %2235 = vmatpush1.msra.mxu0 0.0
        %2236 = vmatprep.subr.mxu0 0.0
        %2237 = vmatpush1.msra.mxu0 0.0
        %2238 = vmatprep.subr.mxu0 0.0
        %2239 = vmatpush1.msra.mxu0 0.0
        %2240 = vmatprep.subr.mxu0 0.0
        %2241 = vmatpush1.msra.mxu0 0.0
        %2242 = vmatprep.subr.mxu0 0.0
        %2243 = vmatpush1.msra.mxu0 0.0
        %2244 = vmatprep.subr.mxu0 0.0
        %2245 = vmatpush1.msra.mxu0 0.0
        %2246 = vmatprep.subr.mxu0 0.0
        %2247 = vmatpush1.msra.mxu0 0.0
        %2248 = vmatprep.subr.mxu0 0.0
        %2249 = vmatpush1.msra.mxu0 0.0
        %2250 = vmatprep.subr.mxu0 0.0
        %2251 = vmatpush1.msra.mxu0 0.0
        %2252 = vmatprep.subr.mxu0 0.0
        %2253 = vmatpush1.msra.mxu0 0.0
        %2254 = vmatprep.subr.mxu0 0.0
        %2255 = vmatpush1.msra.mxu0 0.0
        %2256 = vmatprep.subr.mxu0 0.0
        %2257 = vmatpush1.msra.mxu0 0.0
        %2258 = vmatprep.subr.mxu0 0.0
        %2259 = vmatpush1.msra.mxu0 0.0
        %2260 = vmatprep.subr.mxu0 0.0
        %2261 = vmatpush1.msra.mxu0 0.0
        %2262 = vmatprep.subr.mxu0 0.0
        %2263 = vmatpush1.msra.mxu0 0.0
        %2264 = vmatprep.subr.mxu0 0.0
        %2265 = vmatpush1.msra.mxu0 0.0
        %2266 = vmatprep.mubr.f32.mxu0 0.0
        %2267 = vmatmul.mubr.f32.gmra.mrb[0].mxu0 %v2185
        %v2268 = vpop.f32.mrb[0].mxu0
        %v2269 = vadd.f32 0.0, %v2268
        %v2270 = vpop.f32.mrb[0].mxu0
        %2271 = vdwg.mxu0
        %v2272 = vld [vmem:[%s12] sm:$0xff]
        %v2273 = vld [vmem:[%s12 + $0x8] sm:$0xff]
        %v2274 = vld [vmem:[%s12 + $0x10] sm:$0xff]
        %v2275 = vld [vmem:[%s12 + $0x18] sm:$0xff]
        %v2276 = vld [vmem:[%s12 + $0x20] sm:$0xff]
        %v2277 = vld [vmem:[%s12 + $0x28] sm:$0xff]
        %v2278 = vld [vmem:[%s12 + $0x30] sm:$0xff]
        %v2279 = vld [vmem:[%s12 + $0x38] sm:$0xff]
        %v2280 = vld [vmem:[%s12 + $0x40] sm:$0xff]
        %v2281 = vld [vmem:[%s12 + $0x48] sm:$0xff]
        %v2282 = vld [vmem:[%s12 + $0x50] sm:$0xff]
        %v2283 = vld [vmem:[%s12 + $0x58] sm:$0xff]
        %v2284 = vld [vmem:[%s12 + $0x60] sm:$0xff]
        %v2285 = vld [vmem:[%s12 + $0x68] sm:$0xff]
        %v2286 = vld [vmem:[%s12 + $0x70] sm:$0xff]
        %v2287 = vld [vmem:[%s12 + $0x78] sm:$0xff]
        %2288 = vmatprep.subr.mxu0 0.0
        %2289 = vmatpush1.msra.mxu0 %v2272
        %2290 = vmatprep.subr.mxu0 0.0
        %2291 = vmatpush1.msra.mxu0 %v2273
        %2292 = vmatprep.subr.mxu0 0.0
        %2293 = vmatpush1.msra.mxu0 %v2274
        %2294 = vmatprep.subr.mxu0 0.0
        %2295 = vmatpush1.msra.mxu0 %v2275
        %2296 = vmatprep.subr.mxu0 0.0
        %2297 = vmatpush1.msra.mxu0 %v2276
        %2298 = vmatprep.subr.mxu0 0.0
        %2299 = vmatpush1.msra.mxu0 %v2277
        %2300 = vmatprep.subr.mxu0 0.0
        %2301 = vmatpush1.msra.mxu0 %v2278
        %2302 = vmatprep.subr.mxu0 0.0
        %2303 = vmatpush1.msra.mxu0 %v2279
        %2304 = vmatprep.subr.mxu0 0.0
        %2305 = vmatpush1.msra.mxu0 %v2280
        %2306 = vmatprep.subr.mxu0 0.0
        %2307 = vmatpush1.msra.mxu0 %v2281
        %2308 = vmatprep.subr.mxu0 0.0
        %2309 = vmatpush1.msra.mxu0 %v2282
        %2310 = vmatprep.subr.mxu0 0.0
        %2311 = vmatpush1.msra.mxu0 %v2283
        %2312 = vmatprep.subr.mxu0 0.0
        %2313 = vmatpush1.msra.mxu0 %v2284
        %2314 = vmatprep.subr.mxu0 0.0
        %2315 = vmatpush1.msra.mxu0 %v2285
        %2316 = vmatprep.subr.mxu0 0.0
        %2317 = vmatpush1.msra.mxu0 %v2286
        %2318 = vmatprep.subr.mxu0 0.0
        %2319 = vmatpush1.msra.mxu0 %v2287
        %2320 = vmatprep.subr.mxu0 0.0
        %2321 = vmatpush1.msra.mxu0 0.0
        %2322 = vmatprep.subr.mxu0 0.0
        %2323 = vmatpush1.msra.mxu0 0.0
        %2324 = vmatprep.subr.mxu0 0.0
        %2325 = vmatpush1.msra.mxu0 0.0
        %2326 = vmatprep.subr.mxu0 0.0
        %2327 = vmatpush1.msra.mxu0 0.0
        %2328 = vmatprep.subr.mxu0 0.0
        %2329 = vmatpush1.msra.mxu0 0.0
        %2330 = vmatprep.subr.mxu0 0.0
        %2331 = vmatpush1.msra.mxu0 0.0
        %2332 = vmatprep.subr.mxu0 0.0
        %2333 = vmatpush1.msra.mxu0 0.0
        %2334 = vmatprep.subr.mxu0 0.0
        %2335 = vmatpush1.msra.mxu0 0.0
        %2336 = vmatprep.subr.mxu0 0.0
        %2337 = vmatpush1.msra.mxu0 0.0
        %2338 = vmatprep.subr.mxu0 0.0
        %2339 = vmatpush1.msra.mxu0 0.0
        %2340 = vmatprep.subr.mxu0 0.0
        %2341 = vmatpush1.msra.mxu0 0.0
        %2342 = vmatprep.subr.mxu0 0.0
        %2343 = vmatpush1.msra.mxu0 0.0
        %2344 = vmatprep.subr.mxu0 0.0
        %2345 = vmatpush1.msra.mxu0 0.0
        %2346 = vmatprep.subr.mxu0 0.0
        %2347 = vmatpush1.msra.mxu0 0.0
        %2348 = vmatprep.subr.mxu0 0.0
        %2349 = vmatpush1.msra.mxu0 0.0
        %2350 = vmatprep.subr.mxu0 0.0
        %2351 = vmatpush1.msra.mxu0 0.0
        %2352 = vmatprep.mubr.f32.mxu0 0.0
        %2353 = vmatmul.mubr.f32.gmra.mrb[0].mxu0 %v2185
        %v2354 = vpop.f32.mrb[0].mxu0
        %v2355 = vadd.f32 0.0, %v2354
        %v2356 = vpop.f32.mrb[0].mxu0
        %2357 = vdwg.mxu0
        %v2358 = vmax.f32 %v2269, %v2355
        %v2359 = vld [vmem:[%s14] sm:$0x1]
        %v2360 = vld [vmem:[%s13] sm:$0xff]
        %v2361 = vld [vmem:[%s13 + $0x8] sm:$0xff]
        %v2362 = vld [vmem:[%s13 + $0x10] sm:$0xff]
        %v2363 = vld [vmem:[%s13 + $0x18] sm:$0xff]
        %v2364 = vld [vmem:[%s13 + $0x20] sm:$0xff]
        %v2365 = vld [vmem:[%s13 + $0x28] sm:$0xff]
        %v2366 = vld [vmem:[%s13 + $0x30] sm:$0xff]
        %v2367 = vld [vmem:[%s13 + $0x38] sm:$0xff]
        %v2369 = vsel %vm1398, %v2358, 0
        %2371 = vmatprep.subr.mxu0 0.0
        %2372 = vmatpush1.msra.mxu0 %v2360
        %2373 = vmatprep.subr.mxu0 0.0
        %2374 = vmatpush1.msra.mxu0 %v2361
        %2375 = vmatprep.subr.mxu0 0.0
        %2376 = vmatpush1.msra.mxu0 %v2362
        %2377 = vmatprep.subr.mxu0 0.0
        %2378 = vmatpush1.msra.mxu0 %v2363
        %2379 = vmatprep.subr.mxu0 0.0
        %2380 = vmatpush1.msra.mxu0 %v2364
        %2381 = vmatprep.subr.mxu0 0.0
        %2382 = vmatpush1.msra.mxu0 %v2365
        %2383 = vmatprep.subr.mxu0 0.0
        %2384 = vmatpush1.msra.mxu0 %v2366
        %2385 = vmatprep.subr.mxu0 0.0
        %2386 = vmatpush1.msra.mxu0 %v2367
        %2387 = vmatprep.subr.mxu0 0.0
        %2388 = vmatpush1.msra.mxu0 0.0
        %2389 = vmatprep.subr.mxu0 0.0
        %2390 = vmatpush1.msra.mxu0 0.0
        %2391 = vmatprep.subr.mxu0 0.0
        %2392 = vmatpush1.msra.mxu0 0.0
        %2393 = vmatprep.subr.mxu0 0.0
        %2394 = vmatpush1.msra.mxu0 0.0
        %2395 = vmatprep.subr.mxu0 0.0
        %2396 = vmatpush1.msra.mxu0 0.0
        %2397 = vmatprep.subr.mxu0 0.0
        %2398 = vmatpush1.msra.mxu0 0.0
        %2399 = vmatprep.subr.mxu0 0.0
        %2400 = vmatpush1.msra.mxu0 0.0
        %2401 = vmatprep.subr.mxu0 0.0
        %2402 = vmatpush1.msra.mxu0 0.0
        %2403 = vmatprep.subr.mxu0 0.0
        %2404 = vmatpush1.msra.mxu0 0.0
        %2405 = vmatprep.subr.mxu0 0.0
        %2406 = vmatpush1.msra.mxu0 0.0
        %2407 = vmatprep.subr.mxu0 0.0
        %2408 = vmatpush1.msra.mxu0 0.0
        %2409 = vmatprep.subr.mxu0 0.0
        %2410 = vmatpush1.msra.mxu0 0.0
        %2411 = vmatprep.subr.mxu0 0.0
        %2412 = vmatpush1.msra.mxu0 0.0
        %2413 = vmatprep.subr.mxu0 0.0
        %2414 = vmatpush1.msra.mxu0 0.0
        %2415 = vmatprep.subr.mxu0 0.0
        %2416 = vmatpush1.msra.mxu0 0.0
        %2417 = vmatprep.subr.mxu0 0.0
        %2418 = vmatpush1.msra.mxu0 0.0
        %2419 = vmatprep.subr.mxu0 0.0
        %2420 = vmatpush1.msra.mxu0 0.0
        %2421 = vmatprep.subr.mxu0 0.0
        %2422 = vmatpush1.msra.mxu0 0.0
        %2423 = vmatprep.subr.mxu0 0.0
        %2424 = vmatpush1.msra.mxu0 0.0
        %2425 = vmatprep.subr.mxu0 0.0
        %2426 = vmatpush1.msra.mxu0 0.0
        %2427 = vmatprep.subr.mxu0 0.0
        %2428 = vmatpush1.msra.mxu0 0.0
        %2429 = vmatprep.subr.mxu0 0.0
        %2430 = vmatpush1.msra.mxu0 0.0
        %2431 = vmatprep.subr.mxu0 0.0
        %2432 = vmatpush1.msra.mxu0 0.0
        %2433 = vmatprep.subr.mxu0 0.0
        %2434 = vmatpush1.msra.mxu0 0.0
        %2435 = vmatprep.mubr.f32.mxu0 0.0
        %2436 = vmatmul.mubr.f32.gmra.mrb[0].mxu0 %v2369
        %v2437 = vpop.f32.mrb[0].mxu0
        %v2438 = vadd.f32 0.0, %v2437
        %v2439 = vpop.f32.mrb[0].mxu0
        %2440 = vdwg.mxu0
        %v2441 = vadd.f32 %v2359, %v2438
        %s2442 = scalar_lea.vmem %s13, 64
        %v2443 = vld [vmem:[%s2442] sm:$0xff]
        %v2444 = vld [vmem:[%s2442 + $0x8] sm:$0xff]
        %v2445 = vld [vmem:[%s2442 + $0x10] sm:$0xff]
        %v2446 = vld [vmem:[%s2442 + $0x18] sm:$0xff]
        %v2447 = vld [vmem:[%s2442 + $0x20] sm:$0xff]
        %v2448 = vld [vmem:[%s2442 + $0x28] sm:$0xff]
        %v2449 = vld [vmem:[%s2442 + $0x30] sm:$0xff]
        %v2450 = vld [vmem:[%s2442 + $0x38] sm:$0xff]
        %v2451 = vrot.slane %v2358, 1
        %v2452 = vsel %vm1398, %v2451, 0
        %2454 = vmatprep.subr.mxu0 0.0
        %2455 = vmatpush1.msra.mxu0 %v2443
        %2456 = vmatprep.subr.mxu0 0.0
        %2457 = vmatpush1.msra.mxu0 %v2444
        %2458 = vmatprep.subr.mxu0 0.0
        %2459 = vmatpush1.msra.mxu0 %v2445
        %2460 = vmatprep.subr.mxu0 0.0
        %2461 = vmatpush1.msra.mxu0 %v2446
        %2462 = vmatprep.subr.mxu0 0.0
        %2463 = vmatpush1.msra.mxu0 %v2447
        %2464 = vmatprep.subr.mxu0 0.0
        %2465 = vmatpush1.msra.mxu0 %v2448
        %2466 = vmatprep.subr.mxu0 0.0
        %2467 = vmatpush1.msra.mxu0 %v2449
        %2468 = vmatprep.subr.mxu0 0.0
        %2469 = vmatpush1.msra.mxu0 %v2450
        %2470 = vmatprep.subr.mxu0 0.0
        %2471 = vmatpush1.msra.mxu0 0.0
        %2472 = vmatprep.subr.mxu0 0.0
        %2473 = vmatpush1.msra.mxu0 0.0
        %2474 = vmatprep.subr.mxu0 0.0
        %2475 = vmatpush1.msra.mxu0 0.0
        %2476 = vmatprep.subr.mxu0 0.0
        %2477 = vmatpush1.msra.mxu0 0.0
        %2478 = vmatprep.subr.mxu0 0.0
        %2479 = vmatpush1.msra.mxu0 0.0
        %2480 = vmatprep.subr.mxu0 0.0
        %2481 = vmatpush1.msra.mxu0 0.0
        %2482 = vmatprep.subr.mxu0 0.0
        %2483 = vmatpush1.msra.mxu0 0.0
        %2484 = vmatprep.subr.mxu0 0.0
        %2485 = vmatpush1.msra.mxu0 0.0
        %2486 = vmatprep.subr.mxu0 0.0
        %2487 = vmatpush1.msra.mxu0 0.0
        %2488 = vmatprep.subr.mxu0 0.0
        %2489 = vmatpush1.msra.mxu0 0.0
        %2490 = vmatprep.subr.mxu0 0.0
        %2491 = vmatpush1.msra.mxu0 0.0
        %2492 = vmatprep.subr.mxu0 0.0
        %2493 = vmatpush1.msra.mxu0 0.0
        %2494 = vmatprep.subr.mxu0 0.0
        %2495 = vmatpush1.msra.mxu0 0.0
        %2496 = vmatprep.subr.mxu0 0.0
        %2497 = vmatpush1.msra.mxu0 0.0
        %2498 = vmatprep.subr.mxu0 0.0
        %2499 = vmatpush1.msra.mxu0 0.0
        %2500 = vmatprep.subr.mxu0 0.0
        %2501 = vmatpush1.msra.mxu0 0.0
        %2502 = vmatprep.subr.mxu0 0.0
        %2503 = vmatpush1.msra.mxu0 0.0
        %2504 = vmatprep.subr.mxu0 0.0
        %2505 = vmatpush1.msra.mxu0 0.0
        %2506 = vmatprep.subr.mxu0 0.0
        %2507 = vmatpush1.msra.mxu0 0.0
        %2508 = vmatprep.subr.mxu0 0.0
        %2509 = vmatpush1.msra.mxu0 0.0
        %2510 = vmatprep.subr.mxu0 0.0
        %2511 = vmatpush1.msra.mxu0 0.0
        %2512 = vmatprep.subr.mxu0 0.0
        %2513 = vmatpush1.msra.mxu0 0.0
        %2514 = vmatprep.subr.mxu0 0.0
        %2515 = vmatpush1.msra.mxu0 0.0
        %2516 = vmatprep.subr.mxu0 0.0
        %2517 = vmatpush1.msra.mxu0 0.0
        %2518 = vmatprep.mubr.f32.mxu0 0.0
        %2519 = vmatmul.mubr.f32.gmra.mrb[0].mxu0 %v2452
        %v2520 = vpop.f32.mrb[0].mxu0
        %v2521 = vadd.f32 0.0, %v2520
        %v2522 = vpop.f32.mrb[0].mxu0
        %2523 = vdwg.mxu0
        %v2524 = vadd.f32 %v2441, %v2521
        %s2525 = scalar_lea.vmem %s13, 128
        %v2526 = vld [vmem:[%s2525] sm:$0xff]
        %v2527 = vld [vmem:[%s2525 + $0x8] sm:$0xff]
        %v2528 = vld [vmem:[%s2525 + $0x10] sm:$0xff]
        %v2529 = vld [vmem:[%s2525 + $0x18] sm:$0xff]
        %v2530 = vld [vmem:[%s2525 + $0x20] sm:$0xff]
        %v2531 = vld [vmem:[%s2525 + $0x28] sm:$0xff]
        %v2532 = vld [vmem:[%s2525 + $0x30] sm:$0xff]
        %v2533 = vld [vmem:[%s2525 + $0x38] sm:$0xff]
        %v2534 = vrot.slane %v2358, 2
        %v2535 = vsel %vm1398, %v2534, 0
        %2537 = vmatprep.subr.mxu0 0.0
        %2538 = vmatpush1.msra.mxu0 %v2526
        %2539 = vmatprep.subr.mxu0 0.0
        %2540 = vmatpush1.msra.mxu0 %v2527
        %2541 = vmatprep.subr.mxu0 0.0
        %2542 = vmatpush1.msra.mxu0 %v2528
        %2543 = vmatprep.subr.mxu0 0.0
        %2544 = vmatpush1.msra.mxu0 %v2529
        %2545 = vmatprep.subr.mxu0 0.0
        %2546 = vmatpush1.msra.mxu0 %v2530
        %2547 = vmatprep.subr.mxu0 0.0
        %2548 = vmatpush1.msra.mxu0 %v2531
        %2549 = vmatprep.subr.mxu0 0.0
        %2550 = vmatpush1.msra.mxu0 %v2532
        %2551 = vmatprep.subr.mxu0 0.0
        %2552 = vmatpush1.msra.mxu0 %v2533
        %2553 = vmatprep.subr.mxu0 0.0
        %2554 = vmatpush1.msra.mxu0 0.0
        %2555 = vmatprep.subr.mxu0 0.0
        %2556 = vmatpush1.msra.mxu0 0.0
        %2557 = vmatprep.subr.mxu0 0.0
        %2558 = vmatpush1.msra.mxu0 0.0
        %2559 = vmatprep.subr.mxu0 0.0
        %2560 = vmatpush1.msra.mxu0 0.0
        %2561 = vmatprep.subr.mxu0 0.0
        %2562 = vmatpush1.msra.mxu0 0.0
        %2563 = vmatprep.subr.mxu0 0.0
        %2564 = vmatpush1.msra.mxu0 0.0
        %2565 = vmatprep.subr.mxu0 0.0
        %2566 = vmatpush1.msra.mxu0 0.0
        %2567 = vmatprep.subr.mxu0 0.0
        %2568 = vmatpush1.msra.mxu0 0.0
        %2569 = vmatprep.subr.mxu0 0.0
        %2570 = vmatpush1.msra.mxu0 0.0
        %2571 = vmatprep.subr.mxu0 0.0
        %2572 = vmatpush1.msra.mxu0 0.0
        %2573 = vmatprep.subr.mxu0 0.0
        %2574 = vmatpush1.msra.mxu0 0.0
        %2575 = vmatprep.subr.mxu0 0.0
        %2576 = vmatpush1.msra.mxu0 0.0
        %2577 = vmatprep.subr.mxu0 0.0
        %2578 = vmatpush1.msra.mxu0 0.0
        %2579 = vmatprep.subr.mxu0 0.0
        %2580 = vmatpush1.msra.mxu0 0.0
        %2581 = vmatprep.subr.mxu0 0.0
        %2582 = vmatpush1.msra.mxu0 0.0
        %2583 = vmatprep.subr.mxu0 0.0
        %2584 = vmatpush1.msra.mxu0 0.0
        %2585 = vmatprep.subr.mxu0 0.0
        %2586 = vmatpush1.msra.mxu0 0.0
        %2587 = vmatprep.subr.mxu0 0.0
        %2588 = vmatpush1.msra.mxu0 0.0
        %2589 = vmatprep.subr.mxu0 0.0
        %2590 = vmatpush1.msra.mxu0 0.0
        %2591 = vmatprep.subr.mxu0 0.0
        %2592 = vmatpush1.msra.mxu0 0.0
        %2593 = vmatprep.subr.mxu0 0.0
        %2594 = vmatpush1.msra.mxu0 0.0
        %2595 = vmatprep.subr.mxu0 0.0
        %2596 = vmatpush1.msra.mxu0 0.0
        %2597 = vmatprep.subr.mxu0 0.0
        %2598 = vmatpush1.msra.mxu0 0.0
        %2599 = vmatprep.subr.mxu0 0.0
        %2600 = vmatpush1.msra.mxu0 0.0
        %2601 = vmatprep.mubr.f32.mxu0 0.0
        %2602 = vmatmul.mubr.f32.gmra.mrb[0].mxu0 %v2535
        %v2603 = vpop.f32.mrb[0].mxu0
        %v2604 = vadd.f32 0.0, %v2603
        %v2605 = vpop.f32.mrb[0].mxu0
        %2606 = vdwg.mxu0
        %v2607 = vadd.f32 %v2524, %v2604
        %s2608 = scalar_lea.vmem %s13, 192
        %v2609 = vld [vmem:[%s2608] sm:$0xff]
        %v2610 = vld [vmem:[%s2608 + $0x8] sm:$0xff]
        %v2611 = vld [vmem:[%s2608 + $0x10] sm:$0xff]
        %v2612 = vld [vmem:[%s2608 + $0x18] sm:$0xff]
        %v2613 = vld [vmem:[%s2608 + $0x20] sm:$0xff]
        %v2614 = vld [vmem:[%s2608 + $0x28] sm:$0xff]
        %v2615 = vld [vmem:[%s2608 + $0x30] sm:$0xff]
        %v2616 = vld [vmem:[%s2608 + $0x38] sm:$0xff]
        %v2617 = vrot.slane %v2358, 3
        %v2618 = vsel %vm1398, %v2617, 0
        %2620 = vmatprep.subr.mxu0 0.0
        %2621 = vmatpush1.msra.mxu0 %v2609
        %2622 = vmatprep.subr.mxu0 0.0
        %2623 = vmatpush1.msra.mxu0 %v2610
        %2624 = vmatprep.subr.mxu0 0.0
        %2625 = vmatpush1.msra.mxu0 %v2611
        %2626 = vmatprep.subr.mxu0 0.0
        %2627 = vmatpush1.msra.mxu0 %v2612
        %2628 = vmatprep.subr.mxu0 0.0
        %2629 = vmatpush1.msra.mxu0 %v2613
        %2630 = vmatprep.subr.mxu0 0.0
        %2631 = vmatpush1.msra.mxu0 %v2614
        %2632 = vmatprep.subr.mxu0 0.0
        %2633 = vmatpush1.msra.mxu0 %v2615
        %2634 = vmatprep.subr.mxu0 0.0
        %2635 = vmatpush1.msra.mxu0 %v2616
        %2636 = vmatprep.subr.mxu0 0.0
        %2637 = vmatpush1.msra.mxu0 0.0
        %2638 = vmatprep.subr.mxu0 0.0
        %2639 = vmatpush1.msra.mxu0 0.0
        %2640 = vmatprep.subr.mxu0 0.0
        %2641 = vmatpush1.msra.mxu0 0.0
        %2642 = vmatprep.subr.mxu0 0.0
        %2643 = vmatpush1.msra.mxu0 0.0
        %2644 = vmatprep.subr.mxu0 0.0
        %2645 = vmatpush1.msra.mxu0 0.0
        %2646 = vmatprep.subr.mxu0 0.0
        %2647 = vmatpush1.msra.mxu0 0.0
        %2648 = vmatprep.subr.mxu0 0.0
        %2649 = vmatpush1.msra.mxu0 0.0
        %2650 = vmatprep.subr.mxu0 0.0
        %2651 = vmatpush1.msra.mxu0 0.0
        %2652 = vmatprep.subr.mxu0 0.0
        %2653 = vmatpush1.msra.mxu0 0.0
        %2654 = vmatprep.subr.mxu0 0.0
        %2655 = vmatpush1.msra.mxu0 0.0
        %2656 = vmatprep.subr.mxu0 0.0
        %2657 = vmatpush1.msra.mxu0 0.0
        %2658 = vmatprep.subr.mxu0 0.0
        %2659 = vmatpush1.msra.mxu0 0.0
        %2660 = vmatprep.subr.mxu0 0.0
        %2661 = vmatpush1.msra.mxu0 0.0
        %2662 = vmatprep.subr.mxu0 0.0
        %2663 = vmatpush1.msra.mxu0 0.0
        %2664 = vmatprep.subr.mxu0 0.0
        %2665 = vmatpush1.msra.mxu0 0.0
        %2666 = vmatprep.subr.mxu0 0.0
        %2667 = vmatpush1.msra.mxu0 0.0
        %2668 = vmatprep.subr.mxu0 0.0
        %2669 = vmatpush1.msra.mxu0 0.0
        %2670 = vmatprep.subr.mxu0 0.0
        %2671 = vmatpush1.msra.mxu0 0.0
        %2672 = vmatprep.subr.mxu0 0.0
        %2673 = vmatpush1.msra.mxu0 0.0
        %2674 = vmatprep.subr.mxu0 0.0
        %2675 = vmatpush1.msra.mxu0 0.0
        %2676 = vmatprep.subr.mxu0 0.0
        %2677 = vmatpush1.msra.mxu0 0.0
        %2678 = vmatprep.subr.mxu0 0.0
        %2679 = vmatpush1.msra.mxu0 0.0
        %2680 = vmatprep.subr.mxu0 0.0
        %2681 = vmatpush1.msra.mxu0 0.0
        %2682 = vmatprep.subr.mxu0 0.0
        %2683 = vmatpush1.msra.mxu0 0.0
        %2684 = vmatprep.mubr.f32.mxu0 0.0
        %2685 = vmatmul.mubr.f32.gmra.mrb[0].mxu0 %v2618
        %v2686 = vpop.f32.mrb[0].mxu0
        %v2687 = vadd.f32 0.0, %v2686
        %v2688 = vpop.f32.mrb[0].mxu0
        %2689 = vdwg.mxu0
        %v2690 = vadd.f32 %v2607, %v2687
        %v2691 = vmax.f32 %v2690, 0.0
        %v2692 = vld [vmem:[%s15] sm:$0xff]
        %v2693 = vld [vmem:[%s15 + $0x8] sm:$0xff]
        %v2694 = vld [vmem:[%s15 + $0x10] sm:$0xff]
        %v2695 = vld [vmem:[%s15 + $0x18] sm:$0xff]
        %v2696 = vld [vmem:[%s15 + $0x20] sm:$0xff]
        %v2697 = vld [vmem:[%s15 + $0x28] sm:$0xff]
        %v2698 = vld [vmem:[%s15 + $0x30] sm:$0xff]
        %v2699 = vld [vmem:[%s15 + $0x38] sm:$0xff]
        %v2700 = vld [vmem:[%s15 + $0x40] sm:$0xff]
        %v2701 = vld [vmem:[%s15 + $0x48] sm:$0xff]
        %v2702 = vld [vmem:[%s15 + $0x50] sm:$0xff]
        %v2703 = vld [vmem:[%s15 + $0x58] sm:$0xff]
        %v2704 = vld [vmem:[%s15 + $0x60] sm:$0xff]
        %v2705 = vld [vmem:[%s15 + $0x68] sm:$0xff]
        %v2706 = vld [vmem:[%s15 + $0x70] sm:$0xff]
        %v2707 = vld [vmem:[%s15 + $0x78] sm:$0xff]
        %v2708 = vld [vmem:[%s16] sm:$0x1]
        %2709 = vmatprep.subr.mxu0 0.0
        %2710 = vmatpush1.msra.mxu0 %v2692
        %2711 = vmatprep.subr.mxu0 0.0
        %2712 = vmatpush1.msra.mxu0 %v2693
        %2713 = vmatprep.subr.mxu0 0.0
        %2714 = vmatpush1.msra.mxu0 %v2694
        %2715 = vmatprep.subr.mxu0 0.0
        %2716 = vmatpush1.msra.mxu0 %v2695
        %2717 = vmatprep.subr.mxu0 0.0
        %2718 = vmatpush1.msra.mxu0 %v2696
        %2719 = vmatprep.subr.mxu0 0.0
        %2720 = vmatpush1.msra.mxu0 %v2697
        %2721 = vmatprep.subr.mxu0 0.0
        %2722 = vmatpush1.msra.mxu0 %v2698
        %2723 = vmatprep.subr.mxu0 0.0
        %2724 = vmatpush1.msra.mxu0 %v2699
        %2725 = vmatprep.subr.mxu0 0.0
        %2726 = vmatpush1.msra.mxu0 %v2700
        %2727 = vmatprep.subr.mxu0 0.0
        %2728 = vmatpush1.msra.mxu0 %v2701
        %2729 = vmatprep.subr.mxu0 0.0
        %2730 = vmatpush1.msra.mxu0 %v2702
        %2731 = vmatprep.subr.mxu0 0.0
        %2732 = vmatpush1.msra.mxu0 %v2703
        %2733 = vmatprep.subr.mxu0 0.0
        %2734 = vmatpush1.msra.mxu0 %v2704
        %2735 = vmatprep.subr.mxu0 0.0
        %2736 = vmatpush1.msra.mxu0 %v2705
        %2737 = vmatprep.subr.mxu0 0.0
        %2738 = vmatpush1.msra.mxu0 %v2706
        %2739 = vmatprep.subr.mxu0 0.0
        %2740 = vmatpush1.msra.mxu0 %v2707
        %2741 = vmatprep.subr.mxu0 0.0
        %2742 = vmatpush1.msra.mxu0 0.0
        %2743 = vmatprep.subr.mxu0 0.0
        %2744 = vmatpush1.msra.mxu0 0.0
        %2745 = vmatprep.subr.mxu0 0.0
        %2746 = vmatpush1.msra.mxu0 0.0
        %2747 = vmatprep.subr.mxu0 0.0
        %2748 = vmatpush1.msra.mxu0 0.0
        %2749 = vmatprep.subr.mxu0 0.0
        %2750 = vmatpush1.msra.mxu0 0.0
        %2751 = vmatprep.subr.mxu0 0.0
        %2752 = vmatpush1.msra.mxu0 0.0
        %2753 = vmatprep.subr.mxu0 0.0
        %2754 = vmatpush1.msra.mxu0 0.0
        %2755 = vmatprep.subr.mxu0 0.0
        %2756 = vmatpush1.msra.mxu0 0.0
        %2757 = vmatprep.subr.mxu0 0.0
        %2758 = vmatpush1.msra.mxu0 0.0
        %2759 = vmatprep.subr.mxu0 0.0
        %2760 = vmatpush1.msra.mxu0 0.0
        %2761 = vmatprep.subr.mxu0 0.0
        %2762 = vmatpush1.msra.mxu0 0.0
        %2763 = vmatprep.subr.mxu0 0.0
        %2764 = vmatpush1.msra.mxu0 0.0
        %2765 = vmatprep.subr.mxu0 0.0
        %2766 = vmatpush1.msra.mxu0 0.0
        %2767 = vmatprep.subr.mxu0 0.0
        %2768 = vmatpush1.msra.mxu0 0.0
        %2769 = vmatprep.subr.mxu0 0.0
        %2770 = vmatpush1.msra.mxu0 0.0
        %2771 = vmatprep.subr.mxu0 0.0
        %2772 = vmatpush1.msra.mxu0 0.0
        %2773 = vmatprep.mubr.f32.mxu0 0.0
        %2774 = vmatmul.mubr.f32.gmra.mrb[0].mxu0 %v2691
        %v2775 = vpop.f32.mrb[0].mxu0
        %v2776 = vadd.f32 %v2708, %v2775
        %v2777 = vpop.f32.mrb[0].mxu0
        %2778 = vdwg.mxu0
        %v2779 = vmax.f32 %v2776, 0.0
        %v2780 = vld [vmem:[%s17] sm:$0xff]
        %v2781 = vld [vmem:[%s17 + $0x8] sm:$0xff]
        %v2782 = vld [vmem:[%s17 + $0x10] sm:$0xff]
        %v2783 = vld [vmem:[%s17 + $0x18] sm:$0xff]
        %v2784 = vld [vmem:[%s17 + $0x20] sm:$0xff]
        %v2785 = vld [vmem:[%s17 + $0x28] sm:$0xff]
        %v2786 = vld [vmem:[%s17 + $0x30] sm:$0xff]
        %v2787 = vld [vmem:[%s17 + $0x38] sm:$0xff]
        %v2788 = vld [vmem:[%s18] sm:$0x1]
        %v2790 = vsel %vm1398, %v2779, 0
        %2792 = vmatprep.subr.mxu0 0.0
        %2793 = vmatpush1.msra.mxu0 %v2780
        %2794 = vmatprep.subr.mxu0 0.0
        %2795 = vmatpush1.msra.mxu0 %v2781
        %2796 = vmatprep.subr.mxu0 0.0
        %2797 = vmatpush1.msra.mxu0 %v2782
        %2798 = vmatprep.subr.mxu0 0.0
        %2799 = vmatpush1.msra.mxu0 %v2783
        %2800 = vmatprep.subr.mxu0 0.0
        %2801 = vmatpush1.msra.mxu0 %v2784
        %2802 = vmatprep.subr.mxu0 0.0
        %2803 = vmatpush1.msra.mxu0 %v2785
        %2804 = vmatprep.subr.mxu0 0.0
        %2805 = vmatpush1.msra.mxu0 %v2786
        %2806 = vmatprep.subr.mxu0 0.0
        %2807 = vmatpush1.msra.mxu0 %v2787
        %2808 = vmatprep.subr.mxu0 0.0
        %2809 = vmatpush1.msra.mxu0 0.0
        %2810 = vmatprep.subr.mxu0 0.0
        %2811 = vmatpush1.msra.mxu0 0.0
        %2812 = vmatprep.subr.mxu0 0.0
        %2813 = vmatpush1.msra.mxu0 0.0
        %2814 = vmatprep.subr.mxu0 0.0
        %2815 = vmatpush1.msra.mxu0 0.0
        %2816 = vmatprep.subr.mxu0 0.0
        %2817 = vmatpush1.msra.mxu0 0.0
        %2818 = vmatprep.subr.mxu0 0.0
        %2819 = vmatpush1.msra.mxu0 0.0
        %2820 = vmatprep.subr.mxu0 0.0
        %2821 = vmatpush1.msra.mxu0 0.0
        %2822 = vmatprep.subr.mxu0 0.0
        %2823 = vmatpush1.msra.mxu0 0.0
        %2824 = vmatprep.subr.mxu0 0.0
        %2825 = vmatpush1.msra.mxu0 0.0
        %2826 = vmatprep.subr.mxu0 0.0
        %2827 = vmatpush1.msra.mxu0 0.0
        %2828 = vmatprep.subr.mxu0 0.0
        %2829 = vmatpush1.msra.mxu0 0.0
        %2830 = vmatprep.subr.mxu0 0.0
        %2831 = vmatpush1.msra.mxu0 0.0
        %2832 = vmatprep.subr.mxu0 0.0
        %2833 = vmatpush1.msra.mxu0 0.0
        %2834 = vmatprep.subr.mxu0 0.0
        %2835 = vmatpush1.msra.mxu0 0.0
        %2836 = vmatprep.subr.mxu0 0.0
        %2837 = vmatpush1.msra.mxu0 0.0
        %2838 = vmatprep.subr.mxu0 0.0
        %2839 = vmatpush1.msra.mxu0 0.0
        %2840 = vmatprep.subr.mxu0 0.0
        %2841 = vmatpush1.msra.mxu0 0.0
        %2842 = vmatprep.subr.mxu0 0.0
        %2843 = vmatpush1.msra.mxu0 0.0
        %2844 = vmatprep.subr.mxu0 0.0
        %2845 = vmatpush1.msra.mxu0 0.0
        %2846 = vmatprep.subr.mxu0 0.0
        %2847 = vmatpush1.msra.mxu0 0.0
        %2848 = vmatprep.subr.mxu0 0.0
        %2849 = vmatpush1.msra.mxu0 0.0
        %2850 = vmatprep.subr.mxu0 0.0
        %2851 = vmatpush1.msra.mxu0 0.0
        %2852 = vmatprep.subr.mxu0 0.0
        %2853 = vmatpush1.msra.mxu0 0.0
        %2854 = vmatprep.subr.mxu0 0.0
        %2855 = vmatpush1.msra.mxu0 0.0
        %2856 = vmatprep.mubr.f32.mxu0 0.0
        %2857 = vmatmul.mubr.f32.gmra.mrb[0].mxu0 %v2790
        %v2858 = vpop.f32.mrb[0].mxu0
        %v2859 = vadd.f32 %v2788, %v2858
        %v2860 = vpop.f32.mrb[0].mxu0
        %2861 = vdwg.mxu0
        %vm2862 = vcmask 73728
        %2863 = vst.msk [vmem:[%s594] sm:$0x1] %vm2862, %v2859
        %s2864 = sand.u32 %s445, 1
        %s2865 = scalar_lea.sflag [#allocation3], %s2864
        %s2866 = sand.u32 %s445, 1
        %s2867 = scalar_lea.vmem [#allocation2], %s2866
        // Predicated region
        $region97: #{mnistnet_forward.1} parent=95 // pred_check
          %p2868 = pneg %p455
        $region98: #{mnistnet_forward.1} parent=95 // pred_check_branch
          %2870 = sbr.rel (%p2868) target = $region100
        $region99: #{mnistnet_forward.1} parent=95 // pred_region
          %s2872 = ssub.s32 16, 16
          %2873 = vsyncadd %s2865, %s2872
          %s2874 = smul.addr %s33, 16
          %s2875 = scalar_lea.hbm %s19, %s2874
          %s2877 = sshll.u32 %s2867, 4
          %s2878 = int_to_ptr.vmem [resolvable:$true] %s2877
          %2880 = dma.vmem_to_hbm [thread:$0]  %s2878, 16, %s2875, %s2865
        $region100: #{mnistnet_forward.1} parent=95 // pred_fallthru
          _
      $region96: #{mnistnet_forward.1} parent=5 // pred_fallthru
        _
      %p2881 = scmp.le.s32.totalorder 2, %s28
      // Predicated region
      $region101: #{mnistnet_forward.1} parent=5 // pred_check
        %p2882 = pneg %p2881
      $region102: #{mnistnet_forward.1} parent=5 // pred_check_branch
        %2884 = sbr.rel (%p2882) target = $region104
      $region103: #{mnistnet_forward.1} parent=5 // pred_region
        %s2885 = ssub.s32 %s28, 2
        // Predicated region
        $region105: #{mnistnet_forward.1} parent=103 // pred_check
          %p2886 = pneg %p461
        $region106: #{mnistnet_forward.1} parent=103 // pred_check_branch
          %2888 = sbr.rel (%p2886) target = $region108
        $region107: #{mnistnet_forward.1} parent=103 // pred_region
          %s2889 = sand.u32 %s446, 1
          %s2890 = scalar_lea.sflag [#allocation3], %s2889
          %s2891 = sand.u32 %s446, 1
          %s2892 = scalar_lea.vmem [#allocation2], %s2891
          %2893 = dma.done %s2890, 16
        $region108: #{mnistnet_forward.1} parent=103 // pred_fallthru
          _
      $region104: #{mnistnet_forward.1} parent=5 // pred_fallthru
        _
    $region6: #{mnistnet_forward.1} parent=1 // loop_footer
      %s32 = sadd.s32 1, %s28
    $region7: #{mnistnet_forward.1} parent=1 // loop_footer_branch
      %27 = sbr.rel target = $region3
    $region8: #{mnistnet_forward.1} parent=1 // loop_exit
      _
    %2894 = vsyncpa [#allocation3], 1
    %s2895 = scalar_lea.sflag [#allocation3], 1
    %2896 = vsyncpa %s2895, 1

</llo_original>
